<compile_context>
chip_gen: v7x
topology: tpu7x:2x2x1
jax: 0.10.0
libtpu: 0.0.40
codegen_flags: <defaults>
</compile_context>

<pallas_src>
import functools

import numpy as np
import jax
import jax.numpy as jnp
from jax import lax
from jax.experimental import pallas as pl
from jax.experimental.pallas import tpu as pltpu


def _elu01(a):
    # ELU(alpha=0.1); clamp the exp argument so the unselected branch can't overflow.
    return jnp.where(a > 0, a, 0.1 * (jnp.exp(jnp.minimum(a, 0.0)) - 1.0))


# ---------------------------------------------------------------------------
# Single fused kernel: project(z) -> unrolled autoregressive generation loop.
# ---------------------------------------------------------------------------
def generator_kernel(z_ref,
                     pw1_ref, pb1_ref, pw2h_ref, pb2h_ref, pw2c_ref, pb2c_ref,
                     wcat_ref, bcat_ref,
                     ow1_ref, ob1_ref, ow2_ref, ob2_ref,
                     gum_ref,
                     samp_ref, logp_ref, ent_ref,
                     *, start_token, max_len):
    B, D = z_ref.shape
    V = wcat_ref.shape[0] - D        # vocab size (embedding folded into wcat)
    VP = ow2_ref.shape[1]            # logits width, padded to a multiple of 128 lanes
    f32 = jnp.float32
    dot = functools.partial(jnp.dot, preferred_element_type=f32)

    # ---- fused "project" FeedForward: z -> (h0 | c0) ------------------------
    # Linear(D,2D) -> ReLU -> Dropout -> Linear(2D,2D) -> ELU(0.1) -> Dropout
    # TODO(synk): dropout is treated as identity (eval-mode semantics).
    h1 = jnp.maximum(dot(z_ref[...], pw1_ref[...]) + pb1_ref[...], 0.0)
    h = _elu01(dot(h1, pw2h_ref[...]) + pb2h_ref[...])      # h0  (B, D)
    c = _elu01(dot(h1, pw2c_ref[...]) + pb2c_ref[...])      # c0  (B, D)

    # ---- loop-invariant weight loads + pre-broadcast biases ------------------
    w_cat = wcat_ref[...]                                    # (V+D, 4D) fused LSTM W
    b_cat = jnp.broadcast_to(bcat_ref[...], (B, 4 * D))      # fused gate bias
    ow1 = ow1_ref[...]
    ob1 = jnp.broadcast_to(ob1_ref[...], (B, ow1.shape[1]))
    ow2 = ow2_ref[...]
    ob2 = jnp.broadcast_to(ob2_ref[...], (B, VP))            # padded cols hold -1e30

    iota_vp = lax.broadcasted_iota(jnp.int32, (B, VP), 1)
    iota_v = lax.broadcasted_iota(jnp.int32, (B, V), 1)

    # start-token "embedding" is just the start-token one-hot fed to the fused
    # gate matmul (embedding table is folded into w_cat).
    onehot = (iota_v == start_token).astype(f32)             # (B, V)

    samp_list, logp_list, ent_list = [], [], []

    # ---- autoregressive loop, statically unrolled (max_len is small) --------
    # For very long max_len this would switch to lax.fori_loop(unroll=2-4) with
    # the samp/next-gate matmul issued before the entropy/logp tail.
    for t in range(max_len):
        # LSTMCell (PyTorch gate order i, f, g, o) as ONE matmul:
        #   [one_hot(samp) | h] @ [[emb_tbl @ W_ih_cat], [W_hh_cat]] + b_cat
        x_cat = jnp.concatenate([onehot, h], axis=-1)        # (B, V+D)
        gates = dot(x_cat, w_cat) + b_cat                    # (B, 4D) = one lane width
        i_g = jax.nn.sigmoid(gates[:, 0 * D:1 * D])
        f_g = jax.nn.sigmoid(gates[:, 1 * D:2 * D])
        g_g = jnp.tanh(gates[:, 2 * D:3 * D])
        o_g = jax.nn.sigmoid(gates[:, 3 * D:4 * D])
        c = f_g * c + i_g * g_g
        h = o_g * jnp.tanh(c)

        # output head: ReLU -> Dropout -> Linear -> ReLU -> Dropout -> Linear
        # TODO(synk): dropout is treated as identity (eval-mode semantics).
        y = jnp.maximum(dot(jnp.maximum(h, 0.0), ow1) + ob1, 0.0)
        logits = dot(y, ow2) + ob2                # (B, VP); padded cols biased to -1e30

        # Categorical sampling via Gumbel-max (noise precomputed on host, padded
        # cols can never win because of the -1e30 bias).
        gscore = logits + gum_ref[t]
        gmax = jnp.max(gscore, axis=-1, keepdims=True)
        samp = jnp.min(jnp.where(gscore >= gmax, iota_vp, VP),
                       axis=-1, keepdims=True)     # (B, 1) int32, always < V-1

        # trimmed log-softmax tail (no full logprob/probs materialization; all f32).
        m = jnp.max(logits, axis=-1, keepdims=True)
        shifted = logits - m
        exp_sh = jnp.exp(shifted)                  # padded cols underflow to exactly 0
        sum_exp = jnp.sum(exp_sh, axis=-1, keepdims=True)
        lse = jnp.log(sum_exp)
        inv = pl.reciprocal(sum_exp, approx=True)
        entropy = lse - inv * jnp.sum(exp_sh * shifted, axis=-1, keepdims=True)
        shift_sel = jnp.sum(jnp.where(iota_vp == samp, shifted, 0.0),
                            axis=-1, keepdims=True)
        logp_sel = shift_sel - lse

        samp_list.append(samp)
        logp_list.append(logp_sel)
        ent_list.append(entropy)

        # next-step one-hot feeds the fused gate matmul directly (no emb dot).
        onehot = (iota_v == samp).astype(f32)

    # single concatenated writeback per output instead of max_len masked stores
    samp_ref[...] = jnp.concatenate(samp_list, axis=-1)      # (B, max_len) int32
    logp_ref[...] = jnp.concatenate(logp_list, axis=-1)      # (B, max_len) f32
    ent_ref[...] = jnp.concatenate(ent_list, axis=-1)        # (B, max_len) f32


# ---------------------------------------------------------------------------
# Wrappers
# ---------------------------------------------------------------------------
def init_params(key, D, V):
    ks = jax.random.split(key, 12)
    s = 0.1

    def n(k, shape):
        return s * jax.random.normal(k, shape, jnp.float32)

    return dict(
        emb=n(ks[0], (V, D)),
        p_w1=n(ks[1], (D, 2 * D)), p_b1=n(ks[2], (1, 2 * D)),
        p_w2=n(ks[3], (2 * D, 2 * D)), p_b2=n(ks[4], (1, 2 * D)),
        w_ih=n(ks[5], (4, D, D)), w_hh=n(ks[6], (4, D, D)),   # per-gate (i, f, g, o)
        b_lstm=n(ks[7], (4, 1, D)),
        o_w1=n(ks[8], (D, 2 * D)), o_b1=n(ks[9], (1, 2 * D)),
        o_w2=n(ks[10], (2 * D, V - 1)), o_b2=n(ks[11], (1, V - 1)),
    )


def generate(params, z, gumbel, *, max_len, start_token):
    B, D = z.shape
    V = params['emb'].shape[0]
    Vm1 = V - 1
    VP = ((Vm1 + 127) // 128) * 128        # pad logits to full 128-lane vregs

    # split the project's second Linear so h0/c0 never need a lane sub-slice
    p_w2h, p_w2c = params['p_w2'][:, :D], params['p_w2'][:, D:]
    p_b2h, p_b2c = params['p_b2'][:, :D], params['p_b2'][:, D:]

    # fused LSTM weights (i|f|g|o along the output dim) with the embedding table
    # folded into the input-weight half, so the per-step recurrent matmul is
    # [one_hot(samp) | h] @ w_cat.
    w_ih_cat = jnp.concatenate([params['w_ih'][k] for k in range(4)], axis=1)  # (D, 4D)
    w_hh_cat = jnp.concatenate([params['w_hh'][k] for k in range(4)], axis=1)  # (D, 4D)
    b_cat = jnp.concatenate([params['b_lstm'][k] for k in range(4)], axis=1)   # (1, 4D)
    w_cat = jnp.concatenate([params['emb'] @ w_ih_cat, w_hh_cat], axis=0)      # (V+D, 4D)

    # pad output head + gumbel to VP lanes; -1e30 bias on padded columns means
    # they can never win Gumbel-max and contribute exactly 0 to softmax / entropy.
    o_w2 = jnp.zeros((2 * D, VP), jnp.float32).at[:, :Vm1].set(params['o_w2'])
    o_b2 = jnp.full((1, VP), -1e30, jnp.float32).at[:, :Vm1].set(params['o_b2'])
    gum = jnp.zeros((max_len, B, VP), jnp.float32).at[:, :, :Vm1].set(gumbel)
    # TODO(synk): for large max_len*B*V, generate Gumbel noise in-kernel with
    # pltpu.prng_seed/prng_random_bits instead of DMA-ing this padded buffer.

    def full(shape):
        return pl.BlockSpec(shape, lambda *_: (0,) * len(shape))

    kernel = functools.partial(generator_kernel, start_token=start_token,
                               max_len=max_len)

    samples, logp, ent = pl.pallas_call(
        kernel,
        grid=(1,),
        in_specs=[
            full((B, D)),                                   # z
            full((D, 2 * D)), full((1, 2 * D)),             # project Linear 1
            full((2 * D, D)), full((1, D)),                 # project Linear 2 (h half)
            full((2 * D, D)), full((1, D)),                 # project Linear 2 (c half)
            full((V + D, 4 * D)), full((1, 4 * D)),         # fused LSTM W / bias
            full((D, 2 * D)), full((1, 2 * D)),             # output Linear 1
            full((2 * D, VP)), full((1, VP)),               # output Linear 2 (padded)
            full((max_len, B, VP)),                         # gumbel noise (one block)
        ],
        out_specs=[full((B, max_len))] * 3,
        out_shape=[jax.ShapeDtypeStruct((B, max_len), jnp.int32),
                   jax.ShapeDtypeStruct((B, max_len), jnp.float32),
                   jax.ShapeDtypeStruct((B, max_len), jnp.float32)],
        compiler_params=pltpu.CompilerParams(dimension_semantics=("arbitrary",)),
    )(z,
      params['p_w1'], params['p_b1'], p_w2h, p_b2h, p_w2c, p_b2c,
      w_cat, b_cat,
      params['o_w1'], params['o_b1'], o_w2, o_b2, gum)
    return samples, logp, ent


def postprocess(samples, logp, ent, *, end_token, max_len):
    """Replicates the ragged post-processing of the torch forward (host-side glue)."""
    x = np.asarray(samples)            # (B, max_len)
    lp = np.asarray(logp)
    en = np.asarray(ent)
    B = x.shape[0]

    end_pos = np.argmax((x == end_token).astype(np.float32), axis=1)
    seq_lengths = end_pos + 1
    seq_lengths = np.where(seq_lengths == 1, max_len, seq_lengths)

    Lmax = int(seq_lengths.max())
    x_pad = np.full((B, Lmax), -1, dtype=np.int64)
    logp_list, ent_list = [], []
    for b in range(B):
        L = int(seq_lengths[b])
        x_pad[b, :L] = x[b, :L]
        logp_list.append(lp[b, :L])
        ent_list.append(float(en[b, :L].mean()))
    x_pad = x_pad + 1
    return {'x': x_pad, 'log_probabilities': logp_list, 'entropies': ent_list}


if __name__ == "__main__":
    latent_dim = 32
    vocab_size = 16
    start_token = vocab_size - 1   # only reachable via the start symbol
    end_token = 0
    batch = 4
    max_len = 8

    key = jax.random.PRNGKey(0)
    kp, kz, ku = jax.random.split(key, 3)

    params = init_params(kp, latent_dim, vocab_size)
    z = jax.random.normal(kz, (batch, latent_dim), jnp.float32)

    # Gumbel noise for Categorical sampling (distributionally equivalent to dist.sample()).
    u = jax.random.uniform(ku, (max_len, batch, vocab_size - 1), jnp.float32,
                           minval=1e-6, maxval=1.0 - 1e-6)
    gumbel = -jnp.log(-jnp.log(u))

    samples, logp, ent = generate(params, z, gumbel,
                                  max_len=max_len, start_token=start_token)
    jax.block_until_ready((samples, logp, ent))

    samples_np, logp_np, ent_np = map(np.asarray, (samples, logp, ent))
    assert np.all(samples_np >= 0) and np.all(samples_np < vocab_size - 1)
    assert np.all(np.isfinite(logp_np)) and np.all(np.isfinite(ent_np))

    out = postprocess(samples_np, logp_np, ent_np,
                      end_token=end_token, max_len=max_len)
    assert out['x'].shape[0] == batch
    assert len(out['log_probabilities']) == batch
    assert len(out['entropies']) == batch

    print("KERNEL_OK")
</pallas_src>

<mosaic_0001>
module attributes {stable_mosaic.version = 11 : i64} {
  func.func @generator_kernel(%arg0: i32, %arg1: memref<4x32xf32, #tpu.memory_space<vmem>>, %arg2: memref<32x64xf32, #tpu.memory_space<vmem>>, %arg3: memref<1x64xf32, #tpu.memory_space<vmem>>, %arg4: memref<64x32xf32, #tpu.memory_space<vmem>>, %arg5: memref<1x32xf32, #tpu.memory_space<vmem>>, %arg6: memref<64x32xf32, #tpu.memory_space<vmem>>, %arg7: memref<1x32xf32, #tpu.memory_space<vmem>>, %arg8: memref<48x128xf32, #tpu.memory_space<vmem>>, %arg9: memref<1x128xf32, #tpu.memory_space<vmem>>, %arg10: memref<32x64xf32, #tpu.memory_space<vmem>>, %arg11: memref<1x64xf32, #tpu.memory_space<vmem>>, %arg12: memref<64x128xf32, #tpu.memory_space<vmem>>, %arg13: memref<1x128xf32, #tpu.memory_space<vmem>>, %arg14: memref<8x4x128xf32, #tpu.memory_space<vmem>>, %arg15: memref<4x8xi32, #tpu.memory_space<vmem>>, %arg16: memref<4x8xf32, #tpu.memory_space<vmem>>, %arg17: memref<4x8xf32, #tpu.memory_space<vmem>>) attributes {dimension_semantics = [#tpu.dimension_semantics<arbitrary>], iteration_bounds = array<i64: 1>, scalar_prefetch = 0 : i64, scratch_operands = 0 : i64, tpu.core_type = #tpu.core_type<tc>, window_params = [{pipeline_mode = #tpu.pipeline_mode<synchronous>, transform_indices = @transform_0, window_bounds = array<i64: 4, 32>}, {pipeline_mode = #tpu.pipeline_mode<synchronous>, transform_indices = @transform_1, window_bounds = array<i64: 32, 64>}, {pipeline_mode = #tpu.pipeline_mode<synchronous>, transform_indices = @transform_2, window_bounds = array<i64: 1, 64>}, {pipeline_mode = #tpu.pipeline_mode<synchronous>, transform_indices = @transform_3, window_bounds = array<i64: 64, 32>}, {pipeline_mode = #tpu.pipeline_mode<synchronous>, transform_indices = @transform_4, window_bounds = array<i64: 1, 32>}, {pipeline_mode = #tpu.pipeline_mode<synchronous>, transform_indices = @transform_5, window_bounds = array<i64: 64, 32>}, {pipeline_mode = #tpu.pipeline_mode<synchronous>, transform_indices = @transform_6, window_bounds = array<i64: 1, 32>}, {pipeline_mode = #tpu.pipeline_mode<synchronous>, transform_indices = @transform_7, window_bounds = array<i64: 48, 128>}, {pipeline_mode = #tpu.pipeline_mode<synchronous>, transform_indices = @transform_8, window_bounds = array<i64: 1, 128>}, {pipeline_mode = #tpu.pipeline_mode<synchronous>, transform_indices = @transform_9, window_bounds = array<i64: 32, 64>}, {pipeline_mode = #tpu.pipeline_mode<synchronous>, transform_indices = @transform_10, window_bounds = array<i64: 1, 64>}, {pipeline_mode = #tpu.pipeline_mode<synchronous>, transform_indices = @transform_11, window_bounds = array<i64: 64, 128>}, {pipeline_mode = #tpu.pipeline_mode<synchronous>, transform_indices = @transform_12, window_bounds = array<i64: 1, 128>}, {pipeline_mode = #tpu.pipeline_mode<synchronous>, transform_indices = @transform_13, window_bounds = array<i64: 8, 4, 128>}, {pipeline_mode = #tpu.pipeline_mode<synchronous>, transform_indices = @transform_14, window_bounds = array<i64: 4, 8>}, {pipeline_mode = #tpu.pipeline_mode<synchronous>, transform_indices = @transform_15, window_bounds = array<i64: 4, 8>}, {pipeline_mode = #tpu.pipeline_mode<synchronous>, transform_indices = @transform_16, window_bounds = array<i64: 4, 8>}]} {
    %c0 = arith.constant 0 : index
    %c0_0 = arith.constant 0 : index
    %0 = vector.load %arg1[%c0, %c0_0] : memref<4x32xf32, #tpu.memory_space<vmem>>, vector<4x32xf32>
    %c0_1 = arith.constant 0 : index
    %c0_2 = arith.constant 0 : index
    %1 = vector.load %arg2[%c0_1, %c0_2] : memref<32x64xf32, #tpu.memory_space<vmem>>, vector<32x64xf32>
    %cst = arith.constant dense<0.000000e+00> : vector<4x64xf32>
    %2 = tpu.matmul %0, %1, %cst {dimension_numbers = #tpu.dot_dimension_numbers<[1], [0], [0], [1], [0, 0, 1, 1], [], []>} : vector<4x32xf32>, vector<32x64xf32>, vector<4x64xf32> -> vector<4x64xf32>
    %c0_3 = arith.constant 0 : index
    %c0_4 = arith.constant 0 : index
    %3 = vector.load %arg3[%c0_3, %c0_4] : memref<1x64xf32, #tpu.memory_space<vmem>>, vector<1x64xf32>
    %4 = vector.broadcast %3 : vector<1x64xf32> to vector<4x64xf32>
    %5 = arith.addf %2, %4 : vector<4x64xf32>
    %cst_5 = arith.constant 0.000000e+00 : f32
    %6 = vector.broadcast %cst_5 : f32 to vector<4x64xf32>
    %7 = arith.maximumf %5, %6 : vector<4x64xf32>
    %c0_6 = arith.constant 0 : index
    %c0_7 = arith.constant 0 : index
    %8 = vector.load %arg4[%c0_6, %c0_7] : memref<64x32xf32, #tpu.memory_space<vmem>>, vector<64x32xf32>
    %cst_8 = arith.constant dense<0.000000e+00> : vector<4x32xf32>
    %9 = tpu.matmul %7, %8, %cst_8 {dimension_numbers = #tpu.dot_dimension_numbers<[1], [0], [0], [1], [0, 0, 1, 1], [], []>} : vector<4x64xf32>, vector<64x32xf32>, vector<4x32xf32> -> vector<4x32xf32>
    %c0_9 = arith.constant 0 : index
    %c0_10 = arith.constant 0 : index
    %10 = vector.load %arg5[%c0_9, %c0_10] : memref<1x32xf32, #tpu.memory_space<vmem>>, vector<1x32xf32>
    %11 = vector.broadcast %10 : vector<1x32xf32> to vector<4x32xf32>
    %12 = arith.addf %9, %11 : vector<4x32xf32>
    %cst_11 = arith.constant 0.000000e+00 : f32
    %13 = vector.broadcast %cst_11 : f32 to vector<4x32xf32>
    %14 = arith.cmpf ogt, %12, %13 : vector<4x32xf32>
    %cst_12 = arith.constant 0.000000e+00 : f32
    %15 = vector.broadcast %cst_12 : f32 to vector<4x32xf32>
    %16 = arith.minimumf %12, %15 : vector<4x32xf32>
    %17 = math.exp %16 : vector<4x32xf32>
    %cst_13 = arith.constant 1.000000e+00 : f32
    %18 = vector.broadcast %cst_13 : f32 to vector<4x32xf32>
    %19 = arith.subf %17, %18 : vector<4x32xf32>
    %cst_14 = arith.constant 1.000000e-01 : f32
    %20 = vector.broadcast %cst_14 : f32 to vector<4x32xf32>
    %21 = arith.mulf %20, %19 : vector<4x32xf32>
    %22 = arith.select %14, %12, %21 : vector<4x32xi1>, vector<4x32xf32>
    %c0_15 = arith.constant 0 : index
    %c0_16 = arith.constant 0 : index
    %23 = vector.load %arg6[%c0_15, %c0_16] : memref<64x32xf32, #tpu.memory_space<vmem>>, vector<64x32xf32>
    %cst_17 = arith.constant dense<0.000000e+00> : vector<4x32xf32>
    %24 = tpu.matmul %7, %23, %cst_17 {dimension_numbers = #tpu.dot_dimension_numbers<[1], [0], [0], [1], [0, 0, 1, 1], [], []>} : vector<4x64xf32>, vector<64x32xf32>, vector<4x32xf32> -> vector<4x32xf32>
    %c0_18 = arith.constant 0 : index
    %c0_19 = arith.constant 0 : index
    %25 = vector.load %arg7[%c0_18, %c0_19] : memref<1x32xf32, #tpu.memory_space<vmem>>, vector<1x32xf32>
    %26 = vector.broadcast %25 : vector<1x32xf32> to vector<4x32xf32>
    %27 = arith.addf %24, %26 : vector<4x32xf32>
    %cst_20 = arith.constant 0.000000e+00 : f32
    %28 = vector.broadcast %cst_20 : f32 to vector<4x32xf32>
    %29 = arith.cmpf ogt, %27, %28 : vector<4x32xf32>
    %cst_21 = arith.constant 0.000000e+00 : f32
    %30 = vector.broadcast %cst_21 : f32 to vector<4x32xf32>
    %31 = arith.minimumf %27, %30 : vector<4x32xf32>
    %32 = math.exp %31 : vector<4x32xf32>
    %cst_22 = arith.constant 1.000000e+00 : f32
    %33 = vector.broadcast %cst_22 : f32 to vector<4x32xf32>
    %34 = arith.subf %32, %33 : vector<4x32xf32>
    %cst_23 = arith.constant 1.000000e-01 : f32
    %35 = vector.broadcast %cst_23 : f32 to vector<4x32xf32>
    %36 = arith.mulf %35, %34 : vector<4x32xf32>
    %37 = arith.select %29, %27, %36 : vector<4x32xi1>, vector<4x32xf32>
    %c0_24 = arith.constant 0 : index
    %c0_25 = arith.constant 0 : index
    %38 = vector.load %arg8[%c0_24, %c0_25] : memref<48x128xf32, #tpu.memory_space<vmem>>, vector<48x128xf32>
    %c0_26 = arith.constant 0 : index
    %c0_27 = arith.constant 0 : index
    %39 = vector.load %arg9[%c0_26, %c0_27] : memref<1x128xf32, #tpu.memory_space<vmem>>, vector<1x128xf32>
    %40 = vector.shape_cast %39 : vector<1x128xf32> to vector<1x128xf32>
    %41 = vector.broadcast %40 : vector<1x128xf32> to vector<4x128xf32>
    %c0_28 = arith.constant 0 : index
    %c0_29 = arith.constant 0 : index
    %42 = vector.load %arg10[%c0_28, %c0_29] : memref<32x64xf32, #tpu.memory_space<vmem>>, vector<32x64xf32>
    %c0_30 = arith.constant 0 : index
    %c0_31 = arith.constant 0 : index
    %43 = vector.load %arg11[%c0_30, %c0_31] : memref<1x64xf32, #tpu.memory_space<vmem>>, vector<1x64xf32>
    %44 = vector.shape_cast %43 : vector<1x64xf32> to vector<1x64xf32>
    %45 = vector.broadcast %44 : vector<1x64xf32> to vector<4x64xf32>
    %c0_32 = arith.constant 0 : index
    %c0_33 = arith.constant 0 : index
    %46 = vector.load %arg12[%c0_32, %c0_33] : memref<64x128xf32, #tpu.memory_space<vmem>>, vector<64x128xf32>
    %c0_34 = arith.constant 0 : index
    %c0_35 = arith.constant 0 : index
    %47 = vector.load %arg13[%c0_34, %c0_35] : memref<1x128xf32, #tpu.memory_space<vmem>>, vector<1x128xf32>
    %48 = vector.shape_cast %47 : vector<1x128xf32> to vector<1x128xf32>
    %49 = vector.broadcast %48 : vector<1x128xf32> to vector<4x128xf32>
    %50 = tpu.iota {dimensions = array<i32: 1>} : vector<4x128xi32>
    %51 = tpu.iota {dimensions = array<i32: 1>} : vector<4x16xi32>
    %c15_i32 = arith.constant 15 : i32
    %52 = vector.broadcast %c15_i32 : i32 to vector<4x16xi32>
    %53 = arith.cmpi eq, %51, %52 : vector<4x16xi32>
    %54 = arith.extui %53 : vector<4x16xi1> to vector<4x16xi32>
    %55 = arith.sitofp %54 : vector<4x16xi32> to vector<4x16xf32>
    %56 = tpu.concatenate %55, %22 in 1 : vector<4x16xf32>, vector<4x32xf32> -> vector<4x48xf32>
    %cst_36 = arith.constant dense<0.000000e+00> : vector<4x128xf32>
    %57 = tpu.matmul %56, %38, %cst_36 {dimension_numbers = #tpu.dot_dimension_numbers<[1], [0], [0], [1], [0, 0, 1, 1], [], []>} : vector<4x48xf32>, vector<48x128xf32>, vector<4x128xf32> -> vector<4x128xf32>
    %58 = arith.addf %57, %41 : vector<4x128xf32>
    %59 = vector.extract_strided_slice %58 {offsets = [0, 0], sizes = [4, 32], strides = [1, 1]} : vector<4x128xf32> to vector<4x32xf32>
    %60 = arith.negf %59 : vector<4x32xf32>
    %61 = math.exp %60 : vector<4x32xf32>
    %cst_37 = arith.constant 1.000000e+00 : f32
    %62 = vector.broadcast %cst_37 : f32 to vector<4x32xf32>
    %63 = arith.addf %62, %61 : vector<4x32xf32>
    %64 = arith.divf %62, %63 : vector<4x32xf32>
    %65 = vector.extract_strided_slice %58 {offsets = [0, 32], sizes = [4, 32], strides = [1, 1]} : vector<4x128xf32> to vector<4x32xf32>
    %66 = arith.negf %65 : vector<4x32xf32>
    %67 = math.exp %66 : vector<4x32xf32>
    %cst_38 = arith.constant 1.000000e+00 : f32
    %68 = vector.broadcast %cst_38 : f32 to vector<4x32xf32>
    %69 = arith.addf %68, %67 : vector<4x32xf32>
    %70 = arith.divf %68, %69 : vector<4x32xf32>
    %71 = vector.extract_strided_slice %58 {offsets = [0, 64], sizes = [4, 32], strides = [1, 1]} : vector<4x128xf32> to vector<4x32xf32>
    %72 = math.tanh %71 : vector<4x32xf32>
    %73 = vector.extract_strided_slice %58 {offsets = [0, 96], sizes = [4, 32], strides = [1, 1]} : vector<4x128xf32> to vector<4x32xf32>
    %74 = arith.negf %73 : vector<4x32xf32>
    %75 = math.exp %74 : vector<4x32xf32>
    %cst_39 = arith.constant 1.000000e+00 : f32
    %76 = vector.broadcast %cst_39 : f32 to vector<4x32xf32>
    %77 = arith.addf %76, %75 : vector<4x32xf32>
    %78 = arith.divf %76, %77 : vector<4x32xf32>
    %79 = arith.mulf %70, %37 : vector<4x32xf32>
    %80 = arith.mulf %64, %72 : vector<4x32xf32>
    %81 = arith.addf %79, %80 : vector<4x32xf32>
    %82 = math.tanh %81 : vector<4x32xf32>
    %83 = arith.mulf %78, %82 : vector<4x32xf32>
    %cst_40 = arith.constant 0.000000e+00 : f32
    %84 = vector.broadcast %cst_40 : f32 to vector<4x32xf32>
    %85 = arith.maximumf %83, %84 : vector<4x32xf32>
    %cst_41 = arith.constant dense<0.000000e+00> : vector<4x64xf32>
    %86 = tpu.matmul %85, %42, %cst_41 {dimension_numbers = #tpu.dot_dimension_numbers<[1], [0], [0], [1], [0, 0, 1, 1], [], []>} : vector<4x32xf32>, vector<32x64xf32>, vector<4x64xf32> -> vector<4x64xf32>
    %87 = arith.addf %86, %45 : vector<4x64xf32>
    %cst_42 = arith.constant 0.000000e+00 : f32
    %88 = vector.broadcast %cst_42 : f32 to vector<4x64xf32>
    %89 = arith.maximumf %87, %88 : vector<4x64xf32>
    %cst_43 = arith.constant dense<0.000000e+00> : vector<4x128xf32>
    %90 = tpu.matmul %89, %46, %cst_43 {dimension_numbers = #tpu.dot_dimension_numbers<[1], [0], [0], [1], [0, 0, 1, 1], [], []>} : vector<4x64xf32>, vector<64x128xf32>, vector<4x128xf32> -> vector<4x128xf32>
    %91 = arith.addf %90, %49 : vector<4x128xf32>
    %c0_44 = arith.constant 0 : index
    %c0_45 = arith.constant 0 : index
    %c0_46 = arith.constant 0 : index
    %92 = vector.load %arg14[%c0_44, %c0_45, %c0_46] : memref<8x4x128xf32, #tpu.memory_space<vmem>>, vector<1x4x128xf32>
    %93 = vector.shape_cast %92 : vector<1x4x128xf32> to vector<4x128xf32>
    %94 = arith.addf %91, %93 : vector<4x128xf32>
    %cst_47 = arith.constant dense<0xFF800000> : vector<4xf32>
    %95 = vector.multi_reduction <maximumf>, %94, %cst_47 [1] : vector<4x128xf32> to vector<4xf32>
    %96 = vector.shape_cast %95 : vector<4xf32> to vector<4x1xf32>
    %97 = vector.broadcast %96 : vector<4x1xf32> to vector<4x128xf32>
    %98 = arith.cmpf oge, %94, %97 : vector<4x128xf32>
    %c128_i32 = arith.constant 128 : i32
    %99 = vector.broadcast %c128_i32 : i32 to vector<4x128xi32>
    %100 = arith.select %98, %50, %99 : vector<4x128xi1>, vector<4x128xi32>
    %cst_48 = arith.constant dense<2147483647> : vector<4xi32>
    %101 = vector.multi_reduction <minsi>, %100, %cst_48 [1] : vector<4x128xi32> to vector<4xi32>
    %102 = vector.shape_cast %101 : vector<4xi32> to vector<4x1xi32>
    %cst_49 = arith.constant dense<0xFF800000> : vector<4xf32>
    %103 = vector.multi_reduction <maximumf>, %91, %cst_49 [1] : vector<4x128xf32> to vector<4xf32>
    %104 = vector.shape_cast %103 : vector<4xf32> to vector<4x1xf32>
    %105 = vector.broadcast %104 : vector<4x1xf32> to vector<4x128xf32>
    %106 = arith.subf %91, %105 : vector<4x128xf32>
    %107 = math.exp %106 : vector<4x128xf32>
    %cst_50 = arith.constant dense<0.000000e+00> : vector<4xf32>
    %108 = vector.multi_reduction <add>, %107, %cst_50 [1] : vector<4x128xf32> to vector<4xf32>
    %109 = vector.shape_cast %108 : vector<4xf32> to vector<4x1xf32>
    %110 = math.log %109 : vector<4x1xf32>
    %111 = tpu.reciprocal %109 {approx = true} : vector<4x1xf32> -> vector<4x1xf32>
    %112 = arith.mulf %107, %106 : vector<4x128xf32>
    %cst_51 = arith.constant dense<0.000000e+00> : vector<4xf32>
    %113 = vector.multi_reduction <add>, %112, %cst_51 [1] : vector<4x128xf32> to vector<4xf32>
    %114 = vector.shape_cast %113 : vector<4xf32> to vector<4x1xf32>
    %115 = arith.mulf %111, %114 : vector<4x1xf32>
    %116 = arith.subf %110, %115 : vector<4x1xf32>
    %117 = vector.broadcast %102 : vector<4x1xi32> to vector<4x128xi32>
    %118 = arith.cmpi eq, %50, %117 : vector<4x128xi32>
    %cst_52 = arith.constant 0.000000e+00 : f32
    %119 = vector.broadcast %cst_52 : f32 to vector<4x128xf32>
    %120 = arith.select %118, %106, %119 : vector<4x128xi1>, vector<4x128xf32>
    %cst_53 = arith.constant dense<0.000000e+00> : vector<4xf32>
    %121 = vector.multi_reduction <add>, %120, %cst_53 [1] : vector<4x128xf32> to vector<4xf32>
    %122 = vector.shape_cast %121 : vector<4xf32> to vector<4x1xf32>
    %123 = arith.subf %122, %110 : vector<4x1xf32>
    %124 = vector.broadcast %102 : vector<4x1xi32> to vector<4x16xi32>
    %125 = arith.cmpi eq, %51, %124 : vector<4x16xi32>
    %126 = arith.extui %125 : vector<4x16xi1> to vector<4x16xi32>
    %127 = arith.sitofp %126 : vector<4x16xi32> to vector<4x16xf32>
    %128 = tpu.concatenate %127, %83 in 1 : vector<4x16xf32>, vector<4x32xf32> -> vector<4x48xf32>
    %cst_54 = arith.constant dense<0.000000e+00> : vector<4x128xf32>
    %129 = tpu.matmul %128, %38, %cst_54 {dimension_numbers = #tpu.dot_dimension_numbers<[1], [0], [0], [1], [0, 0, 1, 1], [], []>} : vector<4x48xf32>, vector<48x128xf32>, vector<4x128xf32> -> vector<4x128xf32>
    %130 = arith.addf %129, %41 : vector<4x128xf32>
    %131 = vector.extract_strided_slice %130 {offsets = [0, 0], sizes = [4, 32], strides = [1, 1]} : vector<4x128xf32> to vector<4x32xf32>
    %132 = arith.negf %131 : vector<4x32xf32>
    %133 = math.exp %132 : vector<4x32xf32>
    %cst_55 = arith.constant 1.000000e+00 : f32
    %134 = vector.broadcast %cst_55 : f32 to vector<4x32xf32>
    %135 = arith.addf %134, %133 : vector<4x32xf32>
    %136 = arith.divf %134, %135 : vector<4x32xf32>
    %137 = vector.extract_strided_slice %130 {offsets = [0, 32], sizes = [4, 32], strides = [1, 1]} : vector<4x128xf32> to vector<4x32xf32>
    %138 = arith.negf %137 : vector<4x32xf32>
    %139 = math.exp %138 : vector<4x32xf32>
    %cst_56 = arith.constant 1.000000e+00 : f32
    %140 = vector.broadcast %cst_56 : f32 to vector<4x32xf32>
    %141 = arith.addf %140, %139 : vector<4x32xf32>
    %142 = arith.divf %140, %141 : vector<4x32xf32>
    %143 = vector.extract_strided_slice %130 {offsets = [0, 64], sizes = [4, 32], strides = [1, 1]} : vector<4x128xf32> to vector<4x32xf32>
    %144 = math.tanh %143 : vector<4x32xf32>
    %145 = vector.extract_strided_slice %130 {offsets = [0, 96], sizes = [4, 32], strides = [1, 1]} : vector<4x128xf32> to vector<4x32xf32>
    %146 = arith.negf %145 : vector<4x32xf32>
    %147 = math.exp %146 : vector<4x32xf32>
    %cst_57 = arith.constant 1.000000e+00 : f32
    %148 = vector.broadcast %cst_57 : f32 to vector<4x32xf32>
    %149 = arith.addf %148, %147 : vector<4x32xf32>
    %150 = arith.divf %148, %149 : vector<4x32xf32>
    %151 = arith.mulf %142, %81 : vector<4x32xf32>
    %152 = arith.mulf %136, %144 : vector<4x32xf32>
    %153 = arith.addf %151, %152 : vector<4x32xf32>
    %154 = math.tanh %153 : vector<4x32xf32>
    %155 = arith.mulf %150, %154 : vector<4x32xf32>
    %cst_58 = arith.constant 0.000000e+00 : f32
    %156 = vector.broadcast %cst_58 : f32 to vector<4x32xf32>
    %157 = arith.maximumf %155, %156 : vector<4x32xf32>
    %cst_59 = arith.constant dense<0.000000e+00> : vector<4x64xf32>
    %158 = tpu.matmul %157, %42, %cst_59 {dimension_numbers = #tpu.dot_dimension_numbers<[1], [0], [0], [1], [0, 0, 1, 1], [], []>} : vector<4x32xf32>, vector<32x64xf32>, vector<4x64xf32> -> vector<4x64xf32>
    %159 = arith.addf %158, %45 : vector<4x64xf32>
    %cst_60 = arith.constant 0.000000e+00 : f32
    %160 = vector.broadcast %cst_60 : f32 to vector<4x64xf32>
    %161 = arith.maximumf %159, %160 : vector<4x64xf32>
    %cst_61 = arith.constant dense<0.000000e+00> : vector<4x128xf32>
    %162 = tpu.matmul %161, %46, %cst_61 {dimension_numbers = #tpu.dot_dimension_numbers<[1], [0], [0], [1], [0, 0, 1, 1], [], []>} : vector<4x64xf32>, vector<64x128xf32>, vector<4x128xf32> -> vector<4x128xf32>
    %163 = arith.addf %162, %49 : vector<4x128xf32>
    %c1 = arith.constant 1 : index
    %c0_62 = arith.constant 0 : index
    %c0_63 = arith.constant 0 : index
    %164 = vector.load %arg14[%c1, %c0_62, %c0_63] : memref<8x4x128xf32, #tpu.memory_space<vmem>>, vector<1x4x128xf32>
    %165 = vector.shape_cast %164 : vector<1x4x128xf32> to vector<4x128xf32>
    %166 = arith.addf %163, %165 : vector<4x128xf32>
    %cst_64 = arith.constant dense<0xFF800000> : vector<4xf32>
    %167 = vector.multi_reduction <maximumf>, %166, %cst_64 [1] : vector<4x128xf32> to vector<4xf32>
    %168 = vector.shape_cast %167 : vector<4xf32> to vector<4x1xf32>
    %169 = vector.broadcast %168 : vector<4x1xf32> to vector<4x128xf32>
    %170 = arith.cmpf oge, %166, %169 : vector<4x128xf32>
    %c128_i32_65 = arith.constant 128 : i32
    %171 = vector.broadcast %c128_i32_65 : i32 to vector<4x128xi32>
    %172 = arith.select %170, %50, %171 : vector<4x128xi1>, vector<4x128xi32>
    %cst_66 = arith.constant dense<2147483647> : vector<4xi32>
    %173 = vector.multi_reduction <minsi>, %172, %cst_66 [1] : vector<4x128xi32> to vector<4xi32>
    %174 = vector.shape_cast %173 : vector<4xi32> to vector<4x1xi32>
    %cst_67 = arith.constant dense<0xFF800000> : vector<4xf32>
    %175 = vector.multi_reduction <maximumf>, %163, %cst_67 [1] : vector<4x128xf32> to vector<4xf32>
    %176 = vector.shape_cast %175 : vector<4xf32> to vector<4x1xf32>
    %177 = vector.broadcast %176 : vector<4x1xf32> to vector<4x128xf32>
    %178 = arith.subf %163, %177 : vector<4x128xf32>
    %179 = math.exp %178 : vector<4x128xf32>
    %cst_68 = arith.constant dense<0.000000e+00> : vector<4xf32>
    %180 = vector.multi_reduction <add>, %179, %cst_68 [1] : vector<4x128xf32> to vector<4xf32>
    %181 = vector.shape_cast %180 : vector<4xf32> to vector<4x1xf32>
    %182 = math.log %181 : vector<4x1xf32>
    %183 = tpu.reciprocal %181 {approx = true} : vector<4x1xf32> -> vector<4x1xf32>
    %184 = arith.mulf %179, %178 : vector<4x128xf32>
    %cst_69 = arith.constant dense<0.000000e+00> : vector<4xf32>
    %185 = vector.multi_reduction <add>, %184, %cst_69 [1] : vector<4x128xf32> to vector<4xf32>
    %186 = vector.shape_cast %185 : vector<4xf32> to vector<4x1xf32>
    %187 = arith.mulf %183, %186 : vector<4x1xf32>
    %188 = arith.subf %182, %187 : vector<4x1xf32>
    %189 = vector.broadcast %174 : vector<4x1xi32> to vector<4x128xi32>
    %190 = arith.cmpi eq, %50, %189 : vector<4x128xi32>
    %cst_70 = arith.constant 0.000000e+00 : f32
    %191 = vector.broadcast %cst_70 : f32 to vector<4x128xf32>
    %192 = arith.select %190, %178, %191 : vector<4x128xi1>, vector<4x128xf32>
    %cst_71 = arith.constant dense<0.000000e+00> : vector<4xf32>
    %193 = vector.multi_reduction <add>, %192, %cst_71 [1] : vector<4x128xf32> to vector<4xf32>
    %194 = vector.shape_cast %193 : vector<4xf32> to vector<4x1xf32>
    %195 = arith.subf %194, %182 : vector<4x1xf32>
    %196 = vector.broadcast %174 : vector<4x1xi32> to vector<4x16xi32>
    %197 = arith.cmpi eq, %51, %196 : vector<4x16xi32>
    %198 = arith.extui %197 : vector<4x16xi1> to vector<4x16xi32>
    %199 = arith.sitofp %198 : vector<4x16xi32> to vector<4x16xf32>
    %200 = tpu.concatenate %199, %155 in 1 : vector<4x16xf32>, vector<4x32xf32> -> vector<4x48xf32>
    %cst_72 = arith.constant dense<0.000000e+00> : vector<4x128xf32>
    %201 = tpu.matmul %200, %38, %cst_72 {dimension_numbers = #tpu.dot_dimension_numbers<[1], [0], [0], [1], [0, 0, 1, 1], [], []>} : vector<4x48xf32>, vector<48x128xf32>, vector<4x128xf32> -> vector<4x128xf32>
    %202 = arith.addf %201, %41 : vector<4x128xf32>
    %203 = vector.extract_strided_slice %202 {offsets = [0, 0], sizes = [4, 32], strides = [1, 1]} : vector<4x128xf32> to vector<4x32xf32>
    %204 = arith.negf %203 : vector<4x32xf32>
    %205 = math.exp %204 : vector<4x32xf32>
    %cst_73 = arith.constant 1.000000e+00 : f32
    %206 = vector.broadcast %cst_73 : f32 to vector<4x32xf32>
    %207 = arith.addf %206, %205 : vector<4x32xf32>
    %208 = arith.divf %206, %207 : vector<4x32xf32>
    %209 = vector.extract_strided_slice %202 {offsets = [0, 32], sizes = [4, 32], strides = [1, 1]} : vector<4x128xf32> to vector<4x32xf32>
    %210 = arith.negf %209 : vector<4x32xf32>
    %211 = math.exp %210 : vector<4x32xf32>
    %cst_74 = arith.constant 1.000000e+00 : f32
    %212 = vector.broadcast %cst_74 : f32 to vector<4x32xf32>
    %213 = arith.addf %212, %211 : vector<4x32xf32>
    %214 = arith.divf %212, %213 : vector<4x32xf32>
    %215 = vector.extract_strided_slice %202 {offsets = [0, 64], sizes = [4, 32], strides = [1, 1]} : vector<4x128xf32> to vector<4x32xf32>
    %216 = math.tanh %215 : vector<4x32xf32>
    %217 = vector.extract_strided_slice %202 {offsets = [0, 96], sizes = [4, 32], strides = [1, 1]} : vector<4x128xf32> to vector<4x32xf32>
    %218 = arith.negf %217 : vector<4x32xf32>
    %219 = math.exp %218 : vector<4x32xf32>
    %cst_75 = arith.constant 1.000000e+00 : f32
    %220 = vector.broadcast %cst_75 : f32 to vector<4x32xf32>
    %221 = arith.addf %220, %219 : vector<4x32xf32>
    %222 = arith.divf %220, %221 : vector<4x32xf32>
    %223 = arith.mulf %214, %153 : vector<4x32xf32>
    %224 = arith.mulf %208, %216 : vector<4x32xf32>
    %225 = arith.addf %223, %224 : vector<4x32xf32>
    %226 = math.tanh %225 : vector<4x32xf32>
    %227 = arith.mulf %222, %226 : vector<4x32xf32>
    %cst_76 = arith.constant 0.000000e+00 : f32
    %228 = vector.broadcast %cst_76 : f32 to vector<4x32xf32>
    %229 = arith.maximumf %227, %228 : vector<4x32xf32>
    %cst_77 = arith.constant dense<0.000000e+00> : vector<4x64xf32>
    %230 = tpu.matmul %229, %42, %cst_77 {dimension_numbers = #tpu.dot_dimension_numbers<[1], [0], [0], [1], [0, 0, 1, 1], [], []>} : vector<4x32xf32>, vector<32x64xf32>, vector<4x64xf32> -> vector<4x64xf32>
    %231 = arith.addf %230, %45 : vector<4x64xf32>
    %cst_78 = arith.constant 0.000000e+00 : f32
    %232 = vector.broadcast %cst_78 : f32 to vector<4x64xf32>
    %233 = arith.maximumf %231, %232 : vector<4x64xf32>
    %cst_79 = arith.constant dense<0.000000e+00> : vector<4x128xf32>
    %234 = tpu.matmul %233, %46, %cst_79 {dimension_numbers = #tpu.dot_dimension_numbers<[1], [0], [0], [1], [0, 0, 1, 1], [], []>} : vector<4x64xf32>, vector<64x128xf32>, vector<4x128xf32> -> vector<4x128xf32>
    %235 = arith.addf %234, %49 : vector<4x128xf32>
    %c2 = arith.constant 2 : index
    %c0_80 = arith.constant 0 : index
    %c0_81 = arith.constant 0 : index
    %236 = vector.load %arg14[%c2, %c0_80, %c0_81] : memref<8x4x128xf32, #tpu.memory_space<vmem>>, vector<1x4x128xf32>
    %237 = vector.shape_cast %236 : vector<1x4x128xf32> to vector<4x128xf32>
    %238 = arith.addf %235, %237 : vector<4x128xf32>
    %cst_82 = arith.constant dense<0xFF800000> : vector<4xf32>
    %239 = vector.multi_reduction <maximumf>, %238, %cst_82 [1] : vector<4x128xf32> to vector<4xf32>
    %240 = vector.shape_cast %239 : vector<4xf32> to vector<4x1xf32>
    %241 = vector.broadcast %240 : vector<4x1xf32> to vector<4x128xf32>
    %242 = arith.cmpf oge, %238, %241 : vector<4x128xf32>
    %c128_i32_83 = arith.constant 128 : i32
    %243 = vector.broadcast %c128_i32_83 : i32 to vector<4x128xi32>
    %244 = arith.select %242, %50, %243 : vector<4x128xi1>, vector<4x128xi32>
    %cst_84 = arith.constant dense<2147483647> : vector<4xi32>
    %245 = vector.multi_reduction <minsi>, %244, %cst_84 [1] : vector<4x128xi32> to vector<4xi32>
    %246 = vector.shape_cast %245 : vector<4xi32> to vector<4x1xi32>
    %cst_85 = arith.constant dense<0xFF800000> : vector<4xf32>
    %247 = vector.multi_reduction <maximumf>, %235, %cst_85 [1] : vector<4x128xf32> to vector<4xf32>
    %248 = vector.shape_cast %247 : vector<4xf32> to vector<4x1xf32>
    %249 = vector.broadcast %248 : vector<4x1xf32> to vector<4x128xf32>
    %250 = arith.subf %235, %249 : vector<4x128xf32>
    %251 = math.exp %250 : vector<4x128xf32>
    %cst_86 = arith.constant dense<0.000000e+00> : vector<4xf32>
    %252 = vector.multi_reduction <add>, %251, %cst_86 [1] : vector<4x128xf32> to vector<4xf32>
    %253 = vector.shape_cast %252 : vector<4xf32> to vector<4x1xf32>
    %254 = math.log %253 : vector<4x1xf32>
    %255 = tpu.reciprocal %253 {approx = true} : vector<4x1xf32> -> vector<4x1xf32>
    %256 = arith.mulf %251, %250 : vector<4x128xf32>
    %cst_87 = arith.constant dense<0.000000e+00> : vector<4xf32>
    %257 = vector.multi_reduction <add>, %256, %cst_87 [1] : vector<4x128xf32> to vector<4xf32>
    %258 = vector.shape_cast %257 : vector<4xf32> to vector<4x1xf32>
    %259 = arith.mulf %255, %258 : vector<4x1xf32>
    %260 = arith.subf %254, %259 : vector<4x1xf32>
    %261 = vector.broadcast %246 : vector<4x1xi32> to vector<4x128xi32>
    %262 = arith.cmpi eq, %50, %261 : vector<4x128xi32>
    %cst_88 = arith.constant 0.000000e+00 : f32
    %263 = vector.broadcast %cst_88 : f32 to vector<4x128xf32>
    %264 = arith.select %262, %250, %263 : vector<4x128xi1>, vector<4x128xf32>
    %cst_89 = arith.constant dense<0.000000e+00> : vector<4xf32>
    %265 = vector.multi_reduction <add>, %264, %cst_89 [1] : vector<4x128xf32> to vector<4xf32>
    %266 = vector.shape_cast %265 : vector<4xf32> to vector<4x1xf32>
    %267 = arith.subf %266, %254 : vector<4x1xf32>
    %268 = vector.broadcast %246 : vector<4x1xi32> to vector<4x16xi32>
    %269 = arith.cmpi eq, %51, %268 : vector<4x16xi32>
    %270 = arith.extui %269 : vector<4x16xi1> to vector<4x16xi32>
    %271 = arith.sitofp %270 : vector<4x16xi32> to vector<4x16xf32>
    %272 = tpu.concatenate %271, %227 in 1 : vector<4x16xf32>, vector<4x32xf32> -> vector<4x48xf32>
    %cst_90 = arith.constant dense<0.000000e+00> : vector<4x128xf32>
    %273 = tpu.matmul %272, %38, %cst_90 {dimension_numbers = #tpu.dot_dimension_numbers<[1], [0], [0], [1], [0, 0, 1, 1], [], []>} : vector<4x48xf32>, vector<48x128xf32>, vector<4x128xf32> -> vector<4x128xf32>
    %274 = arith.addf %273, %41 : vector<4x128xf32>
    %275 = vector.extract_strided_slice %274 {offsets = [0, 0], sizes = [4, 32], strides = [1, 1]} : vector<4x128xf32> to vector<4x32xf32>
    %276 = arith.negf %275 : vector<4x32xf32>
    %277 = math.exp %276 : vector<4x32xf32>
    %cst_91 = arith.constant 1.000000e+00 : f32
    %278 = vector.broadcast %cst_91 : f32 to vector<4x32xf32>
    %279 = arith.addf %278, %277 : vector<4x32xf32>
    %280 = arith.divf %278, %279 : vector<4x32xf32>
    %281 = vector.extract_strided_slice %274 {offsets = [0, 32], sizes = [4, 32], strides = [1, 1]} : vector<4x128xf32> to vector<4x32xf32>
    %282 = arith.negf %281 : vector<4x32xf32>
    %283 = math.exp %282 : vector<4x32xf32>
    %cst_92 = arith.constant 1.000000e+00 : f32
    %284 = vector.broadcast %cst_92 : f32 to vector<4x32xf32>
    %285 = arith.addf %284, %283 : vector<4x32xf32>
    %286 = arith.divf %284, %285 : vector<4x32xf32>
    %287 = vector.extract_strided_slice %274 {offsets = [0, 64], sizes = [4, 32], strides = [1, 1]} : vector<4x128xf32> to vector<4x32xf32>
    %288 = math.tanh %287 : vector<4x32xf32>
    %289 = vector.extract_strided_slice %274 {offsets = [0, 96], sizes = [4, 32], strides = [1, 1]} : vector<4x128xf32> to vector<4x32xf32>
    %290 = arith.negf %289 : vector<4x32xf32>
    %291 = math.exp %290 : vector<4x32xf32>
    %cst_93 = arith.constant 1.000000e+00 : f32
    %292 = vector.broadcast %cst_93 : f32 to vector<4x32xf32>
    %293 = arith.addf %292, %291 : vector<4x32xf32>
    %294 = arith.divf %292, %293 : vector<4x32xf32>
    %295 = arith.mulf %286, %225 : vector<4x32xf32>
    %296 = arith.mulf %280, %288 : vector<4x32xf32>
    %297 = arith.addf %295, %296 : vector<4x32xf32>
    %298 = math.tanh %297 : vector<4x32xf32>
    %299 = arith.mulf %294, %298 : vector<4x32xf32>
    %cst_94 = arith.constant 0.000000e+00 : f32
    %300 = vector.broadcast %cst_94 : f32 to vector<4x32xf32>
    %301 = arith.maximumf %299, %300 : vector<4x32xf32>
    %cst_95 = arith.constant dense<0.000000e+00> : vector<4x64xf32>
    %302 = tpu.matmul %301, %42, %cst_95 {dimension_numbers = #tpu.dot_dimension_numbers<[1], [0], [0], [1], [0, 0, 1, 1], [], []>} : vector<4x32xf32>, vector<32x64xf32>, vector<4x64xf32> -> vector<4x64xf32>
    %303 = arith.addf %302, %45 : vector<4x64xf32>
    %cst_96 = arith.constant 0.000000e+00 : f32
    %304 = vector.broadcast %cst_96 : f32 to vector<4x64xf32>
    %305 = arith.maximumf %303, %304 : vector<4x64xf32>
    %cst_97 = arith.constant dense<0.000000e+00> : vector<4x128xf32>
    %306 = tpu.matmul %305, %46, %cst_97 {dimension_numbers = #tpu.dot_dimension_numbers<[1], [0], [0], [1], [0, 0, 1, 1], [], []>} : vector<4x64xf32>, vector<64x128xf32>, vector<4x128xf32> -> vector<4x128xf32>
    %307 = arith.addf %306, %49 : vector<4x128xf32>
    %c3 = arith.constant 3 : index
    %c0_98 = arith.constant 0 : index
    %c0_99 = arith.constant 0 : index
    %308 = vector.load %arg14[%c3, %c0_98, %c0_99] : memref<8x4x128xf32, #tpu.memory_space<vmem>>, vector<1x4x128xf32>
    %309 = vector.shape_cast %308 : vector<1x4x128xf32> to vector<4x128xf32>
    %310 = arith.addf %307, %309 : vector<4x128xf32>
    %cst_100 = arith.constant dense<0xFF800000> : vector<4xf32>
    %311 = vector.multi_reduction <maximumf>, %310, %cst_100 [1] : vector<4x128xf32> to vector<4xf32>
    %312 = vector.shape_cast %311 : vector<4xf32> to vector<4x1xf32>
    %313 = vector.broadcast %312 : vector<4x1xf32> to vector<4x128xf32>
    %314 = arith.cmpf oge, %310, %313 : vector<4x128xf32>
    %c128_i32_101 = arith.constant 128 : i32
    %315 = vector.broadcast %c128_i32_101 : i32 to vector<4x128xi32>
    %316 = arith.select %314, %50, %315 : vector<4x128xi1>, vector<4x128xi32>
    %cst_102 = arith.constant dense<2147483647> : vector<4xi32>
    %317 = vector.multi_reduction <minsi>, %316, %cst_102 [1] : vector<4x128xi32> to vector<4xi32>
    %318 = vector.shape_cast %317 : vector<4xi32> to vector<4x1xi32>
    %cst_103 = arith.constant dense<0xFF800000> : vector<4xf32>
    %319 = vector.multi_reduction <maximumf>, %307, %cst_103 [1] : vector<4x128xf32> to vector<4xf32>
    %320 = vector.shape_cast %319 : vector<4xf32> to vector<4x1xf32>
    %321 = vector.broadcast %320 : vector<4x1xf32> to vector<4x128xf32>
    %322 = arith.subf %307, %321 : vector<4x128xf32>
    %323 = math.exp %322 : vector<4x128xf32>
    %cst_104 = arith.constant dense<0.000000e+00> : vector<4xf32>
    %324 = vector.multi_reduction <add>, %323, %cst_104 [1] : vector<4x128xf32> to vector<4xf32>
    %325 = vector.shape_cast %324 : vector<4xf32> to vector<4x1xf32>
    %326 = math.log %325 : vector<4x1xf32>
    %327 = tpu.reciprocal %325 {approx = true} : vector<4x1xf32> -> vector<4x1xf32>
    %328 = arith.mulf %323, %322 : vector<4x128xf32>
    %cst_105 = arith.constant dense<0.000000e+00> : vector<4xf32>
    %329 = vector.multi_reduction <add>, %328, %cst_105 [1] : vector<4x128xf32> to vector<4xf32>
    %330 = vector.shape_cast %329 : vector<4xf32> to vector<4x1xf32>
    %331 = arith.mulf %327, %330 : vector<4x1xf32>
    %332 = arith.subf %326, %331 : vector<4x1xf32>
    %333 = vector.broadcast %318 : vector<4x1xi32> to vector<4x128xi32>
    %334 = arith.cmpi eq, %50, %333 : vector<4x128xi32>
    %cst_106 = arith.constant 0.000000e+00 : f32
    %335 = vector.broadcast %cst_106 : f32 to vector<4x128xf32>
    %336 = arith.select %334, %322, %335 : vector<4x128xi1>, vector<4x128xf32>
    %cst_107 = arith.constant dense<0.000000e+00> : vector<4xf32>
    %337 = vector.multi_reduction <add>, %336, %cst_107 [1] : vector<4x128xf32> to vector<4xf32>
    %338 = vector.shape_cast %337 : vector<4xf32> to vector<4x1xf32>
    %339 = arith.subf %338, %326 : vector<4x1xf32>
    %340 = vector.broadcast %318 : vector<4x1xi32> to vector<4x16xi32>
    %341 = arith.cmpi eq, %51, %340 : vector<4x16xi32>
    %342 = arith.extui %341 : vector<4x16xi1> to vector<4x16xi32>
    %343 = arith.sitofp %342 : vector<4x16xi32> to vector<4x16xf32>
    %344 = tpu.concatenate %343, %299 in 1 : vector<4x16xf32>, vector<4x32xf32> -> vector<4x48xf32>
    %cst_108 = arith.constant dense<0.000000e+00> : vector<4x128xf32>
    %345 = tpu.matmul %344, %38, %cst_108 {dimension_numbers = #tpu.dot_dimension_numbers<[1], [0], [0], [1], [0, 0, 1, 1], [], []>} : vector<4x48xf32>, vector<48x128xf32>, vector<4x128xf32> -> vector<4x128xf32>
    %346 = arith.addf %345, %41 : vector<4x128xf32>
    %347 = vector.extract_strided_slice %346 {offsets = [0, 0], sizes = [4, 32], strides = [1, 1]} : vector<4x128xf32> to vector<4x32xf32>
    %348 = arith.negf %347 : vector<4x32xf32>
    %349 = math.exp %348 : vector<4x32xf32>
    %cst_109 = arith.constant 1.000000e+00 : f32
    %350 = vector.broadcast %cst_109 : f32 to vector<4x32xf32>
    %351 = arith.addf %350, %349 : vector<4x32xf32>
    %352 = arith.divf %350, %351 : vector<4x32xf32>
    %353 = vector.extract_strided_slice %346 {offsets = [0, 32], sizes = [4, 32], strides = [1, 1]} : vector<4x128xf32> to vector<4x32xf32>
    %354 = arith.negf %353 : vector<4x32xf32>
    %355 = math.exp %354 : vector<4x32xf32>
    %cst_110 = arith.constant 1.000000e+00 : f32
    %356 = vector.broadcast %cst_110 : f32 to vector<4x32xf32>
    %357 = arith.addf %356, %355 : vector<4x32xf32>
    %358 = arith.divf %356, %357 : vector<4x32xf32>
    %359 = vector.extract_strided_slice %346 {offsets = [0, 64], sizes = [4, 32], strides = [1, 1]} : vector<4x128xf32> to vector<4x32xf32>
    %360 = math.tanh %359 : vector<4x32xf32>
    %361 = vector.extract_strided_slice %346 {offsets = [0, 96], sizes = [4, 32], strides = [1, 1]} : vector<4x128xf32> to vector<4x32xf32>
    %362 = arith.negf %361 : vector<4x32xf32>
    %363 = math.exp %362 : vector<4x32xf32>
    %cst_111 = arith.constant 1.000000e+00 : f32
    %364 = vector.broadcast %cst_111 : f32 to vector<4x32xf32>
    %365 = arith.addf %364, %363 : vector<4x32xf32>
    %366 = arith.divf %364, %365 : vector<4x32xf32>
    %367 = arith.mulf %358, %297 : vector<4x32xf32>
    %368 = arith.mulf %352, %360 : vector<4x32xf32>
    %369 = arith.addf %367, %368 : vector<4x32xf32>
    %370 = math.tanh %369 : vector<4x32xf32>
    %371 = arith.mulf %366, %370 : vector<4x32xf32>
    %cst_112 = arith.constant 0.000000e+00 : f32
    %372 = vector.broadcast %cst_112 : f32 to vector<4x32xf32>
    %373 = arith.maximumf %371, %372 : vector<4x32xf32>
    %cst_113 = arith.constant dense<0.000000e+00> : vector<4x64xf32>
    %374 = tpu.matmul %373, %42, %cst_113 {dimension_numbers = #tpu.dot_dimension_numbers<[1], [0], [0], [1], [0, 0, 1, 1], [], []>} : vector<4x32xf32>, vector<32x64xf32>, vector<4x64xf32> -> vector<4x64xf32>
    %375 = arith.addf %374, %45 : vector<4x64xf32>
    %cst_114 = arith.constant 0.000000e+00 : f32
    %376 = vector.broadcast %cst_114 : f32 to vector<4x64xf32>
    %377 = arith.maximumf %375, %376 : vector<4x64xf32>
    %cst_115 = arith.constant dense<0.000000e+00> : vector<4x128xf32>
    %378 = tpu.matmul %377, %46, %cst_115 {dimension_numbers = #tpu.dot_dimension_numbers<[1], [0], [0], [1], [0, 0, 1, 1], [], []>} : vector<4x64xf32>, vector<64x128xf32>, vector<4x128xf32> -> vector<4x128xf32>
    %379 = arith.addf %378, %49 : vector<4x128xf32>
    %c4 = arith.constant 4 : index
    %c0_116 = arith.constant 0 : index
    %c0_117 = arith.constant 0 : index
    %380 = vector.load %arg14[%c4, %c0_116, %c0_117] : memref<8x4x128xf32, #tpu.memory_space<vmem>>, vector<1x4x128xf32>
    %381 = vector.shape_cast %380 : vector<1x4x128xf32> to vector<4x128xf32>
    %382 = arith.addf %379, %381 : vector<4x128xf32>
    %cst_118 = arith.constant dense<0xFF800000> : vector<4xf32>
    %383 = vector.multi_reduction <maximumf>, %382, %cst_118 [1] : vector<4x128xf32> to vector<4xf32>
    %384 = vector.shape_cast %383 : vector<4xf32> to vector<4x1xf32>
    %385 = vector.broadcast %384 : vector<4x1xf32> to vector<4x128xf32>
    %386 = arith.cmpf oge, %382, %385 : vector<4x128xf32>
    %c128_i32_119 = arith.constant 128 : i32
    %387 = vector.broadcast %c128_i32_119 : i32 to vector<4x128xi32>
    %388 = arith.select %386, %50, %387 : vector<4x128xi1>, vector<4x128xi32>
    %cst_120 = arith.constant dense<2147483647> : vector<4xi32>
    %389 = vector.multi_reduction <minsi>, %388, %cst_120 [1] : vector<4x128xi32> to vector<4xi32>
    %390 = vector.shape_cast %389 : vector<4xi32> to vector<4x1xi32>
    %cst_121 = arith.constant dense<0xFF800000> : vector<4xf32>
    %391 = vector.multi_reduction <maximumf>, %379, %cst_121 [1] : vector<4x128xf32> to vector<4xf32>
    %392 = vector.shape_cast %391 : vector<4xf32> to vector<4x1xf32>
    %393 = vector.broadcast %392 : vector<4x1xf32> to vector<4x128xf32>
    %394 = arith.subf %379, %393 : vector<4x128xf32>
    %395 = math.exp %394 : vector<4x128xf32>
    %cst_122 = arith.constant dense<0.000000e+00> : vector<4xf32>
    %396 = vector.multi_reduction <add>, %395, %cst_122 [1] : vector<4x128xf32> to vector<4xf32>
    %397 = vector.shape_cast %396 : vector<4xf32> to vector<4x1xf32>
    %398 = math.log %397 : vector<4x1xf32>
    %399 = tpu.reciprocal %397 {approx = true} : vector<4x1xf32> -> vector<4x1xf32>
    %400 = arith.mulf %395, %394 : vector<4x128xf32>
    %cst_123 = arith.constant dense<0.000000e+00> : vector<4xf32>
    %401 = vector.multi_reduction <add>, %400, %cst_123 [1] : vector<4x128xf32> to vector<4xf32>
    %402 = vector.shape_cast %401 : vector<4xf32> to vector<4x1xf32>
    %403 = arith.mulf %399, %402 : vector<4x1xf32>
    %404 = arith.subf %398, %403 : vector<4x1xf32>
    %405 = vector.broadcast %390 : vector<4x1xi32> to vector<4x128xi32>
    %406 = arith.cmpi eq, %50, %405 : vector<4x128xi32>
    %cst_124 = arith.constant 0.000000e+00 : f32
    %407 = vector.broadcast %cst_124 : f32 to vector<4x128xf32>
    %408 = arith.select %406, %394, %407 : vector<4x128xi1>, vector<4x128xf32>
    %cst_125 = arith.constant dense<0.000000e+00> : vector<4xf32>
    %409 = vector.multi_reduction <add>, %408, %cst_125 [1] : vector<4x128xf32> to vector<4xf32>
    %410 = vector.shape_cast %409 : vector<4xf32> to vector<4x1xf32>
    %411 = arith.subf %410, %398 : vector<4x1xf32>
    %412 = vector.broadcast %390 : vector<4x1xi32> to vector<4x16xi32>
    %413 = arith.cmpi eq, %51, %412 : vector<4x16xi32>
    %414 = arith.extui %413 : vector<4x16xi1> to vector<4x16xi32>
    %415 = arith.sitofp %414 : vector<4x16xi32> to vector<4x16xf32>
    %416 = tpu.concatenate %415, %371 in 1 : vector<4x16xf32>, vector<4x32xf32> -> vector<4x48xf32>
    %cst_126 = arith.constant dense<0.000000e+00> : vector<4x128xf32>
    %417 = tpu.matmul %416, %38, %cst_126 {dimension_numbers = #tpu.dot_dimension_numbers<[1], [0], [0], [1], [0, 0, 1, 1], [], []>} : vector<4x48xf32>, vector<48x128xf32>, vector<4x128xf32> -> vector<4x128xf32>
    %418 = arith.addf %417, %41 : vector<4x128xf32>
    %419 = vector.extract_strided_slice %418 {offsets = [0, 0], sizes = [4, 32], strides = [1, 1]} : vector<4x128xf32> to vector<4x32xf32>
    %420 = arith.negf %419 : vector<4x32xf32>
    %421 = math.exp %420 : vector<4x32xf32>
    %cst_127 = arith.constant 1.000000e+00 : f32
    %422 = vector.broadcast %cst_127 : f32 to vector<4x32xf32>
    %423 = arith.addf %422, %421 : vector<4x32xf32>
    %424 = arith.divf %422, %423 : vector<4x32xf32>
    %425 = vector.extract_strided_slice %418 {offsets = [0, 32], sizes = [4, 32], strides = [1, 1]} : vector<4x128xf32> to vector<4x32xf32>
    %426 = arith.negf %425 : vector<4x32xf32>
    %427 = math.exp %426 : vector<4x32xf32>
    %cst_128 = arith.constant 1.000000e+00 : f32
    %428 = vector.broadcast %cst_128 : f32 to vector<4x32xf32>
    %429 = arith.addf %428, %427 : vector<4x32xf32>
    %430 = arith.divf %428, %429 : vector<4x32xf32>
    %431 = vector.extract_strided_slice %418 {offsets = [0, 64], sizes = [4, 32], strides = [1, 1]} : vector<4x128xf32> to vector<4x32xf32>
    %432 = math.tanh %431 : vector<4x32xf32>
    %433 = vector.extract_strided_slice %418 {offsets = [0, 96], sizes = [4, 32], strides = [1, 1]} : vector<4x128xf32> to vector<4x32xf32>
    %434 = arith.negf %433 : vector<4x32xf32>
    %435 = math.exp %434 : vector<4x32xf32>
    %cst_129 = arith.constant 1.000000e+00 : f32
    %436 = vector.broadcast %cst_129 : f32 to vector<4x32xf32>
    %437 = arith.addf %436, %435 : vector<4x32xf32>
    %438 = arith.divf %436, %437 : vector<4x32xf32>
    %439 = arith.mulf %430, %369 : vector<4x32xf32>
    %440 = arith.mulf %424, %432 : vector<4x32xf32>
    %441 = arith.addf %439, %440 : vector<4x32xf32>
    %442 = math.tanh %441 : vector<4x32xf32>
    %443 = arith.mulf %438, %442 : vector<4x32xf32>
    %cst_130 = arith.constant 0.000000e+00 : f32
    %444 = vector.broadcast %cst_130 : f32 to vector<4x32xf32>
    %445 = arith.maximumf %443, %444 : vector<4x32xf32>
    %cst_131 = arith.constant dense<0.000000e+00> : vector<4x64xf32>
    %446 = tpu.matmul %445, %42, %cst_131 {dimension_numbers = #tpu.dot_dimension_numbers<[1], [0], [0], [1], [0, 0, 1, 1], [], []>} : vector<4x32xf32>, vector<32x64xf32>, vector<4x64xf32> -> vector<4x64xf32>
    %447 = arith.addf %446, %45 : vector<4x64xf32>
    %cst_132 = arith.constant 0.000000e+00 : f32
    %448 = vector.broadcast %cst_132 : f32 to vector<4x64xf32>
    %449 = arith.maximumf %447, %448 : vector<4x64xf32>
    %cst_133 = arith.constant dense<0.000000e+00> : vector<4x128xf32>
    %450 = tpu.matmul %449, %46, %cst_133 {dimension_numbers = #tpu.dot_dimension_numbers<[1], [0], [0], [1], [0, 0, 1, 1], [], []>} : vector<4x64xf32>, vector<64x128xf32>, vector<4x128xf32> -> vector<4x128xf32>
    %451 = arith.addf %450, %49 : vector<4x128xf32>
    %c5 = arith.constant 5 : index
    %c0_134 = arith.constant 0 : index
    %c0_135 = arith.constant 0 : index
    %452 = vector.load %arg14[%c5, %c0_134, %c0_135] : memref<8x4x128xf32, #tpu.memory_space<vmem>>, vector<1x4x128xf32>
    %453 = vector.shape_cast %452 : vector<1x4x128xf32> to vector<4x128xf32>
    %454 = arith.addf %451, %453 : vector<4x128xf32>
    %cst_136 = arith.constant dense<0xFF800000> : vector<4xf32>
    %455 = vector.multi_reduction <maximumf>, %454, %cst_136 [1] : vector<4x128xf32> to vector<4xf32>
    %456 = vector.shape_cast %455 : vector<4xf32> to vector<4x1xf32>
    %457 = vector.broadcast %456 : vector<4x1xf32> to vector<4x128xf32>
    %458 = arith.cmpf oge, %454, %457 : vector<4x128xf32>
    %c128_i32_137 = arith.constant 128 : i32
    %459 = vector.broadcast %c128_i32_137 : i32 to vector<4x128xi32>
    %460 = arith.select %458, %50, %459 : vector<4x128xi1>, vector<4x128xi32>
    %cst_138 = arith.constant dense<2147483647> : vector<4xi32>
    %461 = vector.multi_reduction <minsi>, %460, %cst_138 [1] : vector<4x128xi32> to vector<4xi32>
    %462 = vector.shape_cast %461 : vector<4xi32> to vector<4x1xi32>
    %cst_139 = arith.constant dense<0xFF800000> : vector<4xf32>
    %463 = vector.multi_reduction <maximumf>, %451, %cst_139 [1] : vector<4x128xf32> to vector<4xf32>
    %464 = vector.shape_cast %463 : vector<4xf32> to vector<4x1xf32>
    %465 = vector.broadcast %464 : vector<4x1xf32> to vector<4x128xf32>
    %466 = arith.subf %451, %465 : vector<4x128xf32>
    %467 = math.exp %466 : vector<4x128xf32>
    %cst_140 = arith.constant dense<0.000000e+00> : vector<4xf32>
    %468 = vector.multi_reduction <add>, %467, %cst_140 [1] : vector<4x128xf32> to vector<4xf32>
    %469 = vector.shape_cast %468 : vector<4xf32> to vector<4x1xf32>
    %470 = math.log %469 : vector<4x1xf32>
    %471 = tpu.reciprocal %469 {approx = true} : vector<4x1xf32> -> vector<4x1xf32>
    %472 = arith.mulf %467, %466 : vector<4x128xf32>
    %cst_141 = arith.constant dense<0.000000e+00> : vector<4xf32>
    %473 = vector.multi_reduction <add>, %472, %cst_141 [1] : vector<4x128xf32> to vector<4xf32>
    %474 = vector.shape_cast %473 : vector<4xf32> to vector<4x1xf32>
    %475 = arith.mulf %471, %474 : vector<4x1xf32>
    %476 = arith.subf %470, %475 : vector<4x1xf32>
    %477 = vector.broadcast %462 : vector<4x1xi32> to vector<4x128xi32>
    %478 = arith.cmpi eq, %50, %477 : vector<4x128xi32>
    %cst_142 = arith.constant 0.000000e+00 : f32
    %479 = vector.broadcast %cst_142 : f32 to vector<4x128xf32>
    %480 = arith.select %478, %466, %479 : vector<4x128xi1>, vector<4x128xf32>
    %cst_143 = arith.constant dense<0.000000e+00> : vector<4xf32>
    %481 = vector.multi_reduction <add>, %480, %cst_143 [1] : vector<4x128xf32> to vector<4xf32>
    %482 = vector.shape_cast %481 : vector<4xf32> to vector<4x1xf32>
    %483 = arith.subf %482, %470 : vector<4x1xf32>
    %484 = vector.broadcast %462 : vector<4x1xi32> to vector<4x16xi32>
    %485 = arith.cmpi eq, %51, %484 : vector<4x16xi32>
    %486 = arith.extui %485 : vector<4x16xi1> to vector<4x16xi32>
    %487 = arith.sitofp %486 : vector<4x16xi32> to vector<4x16xf32>
    %488 = tpu.concatenate %487, %443 in 1 : vector<4x16xf32>, vector<4x32xf32> -> vector<4x48xf32>
    %cst_144 = arith.constant dense<0.000000e+00> : vector<4x128xf32>
    %489 = tpu.matmul %488, %38, %cst_144 {dimension_numbers = #tpu.dot_dimension_numbers<[1], [0], [0], [1], [0, 0, 1, 1], [], []>} : vector<4x48xf32>, vector<48x128xf32>, vector<4x128xf32> -> vector<4x128xf32>
    %490 = arith.addf %489, %41 : vector<4x128xf32>
    %491 = vector.extract_strided_slice %490 {offsets = [0, 0], sizes = [4, 32], strides = [1, 1]} : vector<4x128xf32> to vector<4x32xf32>
    %492 = arith.negf %491 : vector<4x32xf32>
    %493 = math.exp %492 : vector<4x32xf32>
    %cst_145 = arith.constant 1.000000e+00 : f32
    %494 = vector.broadcast %cst_145 : f32 to vector<4x32xf32>
    %495 = arith.addf %494, %493 : vector<4x32xf32>
    %496 = arith.divf %494, %495 : vector<4x32xf32>
    %497 = vector.extract_strided_slice %490 {offsets = [0, 32], sizes = [4, 32], strides = [1, 1]} : vector<4x128xf32> to vector<4x32xf32>
    %498 = arith.negf %497 : vector<4x32xf32>
    %499 = math.exp %498 : vector<4x32xf32>
    %cst_146 = arith.constant 1.000000e+00 : f32
    %500 = vector.broadcast %cst_146 : f32 to vector<4x32xf32>
    %501 = arith.addf %500, %499 : vector<4x32xf32>
    %502 = arith.divf %500, %501 : vector<4x32xf32>
    %503 = vector.extract_strided_slice %490 {offsets = [0, 64], sizes = [4, 32], strides = [1, 1]} : vector<4x128xf32> to vector<4x32xf32>
    %504 = math.tanh %503 : vector<4x32xf32>
    %505 = vector.extract_strided_slice %490 {offsets = [0, 96], sizes = [4, 32], strides = [1, 1]} : vector<4x128xf32> to vector<4x32xf32>
    %506 = arith.negf %505 : vector<4x32xf32>
    %507 = math.exp %506 : vector<4x32xf32>
    %cst_147 = arith.constant 1.000000e+00 : f32
    %508 = vector.broadcast %cst_147 : f32 to vector<4x32xf32>
    %509 = arith.addf %508, %507 : vector<4x32xf32>
    %510 = arith.divf %508, %509 : vector<4x32xf32>
    %511 = arith.mulf %502, %441 : vector<4x32xf32>
    %512 = arith.mulf %496, %504 : vector<4x32xf32>
    %513 = arith.addf %511, %512 : vector<4x32xf32>
    %514 = math.tanh %513 : vector<4x32xf32>
    %515 = arith.mulf %510, %514 : vector<4x32xf32>
    %cst_148 = arith.constant 0.000000e+00 : f32
    %516 = vector.broadcast %cst_148 : f32 to vector<4x32xf32>
    %517 = arith.maximumf %515, %516 : vector<4x32xf32>
    %cst_149 = arith.constant dense<0.000000e+00> : vector<4x64xf32>
    %518 = tpu.matmul %517, %42, %cst_149 {dimension_numbers = #tpu.dot_dimension_numbers<[1], [0], [0], [1], [0, 0, 1, 1], [], []>} : vector<4x32xf32>, vector<32x64xf32>, vector<4x64xf32> -> vector<4x64xf32>
    %519 = arith.addf %518, %45 : vector<4x64xf32>
    %cst_150 = arith.constant 0.000000e+00 : f32
    %520 = vector.broadcast %cst_150 : f32 to vector<4x64xf32>
    %521 = arith.maximumf %519, %520 : vector<4x64xf32>
    %cst_151 = arith.constant dense<0.000000e+00> : vector<4x128xf32>
    %522 = tpu.matmul %521, %46, %cst_151 {dimension_numbers = #tpu.dot_dimension_numbers<[1], [0], [0], [1], [0, 0, 1, 1], [], []>} : vector<4x64xf32>, vector<64x128xf32>, vector<4x128xf32> -> vector<4x128xf32>
    %523 = arith.addf %522, %49 : vector<4x128xf32>
    %c6 = arith.constant 6 : index
    %c0_152 = arith.constant 0 : index
    %c0_153 = arith.constant 0 : index
    %524 = vector.load %arg14[%c6, %c0_152, %c0_153] : memref<8x4x128xf32, #tpu.memory_space<vmem>>, vector<1x4x128xf32>
    %525 = vector.shape_cast %524 : vector<1x4x128xf32> to vector<4x128xf32>
    %526 = arith.addf %523, %525 : vector<4x128xf32>
    %cst_154 = arith.constant dense<0xFF800000> : vector<4xf32>
    %527 = vector.multi_reduction <maximumf>, %526, %cst_154 [1] : vector<4x128xf32> to vector<4xf32>
    %528 = vector.shape_cast %527 : vector<4xf32> to vector<4x1xf32>
    %529 = vector.broadcast %528 : vector<4x1xf32> to vector<4x128xf32>
    %530 = arith.cmpf oge, %526, %529 : vector<4x128xf32>
    %c128_i32_155 = arith.constant 128 : i32
    %531 = vector.broadcast %c128_i32_155 : i32 to vector<4x128xi32>
    %532 = arith.select %530, %50, %531 : vector<4x128xi1>, vector<4x128xi32>
    %cst_156 = arith.constant dense<2147483647> : vector<4xi32>
    %533 = vector.multi_reduction <minsi>, %532, %cst_156 [1] : vector<4x128xi32> to vector<4xi32>
    %534 = vector.shape_cast %533 : vector<4xi32> to vector<4x1xi32>
    %cst_157 = arith.constant dense<0xFF800000> : vector<4xf32>
    %535 = vector.multi_reduction <maximumf>, %523, %cst_157 [1] : vector<4x128xf32> to vector<4xf32>
    %536 = vector.shape_cast %535 : vector<4xf32> to vector<4x1xf32>
    %537 = vector.broadcast %536 : vector<4x1xf32> to vector<4x128xf32>
    %538 = arith.subf %523, %537 : vector<4x128xf32>
    %539 = math.exp %538 : vector<4x128xf32>
    %cst_158 = arith.constant dense<0.000000e+00> : vector<4xf32>
    %540 = vector.multi_reduction <add>, %539, %cst_158 [1] : vector<4x128xf32> to vector<4xf32>
    %541 = vector.shape_cast %540 : vector<4xf32> to vector<4x1xf32>
    %542 = math.log %541 : vector<4x1xf32>
    %543 = tpu.reciprocal %541 {approx = true} : vector<4x1xf32> -> vector<4x1xf32>
    %544 = arith.mulf %539, %538 : vector<4x128xf32>
    %cst_159 = arith.constant dense<0.000000e+00> : vector<4xf32>
    %545 = vector.multi_reduction <add>, %544, %cst_159 [1] : vector<4x128xf32> to vector<4xf32>
    %546 = vector.shape_cast %545 : vector<4xf32> to vector<4x1xf32>
    %547 = arith.mulf %543, %546 : vector<4x1xf32>
    %548 = arith.subf %542, %547 : vector<4x1xf32>
    %549 = vector.broadcast %534 : vector<4x1xi32> to vector<4x128xi32>
    %550 = arith.cmpi eq, %50, %549 : vector<4x128xi32>
    %cst_160 = arith.constant 0.000000e+00 : f32
    %551 = vector.broadcast %cst_160 : f32 to vector<4x128xf32>
    %552 = arith.select %550, %538, %551 : vector<4x128xi1>, vector<4x128xf32>
    %cst_161 = arith.constant dense<0.000000e+00> : vector<4xf32>
    %553 = vector.multi_reduction <add>, %552, %cst_161 [1] : vector<4x128xf32> to vector<4xf32>
    %554 = vector.shape_cast %553 : vector<4xf32> to vector<4x1xf32>
    %555 = arith.subf %554, %542 : vector<4x1xf32>
    %556 = vector.broadcast %534 : vector<4x1xi32> to vector<4x16xi32>
    %557 = arith.cmpi eq, %51, %556 : vector<4x16xi32>
    %558 = arith.extui %557 : vector<4x16xi1> to vector<4x16xi32>
    %559 = arith.sitofp %558 : vector<4x16xi32> to vector<4x16xf32>
    %560 = tpu.concatenate %559, %515 in 1 : vector<4x16xf32>, vector<4x32xf32> -> vector<4x48xf32>
    %cst_162 = arith.constant dense<0.000000e+00> : vector<4x128xf32>
    %561 = tpu.matmul %560, %38, %cst_162 {dimension_numbers = #tpu.dot_dimension_numbers<[1], [0], [0], [1], [0, 0, 1, 1], [], []>} : vector<4x48xf32>, vector<48x128xf32>, vector<4x128xf32> -> vector<4x128xf32>
    %562 = arith.addf %561, %41 : vector<4x128xf32>
    %563 = vector.extract_strided_slice %562 {offsets = [0, 0], sizes = [4, 32], strides = [1, 1]} : vector<4x128xf32> to vector<4x32xf32>
    %564 = arith.negf %563 : vector<4x32xf32>
    %565 = math.exp %564 : vector<4x32xf32>
    %cst_163 = arith.constant 1.000000e+00 : f32
    %566 = vector.broadcast %cst_163 : f32 to vector<4x32xf32>
    %567 = arith.addf %566, %565 : vector<4x32xf32>
    %568 = arith.divf %566, %567 : vector<4x32xf32>
    %569 = vector.extract_strided_slice %562 {offsets = [0, 32], sizes = [4, 32], strides = [1, 1]} : vector<4x128xf32> to vector<4x32xf32>
    %570 = arith.negf %569 : vector<4x32xf32>
    %571 = math.exp %570 : vector<4x32xf32>
    %cst_164 = arith.constant 1.000000e+00 : f32
    %572 = vector.broadcast %cst_164 : f32 to vector<4x32xf32>
    %573 = arith.addf %572, %571 : vector<4x32xf32>
    %574 = arith.divf %572, %573 : vector<4x32xf32>
    %575 = vector.extract_strided_slice %562 {offsets = [0, 64], sizes = [4, 32], strides = [1, 1]} : vector<4x128xf32> to vector<4x32xf32>
    %576 = math.tanh %575 : vector<4x32xf32>
    %577 = vector.extract_strided_slice %562 {offsets = [0, 96], sizes = [4, 32], strides = [1, 1]} : vector<4x128xf32> to vector<4x32xf32>
    %578 = arith.negf %577 : vector<4x32xf32>
    %579 = math.exp %578 : vector<4x32xf32>
    %cst_165 = arith.constant 1.000000e+00 : f32
    %580 = vector.broadcast %cst_165 : f32 to vector<4x32xf32>
    %581 = arith.addf %580, %579 : vector<4x32xf32>
    %582 = arith.divf %580, %581 : vector<4x32xf32>
    %583 = arith.mulf %574, %513 : vector<4x32xf32>
    %584 = arith.mulf %568, %576 : vector<4x32xf32>
    %585 = arith.addf %583, %584 : vector<4x32xf32>
    %586 = math.tanh %585 : vector<4x32xf32>
    %587 = arith.mulf %582, %586 : vector<4x32xf32>
    %cst_166 = arith.constant 0.000000e+00 : f32
    %588 = vector.broadcast %cst_166 : f32 to vector<4x32xf32>
    %589 = arith.maximumf %587, %588 : vector<4x32xf32>
    %cst_167 = arith.constant dense<0.000000e+00> : vector<4x64xf32>
    %590 = tpu.matmul %589, %42, %cst_167 {dimension_numbers = #tpu.dot_dimension_numbers<[1], [0], [0], [1], [0, 0, 1, 1], [], []>} : vector<4x32xf32>, vector<32x64xf32>, vector<4x64xf32> -> vector<4x64xf32>
    %591 = arith.addf %590, %45 : vector<4x64xf32>
    %cst_168 = arith.constant 0.000000e+00 : f32
    %592 = vector.broadcast %cst_168 : f32 to vector<4x64xf32>
    %593 = arith.maximumf %591, %592 : vector<4x64xf32>
    %cst_169 = arith.constant dense<0.000000e+00> : vector<4x128xf32>
    %594 = tpu.matmul %593, %46, %cst_169 {dimension_numbers = #tpu.dot_dimension_numbers<[1], [0], [0], [1], [0, 0, 1, 1], [], []>} : vector<4x64xf32>, vector<64x128xf32>, vector<4x128xf32> -> vector<4x128xf32>
    %595 = arith.addf %594, %49 : vector<4x128xf32>
    %c7 = arith.constant 7 : index
    %c0_170 = arith.constant 0 : index
    %c0_171 = arith.constant 0 : index
    %596 = vector.load %arg14[%c7, %c0_170, %c0_171] : memref<8x4x128xf32, #tpu.memory_space<vmem>>, vector<1x4x128xf32>
    %597 = vector.shape_cast %596 : vector<1x4x128xf32> to vector<4x128xf32>
    %598 = arith.addf %595, %597 : vector<4x128xf32>
    %cst_172 = arith.constant dense<0xFF800000> : vector<4xf32>
    %599 = vector.multi_reduction <maximumf>, %598, %cst_172 [1] : vector<4x128xf32> to vector<4xf32>
    %600 = vector.shape_cast %599 : vector<4xf32> to vector<4x1xf32>
    %601 = vector.broadcast %600 : vector<4x1xf32> to vector<4x128xf32>
    %602 = arith.cmpf oge, %598, %601 : vector<4x128xf32>
    %c128_i32_173 = arith.constant 128 : i32
    %603 = vector.broadcast %c128_i32_173 : i32 to vector<4x128xi32>
    %604 = arith.select %602, %50, %603 : vector<4x128xi1>, vector<4x128xi32>
    %cst_174 = arith.constant dense<2147483647> : vector<4xi32>
    %605 = vector.multi_reduction <minsi>, %604, %cst_174 [1] : vector<4x128xi32> to vector<4xi32>
    %606 = vector.shape_cast %605 : vector<4xi32> to vector<4x1xi32>
    %cst_175 = arith.constant dense<0xFF800000> : vector<4xf32>
    %607 = vector.multi_reduction <maximumf>, %595, %cst_175 [1] : vector<4x128xf32> to vector<4xf32>
    %608 = vector.shape_cast %607 : vector<4xf32> to vector<4x1xf32>
    %609 = vector.broadcast %608 : vector<4x1xf32> to vector<4x128xf32>
    %610 = arith.subf %595, %609 : vector<4x128xf32>
    %611 = math.exp %610 : vector<4x128xf32>
    %cst_176 = arith.constant dense<0.000000e+00> : vector<4xf32>
    %612 = vector.multi_reduction <add>, %611, %cst_176 [1] : vector<4x128xf32> to vector<4xf32>
    %613 = vector.shape_cast %612 : vector<4xf32> to vector<4x1xf32>
    %614 = math.log %613 : vector<4x1xf32>
    %615 = tpu.reciprocal %613 {approx = true} : vector<4x1xf32> -> vector<4x1xf32>
    %616 = arith.mulf %611, %610 : vector<4x128xf32>
    %cst_177 = arith.constant dense<0.000000e+00> : vector<4xf32>
    %617 = vector.multi_reduction <add>, %616, %cst_177 [1] : vector<4x128xf32> to vector<4xf32>
    %618 = vector.shape_cast %617 : vector<4xf32> to vector<4x1xf32>
    %619 = arith.mulf %615, %618 : vector<4x1xf32>
    %620 = arith.subf %614, %619 : vector<4x1xf32>
    %621 = vector.broadcast %606 : vector<4x1xi32> to vector<4x128xi32>
    %622 = arith.cmpi eq, %50, %621 : vector<4x128xi32>
    %cst_178 = arith.constant 0.000000e+00 : f32
    %623 = vector.broadcast %cst_178 : f32 to vector<4x128xf32>
    %624 = arith.select %622, %610, %623 : vector<4x128xi1>, vector<4x128xf32>
    %cst_179 = arith.constant dense<0.000000e+00> : vector<4xf32>
    %625 = vector.multi_reduction <add>, %624, %cst_179 [1] : vector<4x128xf32> to vector<4xf32>
    %626 = vector.shape_cast %625 : vector<4xf32> to vector<4x1xf32>
    %627 = arith.subf %626, %614 : vector<4x1xf32>
    %628 = tpu.concatenate %102, %174, %246, %318, %390, %462, %534, %606 in 1 : vector<4x1xi32>, vector<4x1xi32>, vector<4x1xi32>, vector<4x1xi32>, vector<4x1xi32>, vector<4x1xi32>, vector<4x1xi32>, vector<4x1xi32> -> vector<4x8xi32>
    %c0_180 = arith.constant 0 : index
    %c0_181 = arith.constant 0 : index
    %629 = vector.load %arg15[%c0_180, %c0_181] : memref<4x8xi32, #tpu.memory_space<vmem>>, vector<4x8xi32>
    tpu.vector_store %arg15[%c0_180, %c0_181], %628 {strides = array<i32>} : memref<4x8xi32, #tpu.memory_space<vmem>>, vector<4x8xi32>,
    %630 = tpu.concatenate %123, %195, %267, %339, %411, %483, %555, %627 in 1 : vector<4x1xf32>, vector<4x1xf32>, vector<4x1xf32>, vector<4x1xf32>, vector<4x1xf32>, vector<4x1xf32>, vector<4x1xf32>, vector<4x1xf32> -> vector<4x8xf32>
    %c0_182 = arith.constant 0 : index
    %c0_183 = arith.constant 0 : index
    %631 = vector.load %arg16[%c0_182, %c0_183] : memref<4x8xf32, #tpu.memory_space<vmem>>, vector<4x8xf32>
    tpu.vector_store %arg16[%c0_182, %c0_183], %630 {strides = array<i32>} : memref<4x8xf32, #tpu.memory_space<vmem>>, vector<4x8xf32>,
    %632 = tpu.concatenate %116, %188, %260, %332, %404, %476, %548, %620 in 1 : vector<4x1xf32>, vector<4x1xf32>, vector<4x1xf32>, vector<4x1xf32>, vector<4x1xf32>, vector<4x1xf32>, vector<4x1xf32>, vector<4x1xf32> -> vector<4x8xf32>
    %c0_184 = arith.constant 0 : index
    %c0_185 = arith.constant 0 : index
    %633 = vector.load %arg17[%c0_184, %c0_185] : memref<4x8xf32, #tpu.memory_space<vmem>>, vector<4x8xf32>
    tpu.vector_store %arg17[%c0_184, %c0_185], %632 {strides = array<i32>} : memref<4x8xf32, #tpu.memory_space<vmem>>, vector<4x8xf32>,
    return
  }
  func.func @transform_0(%arg0: i32) -> (i32, i32) {
    %c0_i32 = arith.constant 0 : i32
    %c0_i32_0 = arith.constant 0 : i32
    %c0_i32_1 = arith.constant 0 : i32
    return %c0_i32, %c0_i32_0 : i32, i32
  }
  func.func @transform_1(%arg0: i32) -> (i32, i32) {
    %c0_i32 = arith.constant 0 : i32
    %c0_i32_0 = arith.constant 0 : i32
    %c0_i32_1 = arith.constant 0 : i32
    return %c0_i32, %c0_i32_0 : i32, i32
  }
  func.func @transform_2(%arg0: i32) -> (i32, i32) {
    %c0_i32 = arith.constant 0 : i32
    %c0_i32_0 = arith.constant 0 : i32
    %c0_i32_1 = arith.constant 0 : i32
    return %c0_i32, %c0_i32_0 : i32, i32
  }
  func.func @transform_3(%arg0: i32) -> (i32, i32) {
    %c0_i32 = arith.constant 0 : i32
    %c0_i32_0 = arith.constant 0 : i32
    %c0_i32_1 = arith.constant 0 : i32
    return %c0_i32, %c0_i32_0 : i32, i32
  }
  func.func @transform_4(%arg0: i32) -> (i32, i32) {
    %c0_i32 = arith.constant 0 : i32
    %c0_i32_0 = arith.constant 0 : i32
    %c0_i32_1 = arith.constant 0 : i32
    return %c0_i32, %c0_i32_0 : i32, i32
  }
  func.func @transform_5(%arg0: i32) -> (i32, i32) {
    %c0_i32 = arith.constant 0 : i32
    %c0_i32_0 = arith.constant 0 : i32
    %c0_i32_1 = arith.constant 0 : i32
    return %c0_i32, %c0_i32_0 : i32, i32
  }
  func.func @transform_6(%arg0: i32) -> (i32, i32) {
    %c0_i32 = arith.constant 0 : i32
    %c0_i32_0 = arith.constant 0 : i32
    %c0_i32_1 = arith.constant 0 : i32
    return %c0_i32, %c0_i32_0 : i32, i32
  }
  func.func @transform_7(%arg0: i32) -> (i32, i32) {
    %c0_i32 = arith.constant 0 : i32
    %c0_i32_0 = arith.constant 0 : i32
    %c0_i32_1 = arith.constant 0 : i32
    return %c0_i32, %c0_i32_0 : i32, i32
  }
  func.func @transform_8(%arg0: i32) -> (i32, i32) {
    %c0_i32 = arith.constant 0 : i32
    %c0_i32_0 = arith.constant 0 : i32
    %c0_i32_1 = arith.constant 0 : i32
    return %c0_i32, %c0_i32_0 : i32, i32
  }
  func.func @transform_9(%arg0: i32) -> (i32, i32) {
    %c0_i32 = arith.constant 0 : i32
    %c0_i32_0 = arith.constant 0 : i32
    %c0_i32_1 = arith.constant 0 : i32
    return %c0_i32, %c0_i32_0 : i32, i32
  }
  func.func @transform_10(%arg0: i32) -> (i32, i32) {
    %c0_i32 = arith.constant 0 : i32
    %c0_i32_0 = arith.constant 0 : i32
    %c0_i32_1 = arith.constant 0 : i32
    return %c0_i32, %c0_i32_0 : i32, i32
  }
  func.func @transform_11(%arg0: i32) -> (i32, i32) {
    %c0_i32 = arith.constant 0 : i32
    %c0_i32_0 = arith.constant 0 : i32
    %c0_i32_1 = arith.constant 0 : i32
    return %c0_i32, %c0_i32_0 : i32, i32
  }
  func.func @transform_12(%arg0: i32) -> (i32, i32) {
    %c0_i32 = arith.constant 0 : i32
    %c0_i32_0 = arith.constant 0 : i32
    %c0_i32_1 = arith.constant 0 : i32
    return %c0_i32, %c0_i32_0 : i32, i32
  }
  func.func @transform_13(%arg0: i32) -> (i32, i32, i32) {
    %c0_i32 = arith.constant 0 : i32
    %c0_i32_0 = arith.constant 0 : i32
    %c0_i32_1 = arith.constant 0 : i32
    %c0_i32_2 = arith.constant 0 : i32
    return %c0_i32, %c0_i32_0, %c0_i32_1 : i32, i32, i32
  }
  func.func @transform_14(%arg0: i32) -> (i32, i32) {
    %c0_i32 = arith.constant 0 : i32
    %c0_i32_0 = arith.constant 0 : i32
    %c0_i32_1 = arith.constant 0 : i32
    return %c0_i32, %c0_i32_0 : i32, i32
  }
  func.func @transform_15(%arg0: i32) -> (i32, i32) {
    %c0_i32 = arith.constant 0 : i32
    %c0_i32_0 = arith.constant 0 : i32
    %c0_i32_1 = arith.constant 0 : i32
    return %c0_i32, %c0_i32_0 : i32, i32
  }
  func.func @transform_16(%arg0: i32) -> (i32, i32) {
    %c0_i32 = arith.constant 0 : i32
    %c0_i32_0 = arith.constant 0 : i32
    %c0_i32_1 = arith.constant 0 : i32
    return %c0_i32, %c0_i32_0 : i32, i32
  }
}

</mosaic_0001>

<llo_original>
// kernel: tpu_custom_call.1
$region0: #{tpu_custom_call.1}
  #allocation0 [shape = 'u32[]', space=smem, size = 0x4, offset = 0x4, fixed_abs, tag = 'smem constant byte address 0x4 - core index']
  #allocation1 [shape = 'u32[144,128]{1,0:T(1,128)}', space=vmem, size = 0x12000, scoped, tag = 'internal scratch']
  %s0 = inlined_call_operand.hbm [shape: f32[4,32], index: 0, kind: input, shape index: {}]
  %s1 = inlined_call_operand.vmem [shape: f32[32,64], index: 1, kind: input, shape index: {}]
  %s2 = inlined_call_operand.vmem [shape: f32[1,64], index: 2, kind: input, shape index: {}]
  %s3 = inlined_call_operand.vmem [shape: f32[64,32], index: 3, kind: input, shape index: {}]
  %s4 = inlined_call_operand.hbm [shape: f32[1,32], index: 4, kind: input, shape index: {}]
  %s5 = inlined_call_operand.vmem [shape: f32[64,32], index: 5, kind: input, shape index: {}]
  %s6 = inlined_call_operand.hbm [shape: f32[1,32], index: 6, kind: input, shape index: {}]
  %s7 = inlined_call_operand.vmem [shape: f32[48,128], index: 7, kind: input, shape index: {}]
  %s8 = inlined_call_operand.hbm [shape: f32[1,128], index: 8, kind: input, shape index: {}]
  %s9 = inlined_call_operand.vmem [shape: f32[32,64], index: 9, kind: input, shape index: {}]
  %s10 = inlined_call_operand.hbm [shape: f32[1,64], index: 10, kind: input, shape index: {}]
  %s11 = inlined_call_operand.vmem [shape: f32[64,128], index: 11, kind: input, shape index: {}]
  %s12 = inlined_call_operand.hbm [shape: f32[1,128], index: 12, kind: input, shape index: {}]
  %s13 = inlined_call_operand.vmem [shape: f32[8,4,128], index: 13, kind: input, shape index: {}]
  %s14 = inlined_call_operand.hbm [shape: s32[4,8], index: 14, kind: output, shape index: {0}]
  %s15 = inlined_call_operand.hbm [shape: f32[4,8], index: 15, kind: output, shape index: {1}]
  %s16 = inlined_call_operand.hbm [shape: f32[4,8], index: 16, kind: output, shape index: {2}]
  %17 = xla_tuple %s14, %s15, %s16
  %s18 = sld [smem:[#allocation0]]
  $region106: #{tpu_custom_call.1} parent=0
    _
  %s20 = ssub.s32 1, %s18
  %s21 = scalar_select 0, %s20, %s18
  $region1: #{tpu_custom_call.1} parent=0
    #allocation2 [shape = 'u8[2048]{0}', space=vmem, size = 0x800, scoped, tag = 'input window, operand 0, single buffered']
    #allocation3 [shape = 's32[1]{0}', space=sflag, size = 0x4, scoped, tag = 'scoped memory for tpu_custom_call.1']
    #allocation4 [shape = 's32[1]{0}', space=sflag, size = 0x4, scoped, tag = 'scoped memory for tpu_custom_call.1']
    #allocation5 [shape = 'u8[512]{0}', space=vmem, size = 0x400, scoped, tag = 'input window, operand 4, single buffered']
    #allocation6 [shape = 's32[1]{0}', space=sflag, size = 0x4, scoped, tag = 'scoped memory for tpu_custom_call.1']
    #allocation7 [shape = 'u8[512]{0}', space=vmem, size = 0x400, scoped, tag = 'input window, operand 6, single buffered']
    #allocation8 [shape = 'u8[512]{0}', space=vmem, size = 0x400, scoped, tag = 'input window, operand 8, single buffered']
    #allocation9 [shape = 's32[1]{0}', space=sflag, size = 0x4, scoped, tag = 'scoped memory for tpu_custom_call.1']
    #allocation10 [shape = 'u8[512]{0}', space=vmem, size = 0x400, scoped, tag = 'input window, operand 10, single buffered']
    #allocation11 [shape = 'u8[512]{0}', space=vmem, size = 0x400, scoped, tag = 'input window, operand 12, single buffered']
    #allocation12 [shape = 's32[1]{0}', space=sflag, size = 0x4, scoped, tag = 'scoped memory for tpu_custom_call.1']
    #allocation13 [shape = 'u8[2048]{0}', space=vmem, size = 0x800, scoped, tag = 'output window, operand 0, single buffered']
    #allocation14 [shape = 'u8[2048]{0}', space=vmem, size = 0x800, scoped, tag = 'output window, operand 1, single buffered']
    #allocation15 [shape = 's32[1]{0}', space=sflag, size = 0x4, scoped, tag = 'scoped memory for tpu_custom_call.1']
    #allocation16 [shape = 'u8[2048]{0}', space=vmem, size = 0x800, scoped, tag = 'output window, operand 2, single buffered']
    %22 = vsyncpa [#allocation3], 0
    %23 = vsyncpa [#allocation6], 0
    %24 = vsyncpa [#allocation9], 0
    %25 = vsyncpa [#allocation12], 0
    %26 = vsyncpa [#allocation4], 0
    %27 = vsyncpa [#allocation15], 0
    // Predicated region
    $region2: #{tpu_custom_call.1} parent=1 // pred_check
      _
    $region3: #{tpu_custom_call.1} parent=1 // pred_check_branch
      %29 = sbr.rel (0) target = $region5
    $region4: #{tpu_custom_call.1} parent=1 // pred_region
      %s31 = ssub.s32 64, 64
      %32 = vsyncadd [#allocation3], %s31
      %s34 = sshll.u32 [#allocation2], 4
      %s35 = int_to_ptr.vmem [resolvable:$true] %s34
      %37 = dma.hbm_to_vmem [thread:$0]  %s0, 64, %s35, [#allocation3]
    $region5: #{tpu_custom_call.1} parent=1 // pred_fallthru
      _
    // Predicated region
    $region6: #{tpu_custom_call.1} parent=1 // pred_check
      _
    $region7: #{tpu_custom_call.1} parent=1 // pred_check_branch
      %39 = sbr.rel (0) target = $region9
    $region8: #{tpu_custom_call.1} parent=1 // pred_region
      _
    $region9: #{tpu_custom_call.1} parent=1 // pred_fallthru
      _
    // Predicated region
    $region10: #{tpu_custom_call.1} parent=1 // pred_check
      _
    $region11: #{tpu_custom_call.1} parent=1 // pred_check_branch
      %41 = sbr.rel (0) target = $region13
    $region12: #{tpu_custom_call.1} parent=1 // pred_region
      _
    $region13: #{tpu_custom_call.1} parent=1 // pred_fallthru
      _
    // Predicated region
    $region14: #{tpu_custom_call.1} parent=1 // pred_check
      _
    $region15: #{tpu_custom_call.1} parent=1 // pred_check_branch
      %43 = sbr.rel (0) target = $region17
    $region16: #{tpu_custom_call.1} parent=1 // pred_region
      _
    $region17: #{tpu_custom_call.1} parent=1 // pred_fallthru
      _
    // Predicated region
    $region18: #{tpu_custom_call.1} parent=1 // pred_check
      _
    $region19: #{tpu_custom_call.1} parent=1 // pred_check_branch
      %45 = sbr.rel (0) target = $region21
    $region20: #{tpu_custom_call.1} parent=1 // pred_region
      %s47 = ssub.s32 16, 16
      %48 = vsyncadd [#allocation6], %s47
      %s50 = sshll.u32 [#allocation5], 4
      %s51 = int_to_ptr.vmem [resolvable:$true] %s50
      %53 = dma.hbm_to_vmem [thread:$0]  %s4, 16, %s51, [#allocation6]
    $region21: #{tpu_custom_call.1} parent=1 // pred_fallthru
      _
    // Predicated region
    $region22: #{tpu_custom_call.1} parent=1 // pred_check
      _
    $region23: #{tpu_custom_call.1} parent=1 // pred_check_branch
      %55 = sbr.rel (0) target = $region25
    $region24: #{tpu_custom_call.1} parent=1 // pred_region
      _
    $region25: #{tpu_custom_call.1} parent=1 // pred_fallthru
      _
    // Predicated region
    $region26: #{tpu_custom_call.1} parent=1 // pred_check
      _
    $region27: #{tpu_custom_call.1} parent=1 // pred_check_branch
      %57 = sbr.rel (0) target = $region29
    $region28: #{tpu_custom_call.1} parent=1 // pred_region
      %s59 = ssub.s32 16, 16
      %60 = vsyncadd [#allocation6], %s59
      %s62 = sshll.u32 [#allocation7], 4
      %s63 = int_to_ptr.vmem [resolvable:$true] %s62
      %65 = dma.hbm_to_vmem [thread:$0]  %s6, 16, %s63, [#allocation6]
    $region29: #{tpu_custom_call.1} parent=1 // pred_fallthru
      _
    // Predicated region
    $region30: #{tpu_custom_call.1} parent=1 // pred_check
      _
    $region31: #{tpu_custom_call.1} parent=1 // pred_check_branch
      %67 = sbr.rel (0) target = $region33
    $region32: #{tpu_custom_call.1} parent=1 // pred_region
      _
    $region33: #{tpu_custom_call.1} parent=1 // pred_fallthru
      _
    // Predicated region
    $region34: #{tpu_custom_call.1} parent=1 // pred_check
      _
    $region35: #{tpu_custom_call.1} parent=1 // pred_check_branch
      %69 = sbr.rel (0) target = $region37
    $region36: #{tpu_custom_call.1} parent=1 // pred_region
      %s71 = ssub.s32 16, 16
      %72 = vsyncadd [#allocation9], %s71
      %s74 = sshll.u32 [#allocation8], 4
      %s75 = int_to_ptr.vmem [resolvable:$true] %s74
      %77 = dma.hbm_to_vmem [thread:$0]  %s8, 16, %s75, [#allocation9]
    $region37: #{tpu_custom_call.1} parent=1 // pred_fallthru
      _
    // Predicated region
    $region38: #{tpu_custom_call.1} parent=1 // pred_check
      _
    $region39: #{tpu_custom_call.1} parent=1 // pred_check_branch
      %79 = sbr.rel (0) target = $region41
    $region40: #{tpu_custom_call.1} parent=1 // pred_region
      _
    $region41: #{tpu_custom_call.1} parent=1 // pred_fallthru
      _
    // Predicated region
    $region42: #{tpu_custom_call.1} parent=1 // pred_check
      _
    $region43: #{tpu_custom_call.1} parent=1 // pred_check_branch
      %81 = sbr.rel (0) target = $region45
    $region44: #{tpu_custom_call.1} parent=1 // pred_region
      %s83 = ssub.s32 16, 16
      %84 = vsyncadd [#allocation9], %s83
      %s86 = sshll.u32 [#allocation10], 4
      %s87 = int_to_ptr.vmem [resolvable:$true] %s86
      %89 = dma.hbm_to_vmem [thread:$0]  %s10, 16, %s87, [#allocation9]
    $region45: #{tpu_custom_call.1} parent=1 // pred_fallthru
      _
    // Predicated region
    $region46: #{tpu_custom_call.1} parent=1 // pred_check
      _
    $region47: #{tpu_custom_call.1} parent=1 // pred_check_branch
      %91 = sbr.rel (0) target = $region49
    $region48: #{tpu_custom_call.1} parent=1 // pred_region
      _
    $region49: #{tpu_custom_call.1} parent=1 // pred_fallthru
      _
    // Predicated region
    $region50: #{tpu_custom_call.1} parent=1 // pred_check
      _
    $region51: #{tpu_custom_call.1} parent=1 // pred_check_branch
      %93 = sbr.rel (0) target = $region53
    $region52: #{tpu_custom_call.1} parent=1 // pred_region
      %s95 = ssub.s32 16, 16
      %96 = vsyncadd [#allocation12], %s95
      %s98 = sshll.u32 [#allocation11], 4
      %s99 = int_to_ptr.vmem [resolvable:$true] %s98
      %101 = dma.hbm_to_vmem [thread:$0]  %s12, 16, %s99, [#allocation12]
    $region53: #{tpu_custom_call.1} parent=1 // pred_fallthru
      _
    // Predicated region
    $region54: #{tpu_custom_call.1} parent=1 // pred_check
      _
    $region55: #{tpu_custom_call.1} parent=1 // pred_check_branch
      %103 = sbr.rel (0) target = $region57
    $region56: #{tpu_custom_call.1} parent=1 // pred_region
      _
    $region57: #{tpu_custom_call.1} parent=1 // pred_fallthru
      _
    // Predicated region
    $region58: #{tpu_custom_call.1} parent=1 // pred_check
      _
    $region59: #{tpu_custom_call.1} parent=1 // pred_check_branch
      %105 = sbr.rel (0) target = $region61
    $region60: #{tpu_custom_call.1} parent=1 // pred_region
      %106 = dma.done [#allocation3], 64
    $region61: #{tpu_custom_call.1} parent=1 // pred_fallthru
      _
    // Predicated region
    $region62: #{tpu_custom_call.1} parent=1 // pred_check
      _
    $region63: #{tpu_custom_call.1} parent=1 // pred_check_branch
      %108 = sbr.rel (0) target = $region65
    $region64: #{tpu_custom_call.1} parent=1 // pred_region
      %109 = dma.done [#allocation6], 16
    $region65: #{tpu_custom_call.1} parent=1 // pred_fallthru
      _
    // Predicated region
    $region66: #{tpu_custom_call.1} parent=1 // pred_check
      _
    $region67: #{tpu_custom_call.1} parent=1 // pred_check_branch
      %111 = sbr.rel (0) target = $region69
    $region68: #{tpu_custom_call.1} parent=1 // pred_region
      %112 = dma.done [#allocation6], 16
    $region69: #{tpu_custom_call.1} parent=1 // pred_fallthru
      _
    // Predicated region
    $region70: #{tpu_custom_call.1} parent=1 // pred_check
      _
    $region71: #{tpu_custom_call.1} parent=1 // pred_check_branch
      %114 = sbr.rel (0) target = $region73
    $region72: #{tpu_custom_call.1} parent=1 // pred_region
      %115 = dma.done [#allocation9], 16
    $region73: #{tpu_custom_call.1} parent=1 // pred_fallthru
      _
    // Predicated region
    $region74: #{tpu_custom_call.1} parent=1 // pred_check
      _
    $region75: #{tpu_custom_call.1} parent=1 // pred_check_branch
      %117 = sbr.rel (0) target = $region77
    $region76: #{tpu_custom_call.1} parent=1 // pred_region
      %118 = dma.done [#allocation9], 16
    $region77: #{tpu_custom_call.1} parent=1 // pred_fallthru
      _
    // Predicated region
    $region78: #{tpu_custom_call.1} parent=1 // pred_check
      _
    $region79: #{tpu_custom_call.1} parent=1 // pred_check_branch
      %120 = sbr.rel (0) target = $region81
    $region80: #{tpu_custom_call.1} parent=1 // pred_region
      %121 = dma.done [#allocation12], 16
    $region81: #{tpu_custom_call.1} parent=1 // pred_fallthru
      _
    %v122 = vld [vmem:[#allocation2] sm:$0xf]
    %v123 = vld [vmem:[%s1] sm:$0xff]
    %v124 = vld [vmem:[%s1 + $0x8] sm:$0xff]
    %v125 = vld [vmem:[%s1 + $0x10] sm:$0xff]
    %v126 = vld [vmem:[%s1 + $0x18] sm:$0xff]
    %v127 = vld [vmem:[%s2] sm:$0x1]
    %v129 = vlaneseq
    %v130 = vshrl.u32 %v129, 7
    %v131 = vsub.s32 0, %v130
    %v132 = vrot.slane %v127, %v131
    %vm134 = vcmask 261120
    %v136 = vsel %vm134, %v122, 0
    %138 = vmatprep.subr.mxu0 0.0
    %139 = vmatpush1.msra.mxu0 %v123
    %140 = vmatprep.subr.mxu0 0.0
    %141 = vmatpush1.msra.mxu0 %v124
    %142 = vmatprep.subr.mxu0 0.0
    %143 = vmatpush1.msra.mxu0 %v125
    %144 = vmatprep.subr.mxu0 0.0
    %145 = vmatpush1.msra.mxu0 %v126
    %146 = vmatprep.subr.mxu0 0.0
    %147 = vmatpush1.msra.mxu0 0.0
    %148 = vmatprep.subr.mxu0 0.0
    %149 = vmatpush1.msra.mxu0 0.0
    %150 = vmatprep.subr.mxu0 0.0
    %151 = vmatpush1.msra.mxu0 0.0
    %152 = vmatprep.subr.mxu0 0.0
    %153 = vmatpush1.msra.mxu0 0.0
    %154 = vmatprep.subr.mxu0 0.0
    %155 = vmatpush1.msra.mxu0 0.0
    %156 = vmatprep.subr.mxu0 0.0
    %157 = vmatpush1.msra.mxu0 0.0
    %158 = vmatprep.subr.mxu0 0.0
    %159 = vmatpush1.msra.mxu0 0.0
    %160 = vmatprep.subr.mxu0 0.0
    %161 = vmatpush1.msra.mxu0 0.0
    %162 = vmatprep.subr.mxu0 0.0
    %163 = vmatpush1.msra.mxu0 0.0
    %164 = vmatprep.subr.mxu0 0.0
    %165 = vmatpush1.msra.mxu0 0.0
    %166 = vmatprep.subr.mxu0 0.0
    %167 = vmatpush1.msra.mxu0 0.0
    %168 = vmatprep.subr.mxu0 0.0
    %169 = vmatpush1.msra.mxu0 0.0
    %170 = vmatprep.subr.mxu0 0.0
    %171 = vmatpush1.msra.mxu0 0.0
    %172 = vmatprep.subr.mxu0 0.0
    %173 = vmatpush1.msra.mxu0 0.0
    %174 = vmatprep.subr.mxu0 0.0
    %175 = vmatpush1.msra.mxu0 0.0
    %176 = vmatprep.subr.mxu0 0.0
    %177 = vmatpush1.msra.mxu0 0.0
    %178 = vmatprep.subr.mxu0 0.0
    %179 = vmatpush1.msra.mxu0 0.0
    %180 = vmatprep.subr.mxu0 0.0
    %181 = vmatpush1.msra.mxu0 0.0
    %182 = vmatprep.subr.mxu0 0.0
    %183 = vmatpush1.msra.mxu0 0.0
    %184 = vmatprep.subr.mxu0 0.0
    %185 = vmatpush1.msra.mxu0 0.0
    %186 = vmatprep.subr.mxu0 0.0
    %187 = vmatpush1.msra.mxu0 0.0
    %188 = vmatprep.subr.mxu0 0.0
    %189 = vmatpush1.msra.mxu0 0.0
    %190 = vmatprep.subr.mxu0 0.0
    %191 = vmatpush1.msra.mxu0 0.0
    %192 = vmatprep.subr.mxu0 0.0
    %193 = vmatpush1.msra.mxu0 0.0
    %194 = vmatprep.subr.mxu0 0.0
    %195 = vmatpush1.msra.mxu0 0.0
    %196 = vmatprep.subr.mxu0 0.0
    %197 = vmatpush1.msra.mxu0 0.0
    %198 = vmatprep.subr.mxu0 0.0
    %199 = vmatpush1.msra.mxu0 0.0
    %200 = vmatprep.subr.mxu0 0.0
    %201 = vmatpush1.msra.mxu0 0.0
    %202 = vmatprep.mubr.f32.mxu0 0.0
    %203 = vmatmul.mubr.f32.gmra.mrb[0].mxu0 %v136
    %v204 = vpop.f32.mrb[0].mxu0
    %v205 = vadd.f32 %v132, %v204
    %v206 = vpop.f32.mrb[0].mxu0
    %207 = vdwg.mxu0
    %v208 = vmax.f32 %v205, 0.0
    %v209 = vld [vmem:[%s3] sm:$0xff]
    %v210 = vld [vmem:[%s3 + $0x8] sm:$0xff]
    %v211 = vld [vmem:[%s3 + $0x10] sm:$0xff]
    %v212 = vld [vmem:[%s3 + $0x18] sm:$0xff]
    %v213 = vld [vmem:[%s3 + $0x20] sm:$0xff]
    %v214 = vld [vmem:[%s3 + $0x28] sm:$0xff]
    %v215 = vld [vmem:[%s3 + $0x30] sm:$0xff]
    %v216 = vld [vmem:[%s3 + $0x38] sm:$0xff]
    %v217 = vld [vmem:[#allocation5] sm:$0x1]
    %v219 = vlaneseq
    %v220 = vshrl.u32 %v219, 7
    %v221 = vsub.s32 0, %v220
    %v222 = vrot.slane %v217, %v221
    %vm224 = vcmask 523264
    %v226 = vsel %vm224, %v208, 0
    %228 = vmatprep.subr.mxu0 0.0
    %229 = vmatpush1.msra.mxu0 %v209
    %230 = vmatprep.subr.mxu0 0.0
    %231 = vmatpush1.msra.mxu0 %v210
    %232 = vmatprep.subr.mxu0 0.0
    %233 = vmatpush1.msra.mxu0 %v211
    %234 = vmatprep.subr.mxu0 0.0
    %235 = vmatpush1.msra.mxu0 %v212
    %236 = vmatprep.subr.mxu0 0.0
    %237 = vmatpush1.msra.mxu0 %v213
    %238 = vmatprep.subr.mxu0 0.0
    %239 = vmatpush1.msra.mxu0 %v214
    %240 = vmatprep.subr.mxu0 0.0
    %241 = vmatpush1.msra.mxu0 %v215
    %242 = vmatprep.subr.mxu0 0.0
    %243 = vmatpush1.msra.mxu0 %v216
    %244 = vmatprep.subr.mxu0 0.0
    %245 = vmatpush1.msra.mxu0 0.0
    %246 = vmatprep.subr.mxu0 0.0
    %247 = vmatpush1.msra.mxu0 0.0
    %248 = vmatprep.subr.mxu0 0.0
    %249 = vmatpush1.msra.mxu0 0.0
    %250 = vmatprep.subr.mxu0 0.0
    %251 = vmatpush1.msra.mxu0 0.0
    %252 = vmatprep.subr.mxu0 0.0
    %253 = vmatpush1.msra.mxu0 0.0
    %254 = vmatprep.subr.mxu0 0.0
    %255 = vmatpush1.msra.mxu0 0.0
    %256 = vmatprep.subr.mxu0 0.0
    %257 = vmatpush1.msra.mxu0 0.0
    %258 = vmatprep.subr.mxu0 0.0
    %259 = vmatpush1.msra.mxu0 0.0
    %260 = vmatprep.subr.mxu0 0.0
    %261 = vmatpush1.msra.mxu0 0.0
    %262 = vmatprep.subr.mxu0 0.0
    %263 = vmatpush1.msra.mxu0 0.0
    %264 = vmatprep.subr.mxu0 0.0
    %265 = vmatpush1.msra.mxu0 0.0
    %266 = vmatprep.subr.mxu0 0.0
    %267 = vmatpush1.msra.mxu0 0.0
    %268 = vmatprep.subr.mxu0 0.0
    %269 = vmatpush1.msra.mxu0 0.0
    %270 = vmatprep.subr.mxu0 0.0
    %271 = vmatpush1.msra.mxu0 0.0
    %272 = vmatprep.subr.mxu0 0.0
    %273 = vmatpush1.msra.mxu0 0.0
    %274 = vmatprep.subr.mxu0 0.0
    %275 = vmatpush1.msra.mxu0 0.0
    %276 = vmatprep.subr.mxu0 0.0
    %277 = vmatpush1.msra.mxu0 0.0
    %278 = vmatprep.subr.mxu0 0.0
    %279 = vmatpush1.msra.mxu0 0.0
    %280 = vmatprep.subr.mxu0 0.0
    %281 = vmatpush1.msra.mxu0 0.0
    %282 = vmatprep.subr.mxu0 0.0
    %283 = vmatpush1.msra.mxu0 0.0
    %284 = vmatprep.subr.mxu0 0.0
    %285 = vmatpush1.msra.mxu0 0.0
    %286 = vmatprep.subr.mxu0 0.0
    %287 = vmatpush1.msra.mxu0 0.0
    %288 = vmatprep.subr.mxu0 0.0
    %289 = vmatpush1.msra.mxu0 0.0
    %290 = vmatprep.subr.mxu0 0.0
    %291 = vmatpush1.msra.mxu0 0.0
    %292 = vmatprep.mubr.f32.mxu0 0.0
    %293 = vmatmul.mubr.f32.gmra.mrb[0].mxu0 %v226
    %v294 = vpop.f32.mrb[0].mxu0
    %v295 = vadd.f32 %v222, %v294
    %v296 = vpop.f32.mrb[0].mxu0
    %297 = vdwg.mxu0
    %vm298 = vcmp.gt.f32.partialorder %v295, 0.0
    %v299 = vmin.f32 %v295, 0.0
    %v300 = vmul.f32 %v299, 1.442695
    %v301 = vpow.pop %v300
    %v302 = vsub.f32 %v301, 1.0
    %v303 = vmul.f32 %v302, 0.1
    %v304 = vsel %vm298, %v295, %v303
    %v305 = vld [vmem:[%s5] sm:$0xff]
    %v306 = vld [vmem:[%s5 + $0x8] sm:$0xff]
    %v307 = vld [vmem:[%s5 + $0x10] sm:$0xff]
    %v308 = vld [vmem:[%s5 + $0x18] sm:$0xff]
    %v309 = vld [vmem:[%s5 + $0x20] sm:$0xff]
    %v310 = vld [vmem:[%s5 + $0x28] sm:$0xff]
    %v311 = vld [vmem:[%s5 + $0x30] sm:$0xff]
    %v312 = vld [vmem:[%s5 + $0x38] sm:$0xff]
    %v313 = vld [vmem:[#allocation7] sm:$0x1]
    %v315 = vlaneseq
    %v316 = vshrl.u32 %v315, 7
    %v317 = vsub.s32 0, %v316
    %v318 = vrot.slane %v313, %v317
    %320 = vmatprep.subr.mxu0 0.0
    %321 = vmatpush1.msra.mxu0 %v305
    %322 = vmatprep.subr.mxu0 0.0
    %323 = vmatpush1.msra.mxu0 %v306
    %324 = vmatprep.subr.mxu0 0.0
    %325 = vmatpush1.msra.mxu0 %v307
    %326 = vmatprep.subr.mxu0 0.0
    %327 = vmatpush1.msra.mxu0 %v308
    %328 = vmatprep.subr.mxu0 0.0
    %329 = vmatpush1.msra.mxu0 %v309
    %330 = vmatprep.subr.mxu0 0.0
    %331 = vmatpush1.msra.mxu0 %v310
    %332 = vmatprep.subr.mxu0 0.0
    %333 = vmatpush1.msra.mxu0 %v311
    %334 = vmatprep.subr.mxu0 0.0
    %335 = vmatpush1.msra.mxu0 %v312
    %336 = vmatprep.subr.mxu0 0.0
    %337 = vmatpush1.msra.mxu0 0.0
    %338 = vmatprep.subr.mxu0 0.0
    %339 = vmatpush1.msra.mxu0 0.0
    %340 = vmatprep.subr.mxu0 0.0
    %341 = vmatpush1.msra.mxu0 0.0
    %342 = vmatprep.subr.mxu0 0.0
    %343 = vmatpush1.msra.mxu0 0.0
    %344 = vmatprep.subr.mxu0 0.0
    %345 = vmatpush1.msra.mxu0 0.0
    %346 = vmatprep.subr.mxu0 0.0
    %347 = vmatpush1.msra.mxu0 0.0
    %348 = vmatprep.subr.mxu0 0.0
    %349 = vmatpush1.msra.mxu0 0.0
    %350 = vmatprep.subr.mxu0 0.0
    %351 = vmatpush1.msra.mxu0 0.0
    %352 = vmatprep.subr.mxu0 0.0
    %353 = vmatpush1.msra.mxu0 0.0
    %354 = vmatprep.subr.mxu0 0.0
    %355 = vmatpush1.msra.mxu0 0.0
    %356 = vmatprep.subr.mxu0 0.0
    %357 = vmatpush1.msra.mxu0 0.0
    %358 = vmatprep.subr.mxu0 0.0
    %359 = vmatpush1.msra.mxu0 0.0
    %360 = vmatprep.subr.mxu0 0.0
    %361 = vmatpush1.msra.mxu0 0.0
    %362 = vmatprep.subr.mxu0 0.0
    %363 = vmatpush1.msra.mxu0 0.0
    %364 = vmatprep.subr.mxu0 0.0
    %365 = vmatpush1.msra.mxu0 0.0
    %366 = vmatprep.subr.mxu0 0.0
    %367 = vmatpush1.msra.mxu0 0.0
    %368 = vmatprep.subr.mxu0 0.0
    %369 = vmatpush1.msra.mxu0 0.0
    %370 = vmatprep.subr.mxu0 0.0
    %371 = vmatpush1.msra.mxu0 0.0
    %372 = vmatprep.subr.mxu0 0.0
    %373 = vmatpush1.msra.mxu0 0.0
    %374 = vmatprep.subr.mxu0 0.0
    %375 = vmatpush1.msra.mxu0 0.0
    %376 = vmatprep.subr.mxu0 0.0
    %377 = vmatpush1.msra.mxu0 0.0
    %378 = vmatprep.subr.mxu0 0.0
    %379 = vmatpush1.msra.mxu0 0.0
    %380 = vmatprep.subr.mxu0 0.0
    %381 = vmatpush1.msra.mxu0 0.0
    %382 = vmatprep.subr.mxu0 0.0
    %383 = vmatpush1.msra.mxu0 0.0
    %384 = vmatprep.mubr.f32.mxu0 0.0
    %385 = vmatmul.mubr.f32.gmra.mrb[0].mxu0 %v226
    %v386 = vpop.f32.mrb[0].mxu0
    %v387 = vadd.f32 %v318, %v386
    %v388 = vpop.f32.mrb[0].mxu0
    %389 = vdwg.mxu0
    %vm390 = vcmp.gt.f32.partialorder %v387, 0.0
    %v391 = vmin.f32 %v387, 0.0
    %v392 = vmul.f32 %v391, 1.442695
    %v393 = vpow.pop %v392
    %v394 = vsub.f32 %v393, 1.0
    %v395 = vmul.f32 %v394, 0.1
    %v396 = vsel %vm390, %v387, %v395
    %v397 = vld [vmem:[%s7] sm:$0xff]
    %v398 = vld [vmem:[%s7 + $0x8] sm:$0xff]
    %v399 = vld [vmem:[%s7 + $0x10] sm:$0xff]
    %v400 = vld [vmem:[%s7 + $0x18] sm:$0xff]
    %v401 = vld [vmem:[%s7 + $0x20] sm:$0xff]
    %v402 = vld [vmem:[%s7 + $0x28] sm:$0xff]
    %v403 = vld [vmem:[#allocation8] sm:$0x1]
    %v405 = vlaneseq
    %v406 = vshrl.u32 %v405, 7
    %v407 = vsub.s32 0, %v406
    %v408 = vrot.slane %v403, %v407
    %v410 = vld [vmem:[%s9] sm:$0xff]
    %v411 = vld [vmem:[%s9 + $0x8] sm:$0xff]
    %v412 = vld [vmem:[%s9 + $0x10] sm:$0xff]
    %v413 = vld [vmem:[%s9 + $0x18] sm:$0xff]
    %v414 = vld [vmem:[#allocation10] sm:$0x1]
    %v416 = vlaneseq
    %v417 = vshrl.u32 %v416, 7
    %v418 = vsub.s32 0, %v417
    %v419 = vrot.slane %v414, %v418
    %v421 = vld [vmem:[%s11] sm:$0xff]
    %v422 = vld [vmem:[%s11 + $0x8] sm:$0xff]
    %v423 = vld [vmem:[%s11 + $0x10] sm:$0xff]
    %v424 = vld [vmem:[%s11 + $0x18] sm:$0xff]
    %v425 = vld [vmem:[%s11 + $0x20] sm:$0xff]
    %v426 = vld [vmem:[%s11 + $0x28] sm:$0xff]
    %v427 = vld [vmem:[%s11 + $0x30] sm:$0xff]
    %v428 = vld [vmem:[%s11 + $0x38] sm:$0xff]
    %v429 = vld [vmem:[#allocation11] sm:$0x1]
    %v431 = vlaneseq
    %v432 = vshrl.u32 %v431, 7
    %v433 = vsub.s32 0, %v432
    %v434 = vrot.slane %v429, %v433
    %v436 = vlaneseq
    %v437 = vand.u32 %v436, 127
    %vm438 = vcmp.eq.s32.totalorder %v437, 15
    %v439 = vsel %vm438, 1, 0
    %v440 = vcvt.s32.f32 %v439
    %442 = vrot.lane.b32.xlu0 %v304, 16
    %v443 = vpop.permute.xlu0 %442
    %vm445 = vcmask 130048
    %v446 = vsel %vm445, %v440, %v443
    %vm447 = vcmask 392192
    %v449 = vsel %vm447, %v446, 0
    %451 = vmatprep.subr.mxu0 0.0
    %452 = vmatpush1.msra.mxu0 %v397
    %453 = vmatprep.subr.mxu0 0.0
    %454 = vmatpush1.msra.mxu0 %v398
    %455 = vmatprep.subr.mxu0 0.0
    %456 = vmatpush1.msra.mxu0 %v399
    %457 = vmatprep.subr.mxu0 0.0
    %458 = vmatpush1.msra.mxu0 %v400
    %459 = vmatprep.subr.mxu0 0.0
    %460 = vmatpush1.msra.mxu0 %v401
    %461 = vmatprep.subr.mxu0 0.0
    %462 = vmatpush1.msra.mxu0 %v402
    %463 = vmatprep.subr.mxu0 0.0
    %464 = vmatpush1.msra.mxu0 0.0
    %465 = vmatprep.subr.mxu0 0.0
    %466 = vmatpush1.msra.mxu0 0.0
    %467 = vmatprep.subr.mxu0 0.0
    %468 = vmatpush1.msra.mxu0 0.0
    %469 = vmatprep.subr.mxu0 0.0
    %470 = vmatpush1.msra.mxu0 0.0
    %471 = vmatprep.subr.mxu0 0.0
    %472 = vmatpush1.msra.mxu0 0.0
    %473 = vmatprep.subr.mxu0 0.0
    %474 = vmatpush1.msra.mxu0 0.0
    %475 = vmatprep.subr.mxu0 0.0
    %476 = vmatpush1.msra.mxu0 0.0
    %477 = vmatprep.subr.mxu0 0.0
    %478 = vmatpush1.msra.mxu0 0.0
    %479 = vmatprep.subr.mxu0 0.0
    %480 = vmatpush1.msra.mxu0 0.0
    %481 = vmatprep.subr.mxu0 0.0
    %482 = vmatpush1.msra.mxu0 0.0
    %483 = vmatprep.subr.mxu0 0.0
    %484 = vmatpush1.msra.mxu0 0.0
    %485 = vmatprep.subr.mxu0 0.0
    %486 = vmatpush1.msra.mxu0 0.0
    %487 = vmatprep.subr.mxu0 0.0
    %488 = vmatpush1.msra.mxu0 0.0
    %489 = vmatprep.subr.mxu0 0.0
    %490 = vmatpush1.msra.mxu0 0.0
    %491 = vmatprep.subr.mxu0 0.0
    %492 = vmatpush1.msra.mxu0 0.0
    %493 = vmatprep.subr.mxu0 0.0
    %494 = vmatpush1.msra.mxu0 0.0
    %495 = vmatprep.subr.mxu0 0.0
    %496 = vmatpush1.msra.mxu0 0.0
    %497 = vmatprep.subr.mxu0 0.0
    %498 = vmatpush1.msra.mxu0 0.0
    %499 = vmatprep.subr.mxu0 0.0
    %500 = vmatpush1.msra.mxu0 0.0
    %501 = vmatprep.subr.mxu0 0.0
    %502 = vmatpush1.msra.mxu0 0.0
    %503 = vmatprep.subr.mxu0 0.0
    %504 = vmatpush1.msra.mxu0 0.0
    %505 = vmatprep.subr.mxu0 0.0
    %506 = vmatpush1.msra.mxu0 0.0
    %507 = vmatprep.subr.mxu0 0.0
    %508 = vmatpush1.msra.mxu0 0.0
    %509 = vmatprep.subr.mxu0 0.0
    %510 = vmatpush1.msra.mxu0 0.0
    %511 = vmatprep.subr.mxu0 0.0
    %512 = vmatpush1.msra.mxu0 0.0
    %513 = vmatprep.subr.mxu0 0.0
    %514 = vmatpush1.msra.mxu0 0.0
    %515 = vmatprep.mubr.f32.mxu0 0.0
    %516 = vmatmul.mubr.f32.gmra.mrb[0].mxu0 %v449
    %v517 = vpop.f32.mrb[0].mxu0
    %v518 = vadd.f32 %v408, %v517
    %v519 = vpop.f32.mrb[0].mxu0
    %520 = vdwg.mxu0
    %v521 = vxor.u32 %v518, 2147483648
    %v522 = vmul.f32 %v521, 1.442695
    %v523 = vpow.pop %v522
    %v524 = vadd.f32 %v523, 1.0
    %v525 = vrcp.pop %v524
    %v526 = vmul.f32 1.0, %v525
    %v527 = vtanh.pop %v518
    %529 = vrot.lane.b32.xlu0 %v396, 32
    %v530 = vpop.permute.xlu0 %529
    %v532 = vmul.f32 %v526, %v530
    %534 = vrot.lane.b32.xlu0 %v527, 64
    %v535 = vpop.permute.xlu0 %534
    %v537 = vmul.f32 %v526, %v535
    %539 = vrot.lane.b32.xlu0 %v537, 32
    %v540 = vpop.permute.xlu0 %539
    %v542 = vadd.f32 %v532, %v540
    %v543 = vtanh.pop %v542
    %545 = vrot.lane.b32.xlu0 %v543, 64
    %v546 = vpop.permute.xlu0 %545
    %v548 = vmul.f32 %v526, %v546
    %v549 = vmax.f32 %v548, 0.0
    %551 = vrot.lane.b32.xlu0 %v549, 32
    %v552 = vpop.permute.xlu0 %551
    %v553 = vsel %vm134, %v552, 0
    %555 = vmatprep.subr.mxu0 0.0
    %556 = vmatpush1.msra.mxu0 %v410
    %557 = vmatprep.subr.mxu0 0.0
    %558 = vmatpush1.msra.mxu0 %v411
    %559 = vmatprep.subr.mxu0 0.0
    %560 = vmatpush1.msra.mxu0 %v412
    %561 = vmatprep.subr.mxu0 0.0
    %562 = vmatpush1.msra.mxu0 %v413
    %563 = vmatprep.subr.mxu0 0.0
    %564 = vmatpush1.msra.mxu0 0.0
    %565 = vmatprep.subr.mxu0 0.0
    %566 = vmatpush1.msra.mxu0 0.0
    %567 = vmatprep.subr.mxu0 0.0
    %568 = vmatpush1.msra.mxu0 0.0
    %569 = vmatprep.subr.mxu0 0.0
    %570 = vmatpush1.msra.mxu0 0.0
    %571 = vmatprep.subr.mxu0 0.0
    %572 = vmatpush1.msra.mxu0 0.0
    %573 = vmatprep.subr.mxu0 0.0
    %574 = vmatpush1.msra.mxu0 0.0
    %575 = vmatprep.subr.mxu0 0.0
    %576 = vmatpush1.msra.mxu0 0.0
    %577 = vmatprep.subr.mxu0 0.0
    %578 = vmatpush1.msra.mxu0 0.0
    %579 = vmatprep.subr.mxu0 0.0
    %580 = vmatpush1.msra.mxu0 0.0
    %581 = vmatprep.subr.mxu0 0.0
    %582 = vmatpush1.msra.mxu0 0.0
    %583 = vmatprep.subr.mxu0 0.0
    %584 = vmatpush1.msra.mxu0 0.0
    %585 = vmatprep.subr.mxu0 0.0
    %586 = vmatpush1.msra.mxu0 0.0
    %587 = vmatprep.subr.mxu0 0.0
    %588 = vmatpush1.msra.mxu0 0.0
    %589 = vmatprep.subr.mxu0 0.0
    %590 = vmatpush1.msra.mxu0 0.0
    %591 = vmatprep.subr.mxu0 0.0
    %592 = vmatpush1.msra.mxu0 0.0
    %593 = vmatprep.subr.mxu0 0.0
    %594 = vmatpush1.msra.mxu0 0.0
    %595 = vmatprep.subr.mxu0 0.0
    %596 = vmatpush1.msra.mxu0 0.0
    %597 = vmatprep.subr.mxu0 0.0
    %598 = vmatpush1.msra.mxu0 0.0
    %599 = vmatprep.subr.mxu0 0.0
    %600 = vmatpush1.msra.mxu0 0.0
    %601 = vmatprep.subr.mxu0 0.0
    %602 = vmatpush1.msra.mxu0 0.0
    %603 = vmatprep.subr.mxu0 0.0
    %604 = vmatpush1.msra.mxu0 0.0
    %605 = vmatprep.subr.mxu0 0.0
    %606 = vmatpush1.msra.mxu0 0.0
    %607 = vmatprep.subr.mxu0 0.0
    %608 = vmatpush1.msra.mxu0 0.0
    %609 = vmatprep.subr.mxu0 0.0
    %610 = vmatpush1.msra.mxu0 0.0
    %611 = vmatprep.subr.mxu0 0.0
    %612 = vmatpush1.msra.mxu0 0.0
    %613 = vmatprep.subr.mxu0 0.0
    %614 = vmatpush1.msra.mxu0 0.0
    %615 = vmatprep.subr.mxu0 0.0
    %616 = vmatpush1.msra.mxu0 0.0
    %617 = vmatprep.subr.mxu0 0.0
    %618 = vmatpush1.msra.mxu0 0.0
    %619 = vmatprep.mubr.f32.mxu0 0.0
    %620 = vmatmul.mubr.f32.gmra.mrb[0].mxu0 %v553
    %v621 = vpop.f32.mrb[0].mxu0
    %v622 = vadd.f32 %v419, %v621
    %v623 = vpop.f32.mrb[0].mxu0
    %624 = vdwg.mxu0
    %v625 = vmax.f32 %v622, 0.0
    %v627 = vsel %vm224, %v625, 0
    %629 = vmatprep.subr.mxu0 0.0
    %630 = vmatpush1.msra.mxu0 %v421
    %631 = vmatprep.subr.mxu0 0.0
    %632 = vmatpush1.msra.mxu0 %v422
    %633 = vmatprep.subr.mxu0 0.0
    %634 = vmatpush1.msra.mxu0 %v423
    %635 = vmatprep.subr.mxu0 0.0
    %636 = vmatpush1.msra.mxu0 %v424
    %637 = vmatprep.subr.mxu0 0.0
    %638 = vmatpush1.msra.mxu0 %v425
    %639 = vmatprep.subr.mxu0 0.0
    %640 = vmatpush1.msra.mxu0 %v426
    %641 = vmatprep.subr.mxu0 0.0
    %642 = vmatpush1.msra.mxu0 %v427
    %643 = vmatprep.subr.mxu0 0.0
    %644 = vmatpush1.msra.mxu0 %v428
    %645 = vmatprep.subr.mxu0 0.0
    %646 = vmatpush1.msra.mxu0 0.0
    %647 = vmatprep.subr.mxu0 0.0
    %648 = vmatpush1.msra.mxu0 0.0
    %649 = vmatprep.subr.mxu0 0.0
    %650 = vmatpush1.msra.mxu0 0.0
    %651 = vmatprep.subr.mxu0 0.0
    %652 = vmatpush1.msra.mxu0 0.0
    %653 = vmatprep.subr.mxu0 0.0
    %654 = vmatpush1.msra.mxu0 0.0
    %655 = vmatprep.subr.mxu0 0.0
    %656 = vmatpush1.msra.mxu0 0.0
    %657 = vmatprep.subr.mxu0 0.0
    %658 = vmatpush1.msra.mxu0 0.0
    %659 = vmatprep.subr.mxu0 0.0
    %660 = vmatpush1.msra.mxu0 0.0
    %661 = vmatprep.subr.mxu0 0.0
    %662 = vmatpush1.msra.mxu0 0.0
    %663 = vmatprep.subr.mxu0 0.0
    %664 = vmatpush1.msra.mxu0 0.0
    %665 = vmatprep.subr.mxu0 0.0
    %666 = vmatpush1.msra.mxu0 0.0
    %667 = vmatprep.subr.mxu0 0.0
    %668 = vmatpush1.msra.mxu0 0.0
    %669 = vmatprep.subr.mxu0 0.0
    %670 = vmatpush1.msra.mxu0 0.0
    %671 = vmatprep.subr.mxu0 0.0
    %672 = vmatpush1.msra.mxu0 0.0
    %673 = vmatprep.subr.mxu0 0.0
    %674 = vmatpush1.msra.mxu0 0.0
    %675 = vmatprep.subr.mxu0 0.0
    %676 = vmatpush1.msra.mxu0 0.0
    %677 = vmatprep.subr.mxu0 0.0
    %678 = vmatpush1.msra.mxu0 0.0
    %679 = vmatprep.subr.mxu0 0.0
    %680 = vmatpush1.msra.mxu0 0.0
    %681 = vmatprep.subr.mxu0 0.0
    %682 = vmatpush1.msra.mxu0 0.0
    %683 = vmatprep.subr.mxu0 0.0
    %684 = vmatpush1.msra.mxu0 0.0
    %685 = vmatprep.subr.mxu0 0.0
    %686 = vmatpush1.msra.mxu0 0.0
    %687 = vmatprep.subr.mxu0 0.0
    %688 = vmatpush1.msra.mxu0 0.0
    %689 = vmatprep.subr.mxu0 0.0
    %690 = vmatpush1.msra.mxu0 0.0
    %691 = vmatprep.subr.mxu0 0.0
    %692 = vmatpush1.msra.mxu0 0.0
    %693 = vmatprep.mubr.f32.mxu0 0.0
    %694 = vmatmul.mubr.f32.gmra.mrb[0].mxu0 %v627
    %v695 = vpop.f32.mrb[0].mxu0
    %v696 = vadd.f32 %v434, %v695
    %v697 = vpop.f32.mrb[0].mxu0
    %698 = vdwg.mxu0
    %v699 = vld [vmem:[%s13] sm:$0xf]
    %v700 = vadd.f32 %v696, %v699
    %vm701 = vcmask 1043456
    %v702 = vsel %vm701, %v700, -inf
    %703 = vmax.xlane.f32.xlu0 %v702
    %v704 = vpop.xlane.xlu0 %703
    %vm705 = vcmp.ge.f32.partialorder %v700, %v704
    %v706 = vsel %vm705, %v437, 128
    %v707 = vsel %vm701, %v706, 2147483647
    %v708 = vand.u32 %v707, 65535
    %v709 = vshra.s32 %v707, 16
    %v710 = vcvt.s32.f32 %v708
    %v711 = vcvt.s32.f32 %v709
    %712 = vmin.xlane.f32.xlu0 %v711
    %v713 = vpop.xlane.xlu0 %712
    %vm714 = vcmp.eq.f32.partialorder %v711, %v713
    %v715 = vsel %vm714, %v710, inf
    %716 = vmin.xlane.f32.xlu0 %v715
    %v717 = vpop.xlane.xlu0 %716
    %v718 = vcvt.f32.s32 %v717
    %v719 = vcvt.f32.s32 %v713
    %v720 = vshll.u32 %v719, 16
    %v721 = vadd.s32 %v720, %v718
    %v722 = vsel %vm701, %v696, -inf
    %723 = vmax.xlane.f32.xlu0 %v722
    %v724 = vpop.xlane.xlu0 %723
    %v725 = vsub.f32 %v696, %v724
    %v726 = vmul.f32 %v725, 1.442695
    %v727 = vpow.pop %v726
    %v728 = vsel %vm701, %v727, 0.0
    %729 = vadd.xlane.f32.xlu0 %v728
    %v730 = vpop.xlane.xlu0 %729
    %v731 = vlog2.pop %v730
    %v732 = vmul.f32 %v731, 0.6931472
    %v733 = vrcp.pop %v730
    %v734 = vmul.f32 %v727, %v725
    %v735 = vsel %vm701, %v734, 0.0
    %736 = vadd.xlane.f32.xlu0 %v735
    %v737 = vpop.xlane.xlu0 %736
    %v738 = vmul.f32 %v733, %v737
    %v739 = vsub.f32 %v732, %v738
    %vm740 = vcmp.eq.s32.totalorder %v437, %v721
    %v741 = vsel %vm740, %v725, 0.0
    %v742 = vsel %vm701, %v741, 0.0
    %743 = vadd.xlane.f32.xlu0 %v742
    %v744 = vpop.xlane.xlu0 %743
    %v745 = vsub.f32 %v744, %v732
    %v746 = vsel %vm740, 1, 0
    %v747 = vcvt.s32.f32 %v746
    %749 = vrot.lane.b32.xlu0 %v548, 48
    %v750 = vpop.permute.xlu0 %749
    %v752 = vsel %vm445, %v747, %v750
    %v754 = vsel %vm447, %v752, 0
    %756 = vmatprep.subr.mxu0 0.0
    %757 = vmatpush1.msra.mxu0 %v397
    %758 = vmatprep.subr.mxu0 0.0
    %759 = vmatpush1.msra.mxu0 %v398
    %760 = vmatprep.subr.mxu0 0.0
    %761 = vmatpush1.msra.mxu0 %v399
    %762 = vmatprep.subr.mxu0 0.0
    %763 = vmatpush1.msra.mxu0 %v400
    %764 = vmatprep.subr.mxu0 0.0
    %765 = vmatpush1.msra.mxu0 %v401
    %766 = vmatprep.subr.mxu0 0.0
    %767 = vmatpush1.msra.mxu0 %v402
    %768 = vmatprep.subr.mxu0 0.0
    %769 = vmatpush1.msra.mxu0 0.0
    %770 = vmatprep.subr.mxu0 0.0
    %771 = vmatpush1.msra.mxu0 0.0
    %772 = vmatprep.subr.mxu0 0.0
    %773 = vmatpush1.msra.mxu0 0.0
    %774 = vmatprep.subr.mxu0 0.0
    %775 = vmatpush1.msra.mxu0 0.0
    %776 = vmatprep.subr.mxu0 0.0
    %777 = vmatpush1.msra.mxu0 0.0
    %778 = vmatprep.subr.mxu0 0.0
    %779 = vmatpush1.msra.mxu0 0.0
    %780 = vmatprep.subr.mxu0 0.0
    %781 = vmatpush1.msra.mxu0 0.0
    %782 = vmatprep.subr.mxu0 0.0
    %783 = vmatpush1.msra.mxu0 0.0
    %784 = vmatprep.subr.mxu0 0.0
    %785 = vmatpush1.msra.mxu0 0.0
    %786 = vmatprep.subr.mxu0 0.0
    %787 = vmatpush1.msra.mxu0 0.0
    %788 = vmatprep.subr.mxu0 0.0
    %789 = vmatpush1.msra.mxu0 0.0
    %790 = vmatprep.subr.mxu0 0.0
    %791 = vmatpush1.msra.mxu0 0.0
    %792 = vmatprep.subr.mxu0 0.0
    %793 = vmatpush1.msra.mxu0 0.0
    %794 = vmatprep.subr.mxu0 0.0
    %795 = vmatpush1.msra.mxu0 0.0
    %796 = vmatprep.subr.mxu0 0.0
    %797 = vmatpush1.msra.mxu0 0.0
    %798 = vmatprep.subr.mxu0 0.0
    %799 = vmatpush1.msra.mxu0 0.0
    %800 = vmatprep.subr.mxu0 0.0
    %801 = vmatpush1.msra.mxu0 0.0
    %802 = vmatprep.subr.mxu0 0.0
    %803 = vmatpush1.msra.mxu0 0.0
    %804 = vmatprep.subr.mxu0 0.0
    %805 = vmatpush1.msra.mxu0 0.0
    %806 = vmatprep.subr.mxu0 0.0
    %807 = vmatpush1.msra.mxu0 0.0
    %808 = vmatprep.subr.mxu0 0.0
    %809 = vmatpush1.msra.mxu0 0.0
    %810 = vmatprep.subr.mxu0 0.0
    %811 = vmatpush1.msra.mxu0 0.0
    %812 = vmatprep.subr.mxu0 0.0
    %813 = vmatpush1.msra.mxu0 0.0
    %814 = vmatprep.subr.mxu0 0.0
    %815 = vmatpush1.msra.mxu0 0.0
    %816 = vmatprep.subr.mxu0 0.0
    %817 = vmatpush1.msra.mxu0 0.0
    %818 = vmatprep.subr.mxu0 0.0
    %819 = vmatpush1.msra.mxu0 0.0
    %820 = vmatprep.mubr.f32.mxu0 0.0
    %821 = vmatmul.mubr.f32.gmra.mrb[0].mxu0 %v754
    %v822 = vpop.f32.mrb[0].mxu0
    %v823 = vadd.f32 %v408, %v822
    %v824 = vpop.f32.mrb[0].mxu0
    %825 = vdwg.mxu0
    %v826 = vxor.u32 %v823, 2147483648
    %v827 = vmul.f32 %v826, 1.442695
    %v828 = vpow.pop %v827
    %v829 = vadd.f32 %v828, 1.0
    %v830 = vrcp.pop %v829
    %v831 = vmul.f32 1.0, %v830
    %v832 = vtanh.pop %v823
    %v833 = vmul.f32 %v831, %v542
    %835 = vrot.lane.b32.xlu0 %v832, 64
    %v836 = vpop.permute.xlu0 %835
    %v838 = vmul.f32 %v831, %v836
    %840 = vrot.lane.b32.xlu0 %v838, 32
    %v841 = vpop.permute.xlu0 %840
    %v843 = vadd.f32 %v833, %v841
    %v844 = vtanh.pop %v843
    %846 = vrot.lane.b32.xlu0 %v844, 64
    %v847 = vpop.permute.xlu0 %846
    %v849 = vmul.f32 %v831, %v847
    %v850 = vmax.f32 %v849, 0.0
    %852 = vrot.lane.b32.xlu0 %v850, 32
    %v853 = vpop.permute.xlu0 %852
    %v854 = vsel %vm134, %v853, 0
    %856 = vmatprep.subr.mxu0 0.0
    %857 = vmatpush1.msra.mxu0 %v410
    %858 = vmatprep.subr.mxu0 0.0
    %859 = vmatpush1.msra.mxu0 %v411
    %860 = vmatprep.subr.mxu0 0.0
    %861 = vmatpush1.msra.mxu0 %v412
    %862 = vmatprep.subr.mxu0 0.0
    %863 = vmatpush1.msra.mxu0 %v413
    %864 = vmatprep.subr.mxu0 0.0
    %865 = vmatpush1.msra.mxu0 0.0
    %866 = vmatprep.subr.mxu0 0.0
    %867 = vmatpush1.msra.mxu0 0.0
    %868 = vmatprep.subr.mxu0 0.0
    %869 = vmatpush1.msra.mxu0 0.0
    %870 = vmatprep.subr.mxu0 0.0
    %871 = vmatpush1.msra.mxu0 0.0
    %872 = vmatprep.subr.mxu0 0.0
    %873 = vmatpush1.msra.mxu0 0.0
    %874 = vmatprep.subr.mxu0 0.0
    %875 = vmatpush1.msra.mxu0 0.0
    %876 = vmatprep.subr.mxu0 0.0
    %877 = vmatpush1.msra.mxu0 0.0
    %878 = vmatprep.subr.mxu0 0.0
    %879 = vmatpush1.msra.mxu0 0.0
    %880 = vmatprep.subr.mxu0 0.0
    %881 = vmatpush1.msra.mxu0 0.0
    %882 = vmatprep.subr.mxu0 0.0
    %883 = vmatpush1.msra.mxu0 0.0
    %884 = vmatprep.subr.mxu0 0.0
    %885 = vmatpush1.msra.mxu0 0.0
    %886 = vmatprep.subr.mxu0 0.0
    %887 = vmatpush1.msra.mxu0 0.0
    %888 = vmatprep.subr.mxu0 0.0
    %889 = vmatpush1.msra.mxu0 0.0
    %890 = vmatprep.subr.mxu0 0.0
    %891 = vmatpush1.msra.mxu0 0.0
    %892 = vmatprep.subr.mxu0 0.0
    %893 = vmatpush1.msra.mxu0 0.0
    %894 = vmatprep.subr.mxu0 0.0
    %895 = vmatpush1.msra.mxu0 0.0
    %896 = vmatprep.subr.mxu0 0.0
    %897 = vmatpush1.msra.mxu0 0.0
    %898 = vmatprep.subr.mxu0 0.0
    %899 = vmatpush1.msra.mxu0 0.0
    %900 = vmatprep.subr.mxu0 0.0
    %901 = vmatpush1.msra.mxu0 0.0
    %902 = vmatprep.subr.mxu0 0.0
    %903 = vmatpush1.msra.mxu0 0.0
    %904 = vmatprep.subr.mxu0 0.0
    %905 = vmatpush1.msra.mxu0 0.0
    %906 = vmatprep.subr.mxu0 0.0
    %907 = vmatpush1.msra.mxu0 0.0
    %908 = vmatprep.subr.mxu0 0.0
    %909 = vmatpush1.msra.mxu0 0.0
    %910 = vmatprep.subr.mxu0 0.0
    %911 = vmatpush1.msra.mxu0 0.0
    %912 = vmatprep.subr.mxu0 0.0
    %913 = vmatpush1.msra.mxu0 0.0
    %914 = vmatprep.subr.mxu0 0.0
    %915 = vmatpush1.msra.mxu0 0.0
    %916 = vmatprep.subr.mxu0 0.0
    %917 = vmatpush1.msra.mxu0 0.0
    %918 = vmatprep.subr.mxu0 0.0
    %919 = vmatpush1.msra.mxu0 0.0
    %920 = vmatprep.mubr.f32.mxu0 0.0
    %921 = vmatmul.mubr.f32.gmra.mrb[0].mxu0 %v854
    %v922 = vpop.f32.mrb[0].mxu0
    %v923 = vadd.f32 %v419, %v922
    %v924 = vpop.f32.mrb[0].mxu0
    %925 = vdwg.mxu0
    %v926 = vmax.f32 %v923, 0.0
    %v928 = vsel %vm224, %v926, 0
    %930 = vmatprep.subr.mxu0 0.0
    %931 = vmatpush1.msra.mxu0 %v421
    %932 = vmatprep.subr.mxu0 0.0
    %933 = vmatpush1.msra.mxu0 %v422
    %934 = vmatprep.subr.mxu0 0.0
    %935 = vmatpush1.msra.mxu0 %v423
    %936 = vmatprep.subr.mxu0 0.0
    %937 = vmatpush1.msra.mxu0 %v424
    %938 = vmatprep.subr.mxu0 0.0
    %939 = vmatpush1.msra.mxu0 %v425
    %940 = vmatprep.subr.mxu0 0.0
    %941 = vmatpush1.msra.mxu0 %v426
    %942 = vmatprep.subr.mxu0 0.0
    %943 = vmatpush1.msra.mxu0 %v427
    %944 = vmatprep.subr.mxu0 0.0
    %945 = vmatpush1.msra.mxu0 %v428
    %946 = vmatprep.subr.mxu0 0.0
    %947 = vmatpush1.msra.mxu0 0.0
    %948 = vmatprep.subr.mxu0 0.0
    %949 = vmatpush1.msra.mxu0 0.0
    %950 = vmatprep.subr.mxu0 0.0
    %951 = vmatpush1.msra.mxu0 0.0
    %952 = vmatprep.subr.mxu0 0.0
    %953 = vmatpush1.msra.mxu0 0.0
    %954 = vmatprep.subr.mxu0 0.0
    %955 = vmatpush1.msra.mxu0 0.0
    %956 = vmatprep.subr.mxu0 0.0
    %957 = vmatpush1.msra.mxu0 0.0
    %958 = vmatprep.subr.mxu0 0.0
    %959 = vmatpush1.msra.mxu0 0.0
    %960 = vmatprep.subr.mxu0 0.0
    %961 = vmatpush1.msra.mxu0 0.0
    %962 = vmatprep.subr.mxu0 0.0
    %963 = vmatpush1.msra.mxu0 0.0
    %964 = vmatprep.subr.mxu0 0.0
    %965 = vmatpush1.msra.mxu0 0.0
    %966 = vmatprep.subr.mxu0 0.0
    %967 = vmatpush1.msra.mxu0 0.0
    %968 = vmatprep.subr.mxu0 0.0
    %969 = vmatpush1.msra.mxu0 0.0
    %970 = vmatprep.subr.mxu0 0.0
    %971 = vmatpush1.msra.mxu0 0.0
    %972 = vmatprep.subr.mxu0 0.0
    %973 = vmatpush1.msra.mxu0 0.0
    %974 = vmatprep.subr.mxu0 0.0
    %975 = vmatpush1.msra.mxu0 0.0
    %976 = vmatprep.subr.mxu0 0.0
    %977 = vmatpush1.msra.mxu0 0.0
    %978 = vmatprep.subr.mxu0 0.0
    %979 = vmatpush1.msra.mxu0 0.0
    %980 = vmatprep.subr.mxu0 0.0
    %981 = vmatpush1.msra.mxu0 0.0
    %982 = vmatprep.subr.mxu0 0.0
    %983 = vmatpush1.msra.mxu0 0.0
    %984 = vmatprep.subr.mxu0 0.0
    %985 = vmatpush1.msra.mxu0 0.0
    %986 = vmatprep.subr.mxu0 0.0
    %987 = vmatpush1.msra.mxu0 0.0
    %988 = vmatprep.subr.mxu0 0.0
    %989 = vmatpush1.msra.mxu0 0.0
    %990 = vmatprep.subr.mxu0 0.0
    %991 = vmatpush1.msra.mxu0 0.0
    %992 = vmatprep.subr.mxu0 0.0
    %993 = vmatpush1.msra.mxu0 0.0
    %994 = vmatprep.mubr.f32.mxu0 0.0
    %995 = vmatmul.mubr.f32.gmra.mrb[0].mxu0 %v928
    %v996 = vpop.f32.mrb[0].mxu0
    %v997 = vadd.f32 %v434, %v996
    %v998 = vpop.f32.mrb[0].mxu0
    %999 = vdwg.mxu0
    %s1000 = scalar_lea.vmem %s13, 4
    %v1001 = vld [vmem:[%s1000] sm:$0xf]
    %v1002 = vadd.f32 %v997, %v1001
    %v1003 = vsel %vm701, %v1002, -inf
    %1004 = vmax.xlane.f32.xlu0 %v1003
    %v1005 = vpop.xlane.xlu0 %1004
    %vm1006 = vcmp.ge.f32.partialorder %v1002, %v1005
    %v1007 = vsel %vm1006, %v437, 128
    %v1008 = vsel %vm701, %v1007, 2147483647
    %v1009 = vand.u32 %v1008, 65535
    %v1010 = vshra.s32 %v1008, 16
    %v1011 = vcvt.s32.f32 %v1009
    %v1012 = vcvt.s32.f32 %v1010
    %1013 = vmin.xlane.f32.xlu0 %v1012
    %v1014 = vpop.xlane.xlu0 %1013
    %vm1015 = vcmp.eq.f32.partialorder %v1012, %v1014
    %v1016 = vsel %vm1015, %v1011, inf
    %1017 = vmin.xlane.f32.xlu0 %v1016
    %v1018 = vpop.xlane.xlu0 %1017
    %v1019 = vcvt.f32.s32 %v1018
    %v1020 = vcvt.f32.s32 %v1014
    %v1021 = vshll.u32 %v1020, 16
    %v1022 = vadd.s32 %v1021, %v1019
    %v1023 = vsel %vm701, %v997, -inf
    %1024 = vmax.xlane.f32.xlu0 %v1023
    %v1025 = vpop.xlane.xlu0 %1024
    %v1026 = vsub.f32 %v997, %v1025
    %v1027 = vmul.f32 %v1026, 1.442695
    %v1028 = vpow.pop %v1027
    %v1029 = vsel %vm701, %v1028, 0.0
    %1030 = vadd.xlane.f32.xlu0 %v1029
    %v1031 = vpop.xlane.xlu0 %1030
    %v1032 = vlog2.pop %v1031
    %v1033 = vmul.f32 %v1032, 0.6931472
    %v1034 = vrcp.pop %v1031
    %v1035 = vmul.f32 %v1028, %v1026
    %v1036 = vsel %vm701, %v1035, 0.0
    %1037 = vadd.xlane.f32.xlu0 %v1036
    %v1038 = vpop.xlane.xlu0 %1037
    %v1039 = vmul.f32 %v1034, %v1038
    %v1040 = vsub.f32 %v1033, %v1039
    %vm1041 = vcmp.eq.s32.totalorder %v437, %v1022
    %v1042 = vsel %vm1041, %v1026, 0.0
    %v1043 = vsel %vm701, %v1042, 0.0
    %1044 = vadd.xlane.f32.xlu0 %v1043
    %v1045 = vpop.xlane.xlu0 %1044
    %v1046 = vsub.f32 %v1045, %v1033
    %v1047 = vsel %vm1041, 1, 0
    %v1048 = vcvt.s32.f32 %v1047
    %1050 = vrot.lane.b32.xlu0 %v849, 48
    %v1051 = vpop.permute.xlu0 %1050
    %v1053 = vsel %vm445, %v1048, %v1051
    %v1055 = vsel %vm447, %v1053, 0
    %1057 = vmatprep.subr.mxu0 0.0
    %1058 = vmatpush1.msra.mxu0 %v397
    %1059 = vmatprep.subr.mxu0 0.0
    %1060 = vmatpush1.msra.mxu0 %v398
    %1061 = vmatprep.subr.mxu0 0.0
    %1062 = vmatpush1.msra.mxu0 %v399
    %1063 = vmatprep.subr.mxu0 0.0
    %1064 = vmatpush1.msra.mxu0 %v400
    %1065 = vmatprep.subr.mxu0 0.0
    %1066 = vmatpush1.msra.mxu0 %v401
    %1067 = vmatprep.subr.mxu0 0.0
    %1068 = vmatpush1.msra.mxu0 %v402
    %1069 = vmatprep.subr.mxu0 0.0
    %1070 = vmatpush1.msra.mxu0 0.0
    %1071 = vmatprep.subr.mxu0 0.0
    %1072 = vmatpush1.msra.mxu0 0.0
    %1073 = vmatprep.subr.mxu0 0.0
    %1074 = vmatpush1.msra.mxu0 0.0
    %1075 = vmatprep.subr.mxu0 0.0
    %1076 = vmatpush1.msra.mxu0 0.0
    %1077 = vmatprep.subr.mxu0 0.0
    %1078 = vmatpush1.msra.mxu0 0.0
    %1079 = vmatprep.subr.mxu0 0.0
    %1080 = vmatpush1.msra.mxu0 0.0
    %1081 = vmatprep.subr.mxu0 0.0
    %1082 = vmatpush1.msra.mxu0 0.0
    %1083 = vmatprep.subr.mxu0 0.0
    %1084 = vmatpush1.msra.mxu0 0.0
    %1085 = vmatprep.subr.mxu0 0.0
    %1086 = vmatpush1.msra.mxu0 0.0
    %1087 = vmatprep.subr.mxu0 0.0
    %1088 = vmatpush1.msra.mxu0 0.0
    %1089 = vmatprep.subr.mxu0 0.0
    %1090 = vmatpush1.msra.mxu0 0.0
    %1091 = vmatprep.subr.mxu0 0.0
    %1092 = vmatpush1.msra.mxu0 0.0
    %1093 = vmatprep.subr.mxu0 0.0
    %1094 = vmatpush1.msra.mxu0 0.0
    %1095 = vmatprep.subr.mxu0 0.0
    %1096 = vmatpush1.msra.mxu0 0.0
    %1097 = vmatprep.subr.mxu0 0.0
    %1098 = vmatpush1.msra.mxu0 0.0
    %1099 = vmatprep.subr.mxu0 0.0
    %1100 = vmatpush1.msra.mxu0 0.0
    %1101 = vmatprep.subr.mxu0 0.0
    %1102 = vmatpush1.msra.mxu0 0.0
    %1103 = vmatprep.subr.mxu0 0.0
    %1104 = vmatpush1.msra.mxu0 0.0
    %1105 = vmatprep.subr.mxu0 0.0
    %1106 = vmatpush1.msra.mxu0 0.0
    %1107 = vmatprep.subr.mxu0 0.0
    %1108 = vmatpush1.msra.mxu0 0.0
    %1109 = vmatprep.subr.mxu0 0.0
    %1110 = vmatpush1.msra.mxu0 0.0
    %1111 = vmatprep.subr.mxu0 0.0
    %1112 = vmatpush1.msra.mxu0 0.0
    %1113 = vmatprep.subr.mxu0 0.0
    %1114 = vmatpush1.msra.mxu0 0.0
    %1115 = vmatprep.subr.mxu0 0.0
    %1116 = vmatpush1.msra.mxu0 0.0
    %1117 = vmatprep.subr.mxu0 0.0
    %1118 = vmatpush1.msra.mxu0 0.0
    %1119 = vmatprep.subr.mxu0 0.0
    %1120 = vmatpush1.msra.mxu0 0.0
    %1121 = vmatprep.mubr.f32.mxu0 0.0
    %1122 = vmatmul.mubr.f32.gmra.mrb[0].mxu0 %v1055
    %v1123 = vpop.f32.mrb[0].mxu0
    %v1124 = vadd.f32 %v408, %v1123
    %v1125 = vpop.f32.mrb[0].mxu0
    %1126 = vdwg.mxu0
    %v1127 = vxor.u32 %v1124, 2147483648
    %v1128 = vmul.f32 %v1127, 1.442695
    %v1129 = vpow.pop %v1128
    %v1130 = vadd.f32 %v1129, 1.0
    %v1131 = vrcp.pop %v1130
    %v1132 = vmul.f32 1.0, %v1131
    %v1133 = vtanh.pop %v1124
    %v1134 = vmul.f32 %v1132, %v843
    %1136 = vrot.lane.b32.xlu0 %v1133, 64
    %v1137 = vpop.permute.xlu0 %1136
    %v1139 = vmul.f32 %v1132, %v1137
    %1141 = vrot.lane.b32.xlu0 %v1139, 32
    %v1142 = vpop.permute.xlu0 %1141
    %v1144 = vadd.f32 %v1134, %v1142
    %v1145 = vtanh.pop %v1144
    %1147 = vrot.lane.b32.xlu0 %v1145, 64
    %v1148 = vpop.permute.xlu0 %1147
    %v1150 = vmul.f32 %v1132, %v1148
    %v1151 = vmax.f32 %v1150, 0.0
    %1153 = vrot.lane.b32.xlu0 %v1151, 32
    %v1154 = vpop.permute.xlu0 %1153
    %v1155 = vsel %vm134, %v1154, 0
    %1157 = vmatprep.subr.mxu0 0.0
    %1158 = vmatpush1.msra.mxu0 %v410
    %1159 = vmatprep.subr.mxu0 0.0
    %1160 = vmatpush1.msra.mxu0 %v411
    %1161 = vmatprep.subr.mxu0 0.0
    %1162 = vmatpush1.msra.mxu0 %v412
    %1163 = vmatprep.subr.mxu0 0.0
    %1164 = vmatpush1.msra.mxu0 %v413
    %1165 = vmatprep.subr.mxu0 0.0
    %1166 = vmatpush1.msra.mxu0 0.0
    %1167 = vmatprep.subr.mxu0 0.0
    %1168 = vmatpush1.msra.mxu0 0.0
    %1169 = vmatprep.subr.mxu0 0.0
    %1170 = vmatpush1.msra.mxu0 0.0
    %1171 = vmatprep.subr.mxu0 0.0
    %1172 = vmatpush1.msra.mxu0 0.0
    %1173 = vmatprep.subr.mxu0 0.0
    %1174 = vmatpush1.msra.mxu0 0.0
    %1175 = vmatprep.subr.mxu0 0.0
    %1176 = vmatpush1.msra.mxu0 0.0
    %1177 = vmatprep.subr.mxu0 0.0
    %1178 = vmatpush1.msra.mxu0 0.0
    %1179 = vmatprep.subr.mxu0 0.0
    %1180 = vmatpush1.msra.mxu0 0.0
    %1181 = vmatprep.subr.mxu0 0.0
    %1182 = vmatpush1.msra.mxu0 0.0
    %1183 = vmatprep.subr.mxu0 0.0
    %1184 = vmatpush1.msra.mxu0 0.0
    %1185 = vmatprep.subr.mxu0 0.0
    %1186 = vmatpush1.msra.mxu0 0.0
    %1187 = vmatprep.subr.mxu0 0.0
    %1188 = vmatpush1.msra.mxu0 0.0
    %1189 = vmatprep.subr.mxu0 0.0
    %1190 = vmatpush1.msra.mxu0 0.0
    %1191 = vmatprep.subr.mxu0 0.0
    %1192 = vmatpush1.msra.mxu0 0.0
    %1193 = vmatprep.subr.mxu0 0.0
    %1194 = vmatpush1.msra.mxu0 0.0
    %1195 = vmatprep.subr.mxu0 0.0
    %1196 = vmatpush1.msra.mxu0 0.0
    %1197 = vmatprep.subr.mxu0 0.0
    %1198 = vmatpush1.msra.mxu0 0.0
    %1199 = vmatprep.subr.mxu0 0.0
    %1200 = vmatpush1.msra.mxu0 0.0
    %1201 = vmatprep.subr.mxu0 0.0
    %1202 = vmatpush1.msra.mxu0 0.0
    %1203 = vmatprep.subr.mxu0 0.0
    %1204 = vmatpush1.msra.mxu0 0.0
    %1205 = vmatprep.subr.mxu0 0.0
    %1206 = vmatpush1.msra.mxu0 0.0
    %1207 = vmatprep.subr.mxu0 0.0
    %1208 = vmatpush1.msra.mxu0 0.0
    %1209 = vmatprep.subr.mxu0 0.0
    %1210 = vmatpush1.msra.mxu0 0.0
    %1211 = vmatprep.subr.mxu0 0.0
    %1212 = vmatpush1.msra.mxu0 0.0
    %1213 = vmatprep.subr.mxu0 0.0
    %1214 = vmatpush1.msra.mxu0 0.0
    %1215 = vmatprep.subr.mxu0 0.0
    %1216 = vmatpush1.msra.mxu0 0.0
    %1217 = vmatprep.subr.mxu0 0.0
    %1218 = vmatpush1.msra.mxu0 0.0
    %1219 = vmatprep.subr.mxu0 0.0
    %1220 = vmatpush1.msra.mxu0 0.0
    %1221 = vmatprep.mubr.f32.mxu0 0.0
    %1222 = vmatmul.mubr.f32.gmra.mrb[0].mxu0 %v1155
    %v1223 = vpop.f32.mrb[0].mxu0
    %v1224 = vadd.f32 %v419, %v1223
    %v1225 = vpop.f32.mrb[0].mxu0
    %1226 = vdwg.mxu0
    %v1227 = vmax.f32 %v1224, 0.0
    %v1229 = vsel %vm224, %v1227, 0
    %1231 = vmatprep.subr.mxu0 0.0
    %1232 = vmatpush1.msra.mxu0 %v421
    %1233 = vmatprep.subr.mxu0 0.0
    %1234 = vmatpush1.msra.mxu0 %v422
    %1235 = vmatprep.subr.mxu0 0.0
    %1236 = vmatpush1.msra.mxu0 %v423
    %1237 = vmatprep.subr.mxu0 0.0
    %1238 = vmatpush1.msra.mxu0 %v424
    %1239 = vmatprep.subr.mxu0 0.0
    %1240 = vmatpush1.msra.mxu0 %v425
    %1241 = vmatprep.subr.mxu0 0.0
    %1242 = vmatpush1.msra.mxu0 %v426
    %1243 = vmatprep.subr.mxu0 0.0
    %1244 = vmatpush1.msra.mxu0 %v427
    %1245 = vmatprep.subr.mxu0 0.0
    %1246 = vmatpush1.msra.mxu0 %v428
    %1247 = vmatprep.subr.mxu0 0.0
    %1248 = vmatpush1.msra.mxu0 0.0
    %1249 = vmatprep.subr.mxu0 0.0
    %1250 = vmatpush1.msra.mxu0 0.0
    %1251 = vmatprep.subr.mxu0 0.0
    %1252 = vmatpush1.msra.mxu0 0.0
    %1253 = vmatprep.subr.mxu0 0.0
    %1254 = vmatpush1.msra.mxu0 0.0
    %1255 = vmatprep.subr.mxu0 0.0
    %1256 = vmatpush1.msra.mxu0 0.0
    %1257 = vmatprep.subr.mxu0 0.0
    %1258 = vmatpush1.msra.mxu0 0.0
    %1259 = vmatprep.subr.mxu0 0.0
    %1260 = vmatpush1.msra.mxu0 0.0
    %1261 = vmatprep.subr.mxu0 0.0
    %1262 = vmatpush1.msra.mxu0 0.0
    %1263 = vmatprep.subr.mxu0 0.0
    %1264 = vmatpush1.msra.mxu0 0.0
    %1265 = vmatprep.subr.mxu0 0.0
    %1266 = vmatpush1.msra.mxu0 0.0
    %1267 = vmatprep.subr.mxu0 0.0
    %1268 = vmatpush1.msra.mxu0 0.0
    %1269 = vmatprep.subr.mxu0 0.0
    %1270 = vmatpush1.msra.mxu0 0.0
    %1271 = vmatprep.subr.mxu0 0.0
    %1272 = vmatpush1.msra.mxu0 0.0
    %1273 = vmatprep.subr.mxu0 0.0
    %1274 = vmatpush1.msra.mxu0 0.0
    %1275 = vmatprep.subr.mxu0 0.0
    %1276 = vmatpush1.msra.mxu0 0.0
    %1277 = vmatprep.subr.mxu0 0.0
    %1278 = vmatpush1.msra.mxu0 0.0
    %1279 = vmatprep.subr.mxu0 0.0
    %1280 = vmatpush1.msra.mxu0 0.0
    %1281 = vmatprep.subr.mxu0 0.0
    %1282 = vmatpush1.msra.mxu0 0.0
    %1283 = vmatprep.subr.mxu0 0.0
    %1284 = vmatpush1.msra.mxu0 0.0
    %1285 = vmatprep.subr.mxu0 0.0
    %1286 = vmatpush1.msra.mxu0 0.0
    %1287 = vmatprep.subr.mxu0 0.0
    %1288 = vmatpush1.msra.mxu0 0.0
    %1289 = vmatprep.subr.mxu0 0.0
    %1290 = vmatpush1.msra.mxu0 0.0
    %1291 = vmatprep.subr.mxu0 0.0
    %1292 = vmatpush1.msra.mxu0 0.0
    %1293 = vmatprep.subr.mxu0 0.0
    %1294 = vmatpush1.msra.mxu0 0.0
    %1295 = vmatprep.mubr.f32.mxu0 0.0
    %1296 = vmatmul.mubr.f32.gmra.mrb[0].mxu0 %v1229
    %v1297 = vpop.f32.mrb[0].mxu0
    %v1298 = vadd.f32 %v434, %v1297
    %v1299 = vpop.f32.mrb[0].mxu0
    %1300 = vdwg.mxu0
    %s1301 = scalar_lea.vmem %s13, 8
    %v1302 = vld [vmem:[%s1301] sm:$0xf]
    %v1303 = vadd.f32 %v1298, %v1302
    %v1304 = vsel %vm701, %v1303, -inf
    %1305 = vmax.xlane.f32.xlu0 %v1304
    %v1306 = vpop.xlane.xlu0 %1305
    %vm1307 = vcmp.ge.f32.partialorder %v1303, %v1306
    %v1308 = vsel %vm1307, %v437, 128
    %v1309 = vsel %vm701, %v1308, 2147483647
    %v1310 = vand.u32 %v1309, 65535
    %v1311 = vshra.s32 %v1309, 16
    %v1312 = vcvt.s32.f32 %v1310
    %v1313 = vcvt.s32.f32 %v1311
    %1314 = vmin.xlane.f32.xlu0 %v1313
    %v1315 = vpop.xlane.xlu0 %1314
    %vm1316 = vcmp.eq.f32.partialorder %v1313, %v1315
    %v1317 = vsel %vm1316, %v1312, inf
    %1318 = vmin.xlane.f32.xlu0 %v1317
    %v1319 = vpop.xlane.xlu0 %1318
    %v1320 = vcvt.f32.s32 %v1319
    %v1321 = vcvt.f32.s32 %v1315
    %v1322 = vshll.u32 %v1321, 16
    %v1323 = vadd.s32 %v1322, %v1320
    %v1324 = vsel %vm701, %v1298, -inf
    %1325 = vmax.xlane.f32.xlu0 %v1324
    %v1326 = vpop.xlane.xlu0 %1325
    %v1327 = vsub.f32 %v1298, %v1326
    %v1328 = vmul.f32 %v1327, 1.442695
    %v1329 = vpow.pop %v1328
    %v1330 = vsel %vm701, %v1329, 0.0
    %1331 = vadd.xlane.f32.xlu0 %v1330
    %v1332 = vpop.xlane.xlu0 %1331
    %v1333 = vlog2.pop %v1332
    %v1334 = vmul.f32 %v1333, 0.6931472
    %v1335 = vrcp.pop %v1332
    %v1336 = vmul.f32 %v1329, %v1327
    %v1337 = vsel %vm701, %v1336, 0.0
    %1338 = vadd.xlane.f32.xlu0 %v1337
    %v1339 = vpop.xlane.xlu0 %1338
    %v1340 = vmul.f32 %v1335, %v1339
    %v1341 = vsub.f32 %v1334, %v1340
    %vm1342 = vcmp.eq.s32.totalorder %v437, %v1323
    %v1343 = vsel %vm1342, %v1327, 0.0
    %v1344 = vsel %vm701, %v1343, 0.0
    %1345 = vadd.xlane.f32.xlu0 %v1344
    %v1346 = vpop.xlane.xlu0 %1345
    %v1347 = vsub.f32 %v1346, %v1334
    %v1348 = vsel %vm1342, 1, 0
    %v1349 = vcvt.s32.f32 %v1348
    %1351 = vrot.lane.b32.xlu0 %v1150, 48
    %v1352 = vpop.permute.xlu0 %1351
    %v1354 = vsel %vm445, %v1349, %v1352
    %v1356 = vsel %vm447, %v1354, 0
    %1358 = vmatprep.subr.mxu0 0.0
    %1359 = vmatpush1.msra.mxu0 %v397
    %1360 = vmatprep.subr.mxu0 0.0
    %1361 = vmatpush1.msra.mxu0 %v398
    %1362 = vmatprep.subr.mxu0 0.0
    %1363 = vmatpush1.msra.mxu0 %v399
    %1364 = vmatprep.subr.mxu0 0.0
    %1365 = vmatpush1.msra.mxu0 %v400
    %1366 = vmatprep.subr.mxu0 0.0
    %1367 = vmatpush1.msra.mxu0 %v401
    %1368 = vmatprep.subr.mxu0 0.0
    %1369 = vmatpush1.msra.mxu0 %v402
    %1370 = vmatprep.subr.mxu0 0.0
    %1371 = vmatpush1.msra.mxu0 0.0
    %1372 = vmatprep.subr.mxu0 0.0
    %1373 = vmatpush1.msra.mxu0 0.0
    %1374 = vmatprep.subr.mxu0 0.0
    %1375 = vmatpush1.msra.mxu0 0.0
    %1376 = vmatprep.subr.mxu0 0.0
    %1377 = vmatpush1.msra.mxu0 0.0
    %1378 = vmatprep.subr.mxu0 0.0
    %1379 = vmatpush1.msra.mxu0 0.0
    %1380 = vmatprep.subr.mxu0 0.0
    %1381 = vmatpush1.msra.mxu0 0.0
    %1382 = vmatprep.subr.mxu0 0.0
    %1383 = vmatpush1.msra.mxu0 0.0
    %1384 = vmatprep.subr.mxu0 0.0
    %1385 = vmatpush1.msra.mxu0 0.0
    %1386 = vmatprep.subr.mxu0 0.0
    %1387 = vmatpush1.msra.mxu0 0.0
    %1388 = vmatprep.subr.mxu0 0.0
    %1389 = vmatpush1.msra.mxu0 0.0
    %1390 = vmatprep.subr.mxu0 0.0
    %1391 = vmatpush1.msra.mxu0 0.0
    %1392 = vmatprep.subr.mxu0 0.0
    %1393 = vmatpush1.msra.mxu0 0.0
    %1394 = vmatprep.subr.mxu0 0.0
    %1395 = vmatpush1.msra.mxu0 0.0
    %1396 = vmatprep.subr.mxu0 0.0
    %1397 = vmatpush1.msra.mxu0 0.0
    %1398 = vmatprep.subr.mxu0 0.0
    %1399 = vmatpush1.msra.mxu0 0.0
    %1400 = vmatprep.subr.mxu0 0.0
    %1401 = vmatpush1.msra.mxu0 0.0
    %1402 = vmatprep.subr.mxu0 0.0
    %1403 = vmatpush1.msra.mxu0 0.0
    %1404 = vmatprep.subr.mxu0 0.0
    %1405 = vmatpush1.msra.mxu0 0.0
    %1406 = vmatprep.subr.mxu0 0.0
    %1407 = vmatpush1.msra.mxu0 0.0
    %1408 = vmatprep.subr.mxu0 0.0
    %1409 = vmatpush1.msra.mxu0 0.0
    %1410 = vmatprep.subr.mxu0 0.0
    %1411 = vmatpush1.msra.mxu0 0.0
    %1412 = vmatprep.subr.mxu0 0.0
    %1413 = vmatpush1.msra.mxu0 0.0
    %1414 = vmatprep.subr.mxu0 0.0
    %1415 = vmatpush1.msra.mxu0 0.0
    %1416 = vmatprep.subr.mxu0 0.0
    %1417 = vmatpush1.msra.mxu0 0.0
    %1418 = vmatprep.subr.mxu0 0.0
    %1419 = vmatpush1.msra.mxu0 0.0
    %1420 = vmatprep.subr.mxu0 0.0
    %1421 = vmatpush1.msra.mxu0 0.0
    %1422 = vmatprep.mubr.f32.mxu0 0.0
    %1423 = vmatmul.mubr.f32.gmra.mrb[0].mxu0 %v1356
    %v1424 = vpop.f32.mrb[0].mxu0
    %v1425 = vadd.f32 %v408, %v1424
    %v1426 = vpop.f32.mrb[0].mxu0
    %1427 = vdwg.mxu0
    %v1428 = vxor.u32 %v1425, 2147483648
    %v1429 = vmul.f32 %v1428, 1.442695
    %v1430 = vpow.pop %v1429
    %v1431 = vadd.f32 %v1430, 1.0
    %v1432 = vrcp.pop %v1431
    %v1433 = vmul.f32 1.0, %v1432
    %v1434 = vtanh.pop %v1425
    %v1435 = vmul.f32 %v1433, %v1144
    %1437 = vrot.lane.b32.xlu0 %v1434, 64
    %v1438 = vpop.permute.xlu0 %1437
    %v1440 = vmul.f32 %v1433, %v1438
    %1442 = vrot.lane.b32.xlu0 %v1440, 32
    %v1443 = vpop.permute.xlu0 %1442
    %v1445 = vadd.f32 %v1435, %v1443
    %v1446 = vtanh.pop %v1445
    %1448 = vrot.lane.b32.xlu0 %v1446, 64
    %v1449 = vpop.permute.xlu0 %1448
    %v1451 = vmul.f32 %v1433, %v1449
    %v1452 = vmax.f32 %v1451, 0.0
    %1454 = vrot.lane.b32.xlu0 %v1452, 32
    %v1455 = vpop.permute.xlu0 %1454
    %v1456 = vsel %vm134, %v1455, 0
    %1458 = vmatprep.subr.mxu0 0.0
    %1459 = vmatpush1.msra.mxu0 %v410
    %1460 = vmatprep.subr.mxu0 0.0
    %1461 = vmatpush1.msra.mxu0 %v411
    %1462 = vmatprep.subr.mxu0 0.0
    %1463 = vmatpush1.msra.mxu0 %v412
    %1464 = vmatprep.subr.mxu0 0.0
    %1465 = vmatpush1.msra.mxu0 %v413
    %1466 = vmatprep.subr.mxu0 0.0
    %1467 = vmatpush1.msra.mxu0 0.0
    %1468 = vmatprep.subr.mxu0 0.0
    %1469 = vmatpush1.msra.mxu0 0.0
    %1470 = vmatprep.subr.mxu0 0.0
    %1471 = vmatpush1.msra.mxu0 0.0
    %1472 = vmatprep.subr.mxu0 0.0
    %1473 = vmatpush1.msra.mxu0 0.0
    %1474 = vmatprep.subr.mxu0 0.0
    %1475 = vmatpush1.msra.mxu0 0.0
    %1476 = vmatprep.subr.mxu0 0.0
    %1477 = vmatpush1.msra.mxu0 0.0
    %1478 = vmatprep.subr.mxu0 0.0
    %1479 = vmatpush1.msra.mxu0 0.0
    %1480 = vmatprep.subr.mxu0 0.0
    %1481 = vmatpush1.msra.mxu0 0.0
    %1482 = vmatprep.subr.mxu0 0.0
    %1483 = vmatpush1.msra.mxu0 0.0
    %1484 = vmatprep.subr.mxu0 0.0
    %1485 = vmatpush1.msra.mxu0 0.0
    %1486 = vmatprep.subr.mxu0 0.0
    %1487 = vmatpush1.msra.mxu0 0.0
    %1488 = vmatprep.subr.mxu0 0.0
    %1489 = vmatpush1.msra.mxu0 0.0
    %1490 = vmatprep.subr.mxu0 0.0
    %1491 = vmatpush1.msra.mxu0 0.0
    %1492 = vmatprep.subr.mxu0 0.0
    %1493 = vmatpush1.msra.mxu0 0.0
    %1494 = vmatprep.subr.mxu0 0.0
    %1495 = vmatpush1.msra.mxu0 0.0
    %1496 = vmatprep.subr.mxu0 0.0
    %1497 = vmatpush1.msra.mxu0 0.0
    %1498 = vmatprep.subr.mxu0 0.0
    %1499 = vmatpush1.msra.mxu0 0.0
    %1500 = vmatprep.subr.mxu0 0.0
    %1501 = vmatpush1.msra.mxu0 0.0
    %1502 = vmatprep.subr.mxu0 0.0
    %1503 = vmatpush1.msra.mxu0 0.0
    %1504 = vmatprep.subr.mxu0 0.0
    %1505 = vmatpush1.msra.mxu0 0.0
    %1506 = vmatprep.subr.mxu0 0.0
    %1507 = vmatpush1.msra.mxu0 0.0
    %1508 = vmatprep.subr.mxu0 0.0
    %1509 = vmatpush1.msra.mxu0 0.0
    %1510 = vmatprep.subr.mxu0 0.0
    %1511 = vmatpush1.msra.mxu0 0.0
    %1512 = vmatprep.subr.mxu0 0.0
    %1513 = vmatpush1.msra.mxu0 0.0
    %1514 = vmatprep.subr.mxu0 0.0
    %1515 = vmatpush1.msra.mxu0 0.0
    %1516 = vmatprep.subr.mxu0 0.0
    %1517 = vmatpush1.msra.mxu0 0.0
    %1518 = vmatprep.subr.mxu0 0.0
    %1519 = vmatpush1.msra.mxu0 0.0
    %1520 = vmatprep.subr.mxu0 0.0
    %1521 = vmatpush1.msra.mxu0 0.0
    %1522 = vmatprep.mubr.f32.mxu0 0.0
    %1523 = vmatmul.mubr.f32.gmra.mrb[0].mxu0 %v1456
    %v1524 = vpop.f32.mrb[0].mxu0
    %v1525 = vadd.f32 %v419, %v1524
    %v1526 = vpop.f32.mrb[0].mxu0
    %1527 = vdwg.mxu0
    %v1528 = vmax.f32 %v1525, 0.0
    %v1530 = vsel %vm224, %v1528, 0
    %1532 = vmatprep.subr.mxu0 0.0
    %1533 = vmatpush1.msra.mxu0 %v421
    %1534 = vmatprep.subr.mxu0 0.0
    %1535 = vmatpush1.msra.mxu0 %v422
    %1536 = vmatprep.subr.mxu0 0.0
    %1537 = vmatpush1.msra.mxu0 %v423
    %1538 = vmatprep.subr.mxu0 0.0
    %1539 = vmatpush1.msra.mxu0 %v424
    %1540 = vmatprep.subr.mxu0 0.0
    %1541 = vmatpush1.msra.mxu0 %v425
    %1542 = vmatprep.subr.mxu0 0.0
    %1543 = vmatpush1.msra.mxu0 %v426
    %1544 = vmatprep.subr.mxu0 0.0
    %1545 = vmatpush1.msra.mxu0 %v427
    %1546 = vmatprep.subr.mxu0 0.0
    %1547 = vmatpush1.msra.mxu0 %v428
    %1548 = vmatprep.subr.mxu0 0.0
    %1549 = vmatpush1.msra.mxu0 0.0
    %1550 = vmatprep.subr.mxu0 0.0
    %1551 = vmatpush1.msra.mxu0 0.0
    %1552 = vmatprep.subr.mxu0 0.0
    %1553 = vmatpush1.msra.mxu0 0.0
    %1554 = vmatprep.subr.mxu0 0.0
    %1555 = vmatpush1.msra.mxu0 0.0
    %1556 = vmatprep.subr.mxu0 0.0
    %1557 = vmatpush1.msra.mxu0 0.0
    %1558 = vmatprep.subr.mxu0 0.0
    %1559 = vmatpush1.msra.mxu0 0.0
    %1560 = vmatprep.subr.mxu0 0.0
    %1561 = vmatpush1.msra.mxu0 0.0
    %1562 = vmatprep.subr.mxu0 0.0
    %1563 = vmatpush1.msra.mxu0 0.0
    %1564 = vmatprep.subr.mxu0 0.0
    %1565 = vmatpush1.msra.mxu0 0.0
    %1566 = vmatprep.subr.mxu0 0.0
    %1567 = vmatpush1.msra.mxu0 0.0
    %1568 = vmatprep.subr.mxu0 0.0
    %1569 = vmatpush1.msra.mxu0 0.0
    %1570 = vmatprep.subr.mxu0 0.0
    %1571 = vmatpush1.msra.mxu0 0.0
    %1572 = vmatprep.subr.mxu0 0.0
    %1573 = vmatpush1.msra.mxu0 0.0
    %1574 = vmatprep.subr.mxu0 0.0
    %1575 = vmatpush1.msra.mxu0 0.0
    %1576 = vmatprep.subr.mxu0 0.0
    %1577 = vmatpush1.msra.mxu0 0.0
    %1578 = vmatprep.subr.mxu0 0.0
    %1579 = vmatpush1.msra.mxu0 0.0
    %1580 = vmatprep.subr.mxu0 0.0
    %1581 = vmatpush1.msra.mxu0 0.0
    %1582 = vmatprep.subr.mxu0 0.0
    %1583 = vmatpush1.msra.mxu0 0.0
    %1584 = vmatprep.subr.mxu0 0.0
    %1585 = vmatpush1.msra.mxu0 0.0
    %1586 = vmatprep.subr.mxu0 0.0
    %1587 = vmatpush1.msra.mxu0 0.0
    %1588 = vmatprep.subr.mxu0 0.0
    %1589 = vmatpush1.msra.mxu0 0.0
    %1590 = vmatprep.subr.mxu0 0.0
    %1591 = vmatpush1.msra.mxu0 0.0
    %1592 = vmatprep.subr.mxu0 0.0
    %1593 = vmatpush1.msra.mxu0 0.0
    %1594 = vmatprep.subr.mxu0 0.0
    %1595 = vmatpush1.msra.mxu0 0.0
    %1596 = vmatprep.mubr.f32.mxu0 0.0
    %1597 = vmatmul.mubr.f32.gmra.mrb[0].mxu0 %v1530
    %v1598 = vpop.f32.mrb[0].mxu0
    %v1599 = vadd.f32 %v434, %v1598
    %v1600 = vpop.f32.mrb[0].mxu0
    %1601 = vdwg.mxu0
    %s1602 = scalar_lea.vmem %s13, 12
    %v1603 = vld [vmem:[%s1602] sm:$0xf]
    %v1604 = vadd.f32 %v1599, %v1603
    %v1605 = vsel %vm701, %v1604, -inf
    %1606 = vmax.xlane.f32.xlu0 %v1605
    %v1607 = vpop.xlane.xlu0 %1606
    %vm1608 = vcmp.ge.f32.partialorder %v1604, %v1607
    %v1609 = vsel %vm1608, %v437, 128
    %v1610 = vsel %vm701, %v1609, 2147483647
    %v1611 = vand.u32 %v1610, 65535
    %v1612 = vshra.s32 %v1610, 16
    %v1613 = vcvt.s32.f32 %v1611
    %v1614 = vcvt.s32.f32 %v1612
    %1615 = vmin.xlane.f32.xlu0 %v1614
    %v1616 = vpop.xlane.xlu0 %1615
    %vm1617 = vcmp.eq.f32.partialorder %v1614, %v1616
    %v1618 = vsel %vm1617, %v1613, inf
    %1619 = vmin.xlane.f32.xlu0 %v1618
    %v1620 = vpop.xlane.xlu0 %1619
    %v1621 = vcvt.f32.s32 %v1620
    %v1622 = vcvt.f32.s32 %v1616
    %v1623 = vshll.u32 %v1622, 16
    %v1624 = vadd.s32 %v1623, %v1621
    %v1625 = vsel %vm701, %v1599, -inf
    %1626 = vmax.xlane.f32.xlu0 %v1625
    %v1627 = vpop.xlane.xlu0 %1626
    %v1628 = vsub.f32 %v1599, %v1627
    %v1629 = vmul.f32 %v1628, 1.442695
    %v1630 = vpow.pop %v1629
    %v1631 = vsel %vm701, %v1630, 0.0
    %1632 = vadd.xlane.f32.xlu0 %v1631
    %v1633 = vpop.xlane.xlu0 %1632
    %v1634 = vlog2.pop %v1633
    %v1635 = vmul.f32 %v1634, 0.6931472
    %v1636 = vrcp.pop %v1633
    %v1637 = vmul.f32 %v1630, %v1628
    %v1638 = vsel %vm701, %v1637, 0.0
    %1639 = vadd.xlane.f32.xlu0 %v1638
    %v1640 = vpop.xlane.xlu0 %1639
    %v1641 = vmul.f32 %v1636, %v1640
    %v1642 = vsub.f32 %v1635, %v1641
    %vm1643 = vcmp.eq.s32.totalorder %v437, %v1624
    %v1644 = vsel %vm1643, %v1628, 0.0
    %v1645 = vsel %vm701, %v1644, 0.0
    %1646 = vadd.xlane.f32.xlu0 %v1645
    %v1647 = vpop.xlane.xlu0 %1646
    %v1648 = vsub.f32 %v1647, %v1635
    %v1649 = vsel %vm1643, 1, 0
    %v1650 = vcvt.s32.f32 %v1649
    %1652 = vrot.lane.b32.xlu0 %v1451, 48
    %v1653 = vpop.permute.xlu0 %1652
    %v1655 = vsel %vm445, %v1650, %v1653
    %v1657 = vsel %vm447, %v1655, 0
    %1659 = vmatprep.subr.mxu0 0.0
    %1660 = vmatpush1.msra.mxu0 %v397
    %1661 = vmatprep.subr.mxu0 0.0
    %1662 = vmatpush1.msra.mxu0 %v398
    %1663 = vmatprep.subr.mxu0 0.0
    %1664 = vmatpush1.msra.mxu0 %v399
    %1665 = vmatprep.subr.mxu0 0.0
    %1666 = vmatpush1.msra.mxu0 %v400
    %1667 = vmatprep.subr.mxu0 0.0
    %1668 = vmatpush1.msra.mxu0 %v401
    %1669 = vmatprep.subr.mxu0 0.0
    %1670 = vmatpush1.msra.mxu0 %v402
    %1671 = vmatprep.subr.mxu0 0.0
    %1672 = vmatpush1.msra.mxu0 0.0
    %1673 = vmatprep.subr.mxu0 0.0
    %1674 = vmatpush1.msra.mxu0 0.0
    %1675 = vmatprep.subr.mxu0 0.0
    %1676 = vmatpush1.msra.mxu0 0.0
    %1677 = vmatprep.subr.mxu0 0.0
    %1678 = vmatpush1.msra.mxu0 0.0
    %1679 = vmatprep.subr.mxu0 0.0
    %1680 = vmatpush1.msra.mxu0 0.0
    %1681 = vmatprep.subr.mxu0 0.0
    %1682 = vmatpush1.msra.mxu0 0.0
    %1683 = vmatprep.subr.mxu0 0.0
    %1684 = vmatpush1.msra.mxu0 0.0
    %1685 = vmatprep.subr.mxu0 0.0
    %1686 = vmatpush1.msra.mxu0 0.0
    %1687 = vmatprep.subr.mxu0 0.0
    %1688 = vmatpush1.msra.mxu0 0.0
    %1689 = vmatprep.subr.mxu0 0.0
    %1690 = vmatpush1.msra.mxu0 0.0
    %1691 = vmatprep.subr.mxu0 0.0
    %1692 = vmatpush1.msra.mxu0 0.0
    %1693 = vmatprep.subr.mxu0 0.0
    %1694 = vmatpush1.msra.mxu0 0.0
    %1695 = vmatprep.subr.mxu0 0.0
    %1696 = vmatpush1.msra.mxu0 0.0
    %1697 = vmatprep.subr.mxu0 0.0
    %1698 = vmatpush1.msra.mxu0 0.0
    %1699 = vmatprep.subr.mxu0 0.0
    %1700 = vmatpush1.msra.mxu0 0.0
    %1701 = vmatprep.subr.mxu0 0.0
    %1702 = vmatpush1.msra.mxu0 0.0
    %1703 = vmatprep.subr.mxu0 0.0
    %1704 = vmatpush1.msra.mxu0 0.0
    %1705 = vmatprep.subr.mxu0 0.0
    %1706 = vmatpush1.msra.mxu0 0.0
    %1707 = vmatprep.subr.mxu0 0.0
    %1708 = vmatpush1.msra.mxu0 0.0
    %1709 = vmatprep.subr.mxu0 0.0
    %1710 = vmatpush1.msra.mxu0 0.0
    %1711 = vmatprep.subr.mxu0 0.0
    %1712 = vmatpush1.msra.mxu0 0.0
    %1713 = vmatprep.subr.mxu0 0.0
    %1714 = vmatpush1.msra.mxu0 0.0
    %1715 = vmatprep.subr.mxu0 0.0
    %1716 = vmatpush1.msra.mxu0 0.0
    %1717 = vmatprep.subr.mxu0 0.0
    %1718 = vmatpush1.msra.mxu0 0.0
    %1719 = vmatprep.subr.mxu0 0.0
    %1720 = vmatpush1.msra.mxu0 0.0
    %1721 = vmatprep.subr.mxu0 0.0
    %1722 = vmatpush1.msra.mxu0 0.0
    %1723 = vmatprep.mubr.f32.mxu0 0.0
    %1724 = vmatmul.mubr.f32.gmra.mrb[0].mxu0 %v1657
    %v1725 = vpop.f32.mrb[0].mxu0
    %v1726 = vadd.f32 %v408, %v1725
    %v1727 = vpop.f32.mrb[0].mxu0
    %1728 = vdwg.mxu0
    %v1729 = vxor.u32 %v1726, 2147483648
    %v1730 = vmul.f32 %v1729, 1.442695
    %v1731 = vpow.pop %v1730
    %v1732 = vadd.f32 %v1731, 1.0
    %v1733 = vrcp.pop %v1732
    %v1734 = vmul.f32 1.0, %v1733
    %v1735 = vtanh.pop %v1726
    %v1736 = vmul.f32 %v1734, %v1445
    %1738 = vrot.lane.b32.xlu0 %v1735, 64
    %v1739 = vpop.permute.xlu0 %1738
    %v1741 = vmul.f32 %v1734, %v1739
    %1743 = vrot.lane.b32.xlu0 %v1741, 32
    %v1744 = vpop.permute.xlu0 %1743
    %v1746 = vadd.f32 %v1736, %v1744
    %v1747 = vtanh.pop %v1746
    %1749 = vrot.lane.b32.xlu0 %v1747, 64
    %v1750 = vpop.permute.xlu0 %1749
    %v1752 = vmul.f32 %v1734, %v1750
    %v1753 = vmax.f32 %v1752, 0.0
    %1755 = vrot.lane.b32.xlu0 %v1753, 32
    %v1756 = vpop.permute.xlu0 %1755
    %v1757 = vsel %vm134, %v1756, 0
    %1759 = vmatprep.subr.mxu0 0.0
    %1760 = vmatpush1.msra.mxu0 %v410
    %1761 = vmatprep.subr.mxu0 0.0
    %1762 = vmatpush1.msra.mxu0 %v411
    %1763 = vmatprep.subr.mxu0 0.0
    %1764 = vmatpush1.msra.mxu0 %v412
    %1765 = vmatprep.subr.mxu0 0.0
    %1766 = vmatpush1.msra.mxu0 %v413
    %1767 = vmatprep.subr.mxu0 0.0
    %1768 = vmatpush1.msra.mxu0 0.0
    %1769 = vmatprep.subr.mxu0 0.0
    %1770 = vmatpush1.msra.mxu0 0.0
    %1771 = vmatprep.subr.mxu0 0.0
    %1772 = vmatpush1.msra.mxu0 0.0
    %1773 = vmatprep.subr.mxu0 0.0
    %1774 = vmatpush1.msra.mxu0 0.0
    %1775 = vmatprep.subr.mxu0 0.0
    %1776 = vmatpush1.msra.mxu0 0.0
    %1777 = vmatprep.subr.mxu0 0.0
    %1778 = vmatpush1.msra.mxu0 0.0
    %1779 = vmatprep.subr.mxu0 0.0
    %1780 = vmatpush1.msra.mxu0 0.0
    %1781 = vmatprep.subr.mxu0 0.0
    %1782 = vmatpush1.msra.mxu0 0.0
    %1783 = vmatprep.subr.mxu0 0.0
    %1784 = vmatpush1.msra.mxu0 0.0
    %1785 = vmatprep.subr.mxu0 0.0
    %1786 = vmatpush1.msra.mxu0 0.0
    %1787 = vmatprep.subr.mxu0 0.0
    %1788 = vmatpush1.msra.mxu0 0.0
    %1789 = vmatprep.subr.mxu0 0.0
    %1790 = vmatpush1.msra.mxu0 0.0
    %1791 = vmatprep.subr.mxu0 0.0
    %1792 = vmatpush1.msra.mxu0 0.0
    %1793 = vmatprep.subr.mxu0 0.0
    %1794 = vmatpush1.msra.mxu0 0.0
    %1795 = vmatprep.subr.mxu0 0.0
    %1796 = vmatpush1.msra.mxu0 0.0
    %1797 = vmatprep.subr.mxu0 0.0
    %1798 = vmatpush1.msra.mxu0 0.0
    %1799 = vmatprep.subr.mxu0 0.0
    %1800 = vmatpush1.msra.mxu0 0.0
    %1801 = vmatprep.subr.mxu0 0.0
    %1802 = vmatpush1.msra.mxu0 0.0
    %1803 = vmatprep.subr.mxu0 0.0
    %1804 = vmatpush1.msra.mxu0 0.0
    %1805 = vmatprep.subr.mxu0 0.0
    %1806 = vmatpush1.msra.mxu0 0.0
    %1807 = vmatprep.subr.mxu0 0.0
    %1808 = vmatpush1.msra.mxu0 0.0
    %1809 = vmatprep.subr.mxu0 0.0
    %1810 = vmatpush1.msra.mxu0 0.0
    %1811 = vmatprep.subr.mxu0 0.0
    %1812 = vmatpush1.msra.mxu0 0.0
    %1813 = vmatprep.subr.mxu0 0.0
    %1814 = vmatpush1.msra.mxu0 0.0
    %1815 = vmatprep.subr.mxu0 0.0
    %1816 = vmatpush1.msra.mxu0 0.0
    %1817 = vmatprep.subr.mxu0 0.0
    %1818 = vmatpush1.msra.mxu0 0.0
    %1819 = vmatprep.subr.mxu0 0.0
    %1820 = vmatpush1.msra.mxu0 0.0
    %1821 = vmatprep.subr.mxu0 0.0
    %1822 = vmatpush1.msra.mxu0 0.0
    %1823 = vmatprep.mubr.f32.mxu0 0.0
    %1824 = vmatmul.mubr.f32.gmra.mrb[0].mxu0 %v1757
    %v1825 = vpop.f32.mrb[0].mxu0
    %v1826 = vadd.f32 %v419, %v1825
    %v1827 = vpop.f32.mrb[0].mxu0
    %1828 = vdwg.mxu0
    %v1829 = vmax.f32 %v1826, 0.0
    %v1831 = vsel %vm224, %v1829, 0
    %1833 = vmatprep.subr.mxu0 0.0
    %1834 = vmatpush1.msra.mxu0 %v421
    %1835 = vmatprep.subr.mxu0 0.0
    %1836 = vmatpush1.msra.mxu0 %v422
    %1837 = vmatprep.subr.mxu0 0.0
    %1838 = vmatpush1.msra.mxu0 %v423
    %1839 = vmatprep.subr.mxu0 0.0
    %1840 = vmatpush1.msra.mxu0 %v424
    %1841 = vmatprep.subr.mxu0 0.0
    %1842 = vmatpush1.msra.mxu0 %v425
    %1843 = vmatprep.subr.mxu0 0.0
    %1844 = vmatpush1.msra.mxu0 %v426
    %1845 = vmatprep.subr.mxu0 0.0
    %1846 = vmatpush1.msra.mxu0 %v427
    %1847 = vmatprep.subr.mxu0 0.0
    %1848 = vmatpush1.msra.mxu0 %v428
    %1849 = vmatprep.subr.mxu0 0.0
    %1850 = vmatpush1.msra.mxu0 0.0
    %1851 = vmatprep.subr.mxu0 0.0
    %1852 = vmatpush1.msra.mxu0 0.0
    %1853 = vmatprep.subr.mxu0 0.0
    %1854 = vmatpush1.msra.mxu0 0.0
    %1855 = vmatprep.subr.mxu0 0.0
    %1856 = vmatpush1.msra.mxu0 0.0
    %1857 = vmatprep.subr.mxu0 0.0
    %1858 = vmatpush1.msra.mxu0 0.0
    %1859 = vmatprep.subr.mxu0 0.0
    %1860 = vmatpush1.msra.mxu0 0.0
    %1861 = vmatprep.subr.mxu0 0.0
    %1862 = vmatpush1.msra.mxu0 0.0
    %1863 = vmatprep.subr.mxu0 0.0
    %1864 = vmatpush1.msra.mxu0 0.0
    %1865 = vmatprep.subr.mxu0 0.0
    %1866 = vmatpush1.msra.mxu0 0.0
    %1867 = vmatprep.subr.mxu0 0.0
    %1868 = vmatpush1.msra.mxu0 0.0
    %1869 = vmatprep.subr.mxu0 0.0
    %1870 = vmatpush1.msra.mxu0 0.0
    %1871 = vmatprep.subr.mxu0 0.0
    %1872 = vmatpush1.msra.mxu0 0.0
    %1873 = vmatprep.subr.mxu0 0.0
    %1874 = vmatpush1.msra.mxu0 0.0
    %1875 = vmatprep.subr.mxu0 0.0
    %1876 = vmatpush1.msra.mxu0 0.0
    %1877 = vmatprep.subr.mxu0 0.0
    %1878 = vmatpush1.msra.mxu0 0.0
    %1879 = vmatprep.subr.mxu0 0.0
    %1880 = vmatpush1.msra.mxu0 0.0
    %1881 = vmatprep.subr.mxu0 0.0
    %1882 = vmatpush1.msra.mxu0 0.0
    %1883 = vmatprep.subr.mxu0 0.0
    %1884 = vmatpush1.msra.mxu0 0.0
    %1885 = vmatprep.subr.mxu0 0.0
    %1886 = vmatpush1.msra.mxu0 0.0
    %1887 = vmatprep.subr.mxu0 0.0
    %1888 = vmatpush1.msra.mxu0 0.0
    %1889 = vmatprep.subr.mxu0 0.0
    %1890 = vmatpush1.msra.mxu0 0.0
    %1891 = vmatprep.subr.mxu0 0.0
    %1892 = vmatpush1.msra.mxu0 0.0
    %1893 = vmatprep.subr.mxu0 0.0
    %1894 = vmatpush1.msra.mxu0 0.0
    %1895 = vmatprep.subr.mxu0 0.0
    %1896 = vmatpush1.msra.mxu0 0.0
    %1897 = vmatprep.mubr.f32.mxu0 0.0
    %1898 = vmatmul.mubr.f32.gmra.mrb[0].mxu0 %v1831
    %v1899 = vpop.f32.mrb[0].mxu0
    %v1900 = vadd.f32 %v434, %v1899
    %v1901 = vpop.f32.mrb[0].mxu0
    %1902 = vdwg.mxu0
    %s1903 = scalar_lea.vmem %s13, 16
    %v1904 = vld [vmem:[%s1903] sm:$0xf]
    %v1905 = vadd.f32 %v1900, %v1904
    %v1906 = vsel %vm701, %v1905, -inf
    %1907 = vmax.xlane.f32.xlu0 %v1906
    %v1908 = vpop.xlane.xlu0 %1907
    %vm1909 = vcmp.ge.f32.partialorder %v1905, %v1908
    %v1910 = vsel %vm1909, %v437, 128
    %v1911 = vsel %vm701, %v1910, 2147483647
    %v1912 = vand.u32 %v1911, 65535
    %v1913 = vshra.s32 %v1911, 16
    %v1914 = vcvt.s32.f32 %v1912
    %v1915 = vcvt.s32.f32 %v1913
    %1916 = vmin.xlane.f32.xlu0 %v1915
    %v1917 = vpop.xlane.xlu0 %1916
    %vm1918 = vcmp.eq.f32.partialorder %v1915, %v1917
    %v1919 = vsel %vm1918, %v1914, inf
    %1920 = vmin.xlane.f32.xlu0 %v1919
    %v1921 = vpop.xlane.xlu0 %1920
    %v1922 = vcvt.f32.s32 %v1921
    %v1923 = vcvt.f32.s32 %v1917
    %v1924 = vshll.u32 %v1923, 16
    %v1925 = vadd.s32 %v1924, %v1922
    %v1926 = vsel %vm701, %v1900, -inf
    %1927 = vmax.xlane.f32.xlu0 %v1926
    %v1928 = vpop.xlane.xlu0 %1927
    %v1929 = vsub.f32 %v1900, %v1928
    %v1930 = vmul.f32 %v1929, 1.442695
    %v1931 = vpow.pop %v1930
    %v1932 = vsel %vm701, %v1931, 0.0
    %1933 = vadd.xlane.f32.xlu0 %v1932
    %v1934 = vpop.xlane.xlu0 %1933
    %v1935 = vlog2.pop %v1934
    %v1936 = vmul.f32 %v1935, 0.6931472
    %v1937 = vrcp.pop %v1934
    %v1938 = vmul.f32 %v1931, %v1929
    %v1939 = vsel %vm701, %v1938, 0.0
    %1940 = vadd.xlane.f32.xlu0 %v1939
    %v1941 = vpop.xlane.xlu0 %1940
    %v1942 = vmul.f32 %v1937, %v1941
    %v1943 = vsub.f32 %v1936, %v1942
    %vm1944 = vcmp.eq.s32.totalorder %v437, %v1925
    %v1945 = vsel %vm1944, %v1929, 0.0
    %v1946 = vsel %vm701, %v1945, 0.0
    %1947 = vadd.xlane.f32.xlu0 %v1946
    %v1948 = vpop.xlane.xlu0 %1947
    %v1949 = vsub.f32 %v1948, %v1936
    %v1950 = vsel %vm1944, 1, 0
    %v1951 = vcvt.s32.f32 %v1950
    %1953 = vrot.lane.b32.xlu0 %v1752, 48
    %v1954 = vpop.permute.xlu0 %1953
    %v1956 = vsel %vm445, %v1951, %v1954
    %v1958 = vsel %vm447, %v1956, 0
    %1960 = vmatprep.subr.mxu0 0.0
    %1961 = vmatpush1.msra.mxu0 %v397
    %1962 = vmatprep.subr.mxu0 0.0
    %1963 = vmatpush1.msra.mxu0 %v398
    %1964 = vmatprep.subr.mxu0 0.0
    %1965 = vmatpush1.msra.mxu0 %v399
    %1966 = vmatprep.subr.mxu0 0.0
    %1967 = vmatpush1.msra.mxu0 %v400
    %1968 = vmatprep.subr.mxu0 0.0
    %1969 = vmatpush1.msra.mxu0 %v401
    %1970 = vmatprep.subr.mxu0 0.0
    %1971 = vmatpush1.msra.mxu0 %v402
    %1972 = vmatprep.subr.mxu0 0.0
    %1973 = vmatpush1.msra.mxu0 0.0
    %1974 = vmatprep.subr.mxu0 0.0
    %1975 = vmatpush1.msra.mxu0 0.0
    %1976 = vmatprep.subr.mxu0 0.0
    %1977 = vmatpush1.msra.mxu0 0.0
    %1978 = vmatprep.subr.mxu0 0.0
    %1979 = vmatpush1.msra.mxu0 0.0
    %1980 = vmatprep.subr.mxu0 0.0
    %1981 = vmatpush1.msra.mxu0 0.0
    %1982 = vmatprep.subr.mxu0 0.0
    %1983 = vmatpush1.msra.mxu0 0.0
    %1984 = vmatprep.subr.mxu0 0.0
    %1985 = vmatpush1.msra.mxu0 0.0
    %1986 = vmatprep.subr.mxu0 0.0
    %1987 = vmatpush1.msra.mxu0 0.0
    %1988 = vmatprep.subr.mxu0 0.0
    %1989 = vmatpush1.msra.mxu0 0.0
    %1990 = vmatprep.subr.mxu0 0.0
    %1991 = vmatpush1.msra.mxu0 0.0
    %1992 = vmatprep.subr.mxu0 0.0
    %1993 = vmatpush1.msra.mxu0 0.0
    %1994 = vmatprep.subr.mxu0 0.0
    %1995 = vmatpush1.msra.mxu0 0.0
    %1996 = vmatprep.subr.mxu0 0.0
    %1997 = vmatpush1.msra.mxu0 0.0
    %1998 = vmatprep.subr.mxu0 0.0
    %1999 = vmatpush1.msra.mxu0 0.0
    %2000 = vmatprep.subr.mxu0 0.0
    %2001 = vmatpush1.msra.mxu0 0.0
    %2002 = vmatprep.subr.mxu0 0.0
    %2003 = vmatpush1.msra.mxu0 0.0
    %2004 = vmatprep.subr.mxu0 0.0
    %2005 = vmatpush1.msra.mxu0 0.0
    %2006 = vmatprep.subr.mxu0 0.0
    %2007 = vmatpush1.msra.mxu0 0.0
    %2008 = vmatprep.subr.mxu0 0.0
    %2009 = vmatpush1.msra.mxu0 0.0
    %2010 = vmatprep.subr.mxu0 0.0
    %2011 = vmatpush1.msra.mxu0 0.0
    %2012 = vmatprep.subr.mxu0 0.0
    %2013 = vmatpush1.msra.mxu0 0.0
    %2014 = vmatprep.subr.mxu0 0.0
    %2015 = vmatpush1.msra.mxu0 0.0
    %2016 = vmatprep.subr.mxu0 0.0
    %2017 = vmatpush1.msra.mxu0 0.0
    %2018 = vmatprep.subr.mxu0 0.0
    %2019 = vmatpush1.msra.mxu0 0.0
    %2020 = vmatprep.subr.mxu0 0.0
    %2021 = vmatpush1.msra.mxu0 0.0
    %2022 = vmatprep.subr.mxu0 0.0
    %2023 = vmatpush1.msra.mxu0 0.0
    %2024 = vmatprep.mubr.f32.mxu0 0.0
    %2025 = vmatmul.mubr.f32.gmra.mrb[0].mxu0 %v1958
    %v2026 = vpop.f32.mrb[0].mxu0
    %v2027 = vadd.f32 %v408, %v2026
    %v2028 = vpop.f32.mrb[0].mxu0
    %2029 = vdwg.mxu0
    %v2030 = vxor.u32 %v2027, 2147483648
    %v2031 = vmul.f32 %v2030, 1.442695
    %v2032 = vpow.pop %v2031
    %v2033 = vadd.f32 %v2032, 1.0
    %v2034 = vrcp.pop %v2033
    %v2035 = vmul.f32 1.0, %v2034
    %v2036 = vtanh.pop %v2027
    %v2037 = vmul.f32 %v2035, %v1746
    %2039 = vrot.lane.b32.xlu0 %v2036, 64
    %v2040 = vpop.permute.xlu0 %2039
    %v2042 = vmul.f32 %v2035, %v2040
    %2044 = vrot.lane.b32.xlu0 %v2042, 32
    %v2045 = vpop.permute.xlu0 %2044
    %v2047 = vadd.f32 %v2037, %v2045
    %v2048 = vtanh.pop %v2047
    %2050 = vrot.lane.b32.xlu0 %v2048, 64
    %v2051 = vpop.permute.xlu0 %2050
    %v2053 = vmul.f32 %v2035, %v2051
    %v2054 = vmax.f32 %v2053, 0.0
    %2056 = vrot.lane.b32.xlu0 %v2054, 32
    %v2057 = vpop.permute.xlu0 %2056
    %v2058 = vsel %vm134, %v2057, 0
    %2060 = vmatprep.subr.mxu0 0.0
    %2061 = vmatpush1.msra.mxu0 %v410
    %2062 = vmatprep.subr.mxu0 0.0
    %2063 = vmatpush1.msra.mxu0 %v411
    %2064 = vmatprep.subr.mxu0 0.0
    %2065 = vmatpush1.msra.mxu0 %v412
    %2066 = vmatprep.subr.mxu0 0.0
    %2067 = vmatpush1.msra.mxu0 %v413
    %2068 = vmatprep.subr.mxu0 0.0
    %2069 = vmatpush1.msra.mxu0 0.0
    %2070 = vmatprep.subr.mxu0 0.0
    %2071 = vmatpush1.msra.mxu0 0.0
    %2072 = vmatprep.subr.mxu0 0.0
    %2073 = vmatpush1.msra.mxu0 0.0
    %2074 = vmatprep.subr.mxu0 0.0
    %2075 = vmatpush1.msra.mxu0 0.0
    %2076 = vmatprep.subr.mxu0 0.0
    %2077 = vmatpush1.msra.mxu0 0.0
    %2078 = vmatprep.subr.mxu0 0.0
    %2079 = vmatpush1.msra.mxu0 0.0
    %2080 = vmatprep.subr.mxu0 0.0
    %2081 = vmatpush1.msra.mxu0 0.0
    %2082 = vmatprep.subr.mxu0 0.0
    %2083 = vmatpush1.msra.mxu0 0.0
    %2084 = vmatprep.subr.mxu0 0.0
    %2085 = vmatpush1.msra.mxu0 0.0
    %2086 = vmatprep.subr.mxu0 0.0
    %2087 = vmatpush1.msra.mxu0 0.0
    %2088 = vmatprep.subr.mxu0 0.0
    %2089 = vmatpush1.msra.mxu0 0.0
    %2090 = vmatprep.subr.mxu0 0.0
    %2091 = vmatpush1.msra.mxu0 0.0
    %2092 = vmatprep.subr.mxu0 0.0
    %2093 = vmatpush1.msra.mxu0 0.0
    %2094 = vmatprep.subr.mxu0 0.0
    %2095 = vmatpush1.msra.mxu0 0.0
    %2096 = vmatprep.subr.mxu0 0.0
    %2097 = vmatpush1.msra.mxu0 0.0
    %2098 = vmatprep.subr.mxu0 0.0
    %2099 = vmatpush1.msra.mxu0 0.0
    %2100 = vmatprep.subr.mxu0 0.0
    %2101 = vmatpush1.msra.mxu0 0.0
    %2102 = vmatprep.subr.mxu0 0.0
    %2103 = vmatpush1.msra.mxu0 0.0
    %2104 = vmatprep.subr.mxu0 0.0
    %2105 = vmatpush1.msra.mxu0 0.0
    %2106 = vmatprep.subr.mxu0 0.0
    %2107 = vmatpush1.msra.mxu0 0.0
    %2108 = vmatprep.subr.mxu0 0.0
    %2109 = vmatpush1.msra.mxu0 0.0
    %2110 = vmatprep.subr.mxu0 0.0
    %2111 = vmatpush1.msra.mxu0 0.0
    %2112 = vmatprep.subr.mxu0 0.0
    %2113 = vmatpush1.msra.mxu0 0.0
    %2114 = vmatprep.subr.mxu0 0.0
    %2115 = vmatpush1.msra.mxu0 0.0
    %2116 = vmatprep.subr.mxu0 0.0
    %2117 = vmatpush1.msra.mxu0 0.0
    %2118 = vmatprep.subr.mxu0 0.0
    %2119 = vmatpush1.msra.mxu0 0.0
    %2120 = vmatprep.subr.mxu0 0.0
    %2121 = vmatpush1.msra.mxu0 0.0
    %2122 = vmatprep.subr.mxu0 0.0
    %2123 = vmatpush1.msra.mxu0 0.0
    %2124 = vmatprep.mubr.f32.mxu0 0.0
    %2125 = vmatmul.mubr.f32.gmra.mrb[0].mxu0 %v2058
    %v2126 = vpop.f32.mrb[0].mxu0
    %v2127 = vadd.f32 %v419, %v2126
    %v2128 = vpop.f32.mrb[0].mxu0
    %2129 = vdwg.mxu0
    %v2130 = vmax.f32 %v2127, 0.0
    %v2132 = vsel %vm224, %v2130, 0
    %2134 = vmatprep.subr.mxu0 0.0
    %2135 = vmatpush1.msra.mxu0 %v421
    %2136 = vmatprep.subr.mxu0 0.0
    %2137 = vmatpush1.msra.mxu0 %v422
    %2138 = vmatprep.subr.mxu0 0.0
    %2139 = vmatpush1.msra.mxu0 %v423
    %2140 = vmatprep.subr.mxu0 0.0
    %2141 = vmatpush1.msra.mxu0 %v424
    %2142 = vmatprep.subr.mxu0 0.0
    %2143 = vmatpush1.msra.mxu0 %v425
    %2144 = vmatprep.subr.mxu0 0.0
    %2145 = vmatpush1.msra.mxu0 %v426
    %2146 = vmatprep.subr.mxu0 0.0
    %2147 = vmatpush1.msra.mxu0 %v427
    %2148 = vmatprep.subr.mxu0 0.0
    %2149 = vmatpush1.msra.mxu0 %v428
    %2150 = vmatprep.subr.mxu0 0.0
    %2151 = vmatpush1.msra.mxu0 0.0
    %2152 = vmatprep.subr.mxu0 0.0
    %2153 = vmatpush1.msra.mxu0 0.0
    %2154 = vmatprep.subr.mxu0 0.0
    %2155 = vmatpush1.msra.mxu0 0.0
    %2156 = vmatprep.subr.mxu0 0.0
    %2157 = vmatpush1.msra.mxu0 0.0
    %2158 = vmatprep.subr.mxu0 0.0
    %2159 = vmatpush1.msra.mxu0 0.0
    %2160 = vmatprep.subr.mxu0 0.0
    %2161 = vmatpush1.msra.mxu0 0.0
    %2162 = vmatprep.subr.mxu0 0.0
    %2163 = vmatpush1.msra.mxu0 0.0
    %2164 = vmatprep.subr.mxu0 0.0
    %2165 = vmatpush1.msra.mxu0 0.0
    %2166 = vmatprep.subr.mxu0 0.0
    %2167 = vmatpush1.msra.mxu0 0.0
    %2168 = vmatprep.subr.mxu0 0.0
    %2169 = vmatpush1.msra.mxu0 0.0
    %2170 = vmatprep.subr.mxu0 0.0
    %2171 = vmatpush1.msra.mxu0 0.0
    %2172 = vmatprep.subr.mxu0 0.0
    %2173 = vmatpush1.msra.mxu0 0.0
    %2174 = vmatprep.subr.mxu0 0.0
    %2175 = vmatpush1.msra.mxu0 0.0
    %2176 = vmatprep.subr.mxu0 0.0
    %2177 = vmatpush1.msra.mxu0 0.0
    %2178 = vmatprep.subr.mxu0 0.0
    %2179 = vmatpush1.msra.mxu0 0.0
    %2180 = vmatprep.subr.mxu0 0.0
    %2181 = vmatpush1.msra.mxu0 0.0
    %2182 = vmatprep.subr.mxu0 0.0
    %2183 = vmatpush1.msra.mxu0 0.0
    %2184 = vmatprep.subr.mxu0 0.0
    %2185 = vmatpush1.msra.mxu0 0.0
    %2186 = vmatprep.subr.mxu0 0.0
    %2187 = vmatpush1.msra.mxu0 0.0
    %2188 = vmatprep.subr.mxu0 0.0
    %2189 = vmatpush1.msra.mxu0 0.0
    %2190 = vmatprep.subr.mxu0 0.0
    %2191 = vmatpush1.msra.mxu0 0.0
    %2192 = vmatprep.subr.mxu0 0.0
    %2193 = vmatpush1.msra.mxu0 0.0
    %2194 = vmatprep.subr.mxu0 0.0
    %2195 = vmatpush1.msra.mxu0 0.0
    %2196 = vmatprep.subr.mxu0 0.0
    %2197 = vmatpush1.msra.mxu0 0.0
    %2198 = vmatprep.mubr.f32.mxu0 0.0
    %2199 = vmatmul.mubr.f32.gmra.mrb[0].mxu0 %v2132
    %v2200 = vpop.f32.mrb[0].mxu0
    %v2201 = vadd.f32 %v434, %v2200
    %v2202 = vpop.f32.mrb[0].mxu0
    %2203 = vdwg.mxu0
    %s2204 = scalar_lea.vmem %s13, 20
    %v2205 = vld [vmem:[%s2204] sm:$0xf]
    %v2206 = vadd.f32 %v2201, %v2205
    %v2207 = vsel %vm701, %v2206, -inf
    %2208 = vmax.xlane.f32.xlu0 %v2207
    %v2209 = vpop.xlane.xlu0 %2208
    %vm2210 = vcmp.ge.f32.partialorder %v2206, %v2209
    %v2211 = vsel %vm2210, %v437, 128
    %v2212 = vsel %vm701, %v2211, 2147483647
    %v2213 = vand.u32 %v2212, 65535
    %v2214 = vshra.s32 %v2212, 16
    %v2215 = vcvt.s32.f32 %v2213
    %v2216 = vcvt.s32.f32 %v2214
    %2217 = vmin.xlane.f32.xlu0 %v2216
    %v2218 = vpop.xlane.xlu0 %2217
    %vm2219 = vcmp.eq.f32.partialorder %v2216, %v2218
    %v2220 = vsel %vm2219, %v2215, inf
    %2221 = vmin.xlane.f32.xlu0 %v2220
    %v2222 = vpop.xlane.xlu0 %2221
    %v2223 = vcvt.f32.s32 %v2222
    %v2224 = vcvt.f32.s32 %v2218
    %v2225 = vshll.u32 %v2224, 16
    %v2226 = vadd.s32 %v2225, %v2223
    %v2227 = vsel %vm701, %v2201, -inf
    %2228 = vmax.xlane.f32.xlu0 %v2227
    %v2229 = vpop.xlane.xlu0 %2228
    %v2230 = vsub.f32 %v2201, %v2229
    %v2231 = vmul.f32 %v2230, 1.442695
    %v2232 = vpow.pop %v2231
    %v2233 = vsel %vm701, %v2232, 0.0
    %2234 = vadd.xlane.f32.xlu0 %v2233
    %v2235 = vpop.xlane.xlu0 %2234
    %v2236 = vlog2.pop %v2235
    %v2237 = vmul.f32 %v2236, 0.6931472
    %v2238 = vrcp.pop %v2235
    %v2239 = vmul.f32 %v2232, %v2230
    %v2240 = vsel %vm701, %v2239, 0.0
    %2241 = vadd.xlane.f32.xlu0 %v2240
    %v2242 = vpop.xlane.xlu0 %2241
    %v2243 = vmul.f32 %v2238, %v2242
    %v2244 = vsub.f32 %v2237, %v2243
    %vm2245 = vcmp.eq.s32.totalorder %v437, %v2226
    %v2246 = vsel %vm2245, %v2230, 0.0
    %v2247 = vsel %vm701, %v2246, 0.0
    %2248 = vadd.xlane.f32.xlu0 %v2247
    %v2249 = vpop.xlane.xlu0 %2248
    %v2250 = vsub.f32 %v2249, %v2237
    %v2251 = vsel %vm2245, 1, 0
    %v2252 = vcvt.s32.f32 %v2251
    %2254 = vrot.lane.b32.xlu0 %v2053, 48
    %v2255 = vpop.permute.xlu0 %2254
    %v2257 = vsel %vm445, %v2252, %v2255
    %v2259 = vsel %vm447, %v2257, 0
    %2261 = vmatprep.subr.mxu0 0.0
    %2262 = vmatpush1.msra.mxu0 %v397
    %2263 = vmatprep.subr.mxu0 0.0
    %2264 = vmatpush1.msra.mxu0 %v398
    %2265 = vmatprep.subr.mxu0 0.0
    %2266 = vmatpush1.msra.mxu0 %v399
    %2267 = vmatprep.subr.mxu0 0.0
    %2268 = vmatpush1.msra.mxu0 %v400
    %2269 = vmatprep.subr.mxu0 0.0
    %2270 = vmatpush1.msra.mxu0 %v401
    %2271 = vmatprep.subr.mxu0 0.0
    %2272 = vmatpush1.msra.mxu0 %v402
    %2273 = vmatprep.subr.mxu0 0.0
    %2274 = vmatpush1.msra.mxu0 0.0
    %2275 = vmatprep.subr.mxu0 0.0
    %2276 = vmatpush1.msra.mxu0 0.0
    %2277 = vmatprep.subr.mxu0 0.0
    %2278 = vmatpush1.msra.mxu0 0.0
    %2279 = vmatprep.subr.mxu0 0.0
    %2280 = vmatpush1.msra.mxu0 0.0
    %2281 = vmatprep.subr.mxu0 0.0
    %2282 = vmatpush1.msra.mxu0 0.0
    %2283 = vmatprep.subr.mxu0 0.0
    %2284 = vmatpush1.msra.mxu0 0.0
    %2285 = vmatprep.subr.mxu0 0.0
    %2286 = vmatpush1.msra.mxu0 0.0
    %2287 = vmatprep.subr.mxu0 0.0
    %2288 = vmatpush1.msra.mxu0 0.0
    %2289 = vmatprep.subr.mxu0 0.0
    %2290 = vmatpush1.msra.mxu0 0.0
    %2291 = vmatprep.subr.mxu0 0.0
    %2292 = vmatpush1.msra.mxu0 0.0
    %2293 = vmatprep.subr.mxu0 0.0
    %2294 = vmatpush1.msra.mxu0 0.0
    %2295 = vmatprep.subr.mxu0 0.0
    %2296 = vmatpush1.msra.mxu0 0.0
    %2297 = vmatprep.subr.mxu0 0.0
    %2298 = vmatpush1.msra.mxu0 0.0
    %2299 = vmatprep.subr.mxu0 0.0
    %2300 = vmatpush1.msra.mxu0 0.0
    %2301 = vmatprep.subr.mxu0 0.0
    %2302 = vmatpush1.msra.mxu0 0.0
    %2303 = vmatprep.subr.mxu0 0.0
    %2304 = vmatpush1.msra.mxu0 0.0
    %2305 = vmatprep.subr.mxu0 0.0
    %2306 = vmatpush1.msra.mxu0 0.0
    %2307 = vmatprep.subr.mxu0 0.0
    %2308 = vmatpush1.msra.mxu0 0.0
    %2309 = vmatprep.subr.mxu0 0.0
    %2310 = vmatpush1.msra.mxu0 0.0
    %2311 = vmatprep.subr.mxu0 0.0
    %2312 = vmatpush1.msra.mxu0 0.0
    %2313 = vmatprep.subr.mxu0 0.0
    %2314 = vmatpush1.msra.mxu0 0.0
    %2315 = vmatprep.subr.mxu0 0.0
    %2316 = vmatpush1.msra.mxu0 0.0
    %2317 = vmatprep.subr.mxu0 0.0
    %2318 = vmatpush1.msra.mxu0 0.0
    %2319 = vmatprep.subr.mxu0 0.0
    %2320 = vmatpush1.msra.mxu0 0.0
    %2321 = vmatprep.subr.mxu0 0.0
    %2322 = vmatpush1.msra.mxu0 0.0
    %2323 = vmatprep.subr.mxu0 0.0
    %2324 = vmatpush1.msra.mxu0 0.0
    %2325 = vmatprep.mubr.f32.mxu0 0.0
    %2326 = vmatmul.mubr.f32.gmra.mrb[0].mxu0 %v2259
    %v2327 = vpop.f32.mrb[0].mxu0
    %v2328 = vadd.f32 %v408, %v2327
    %v2329 = vpop.f32.mrb[0].mxu0
    %2330 = vdwg.mxu0
    %v2331 = vxor.u32 %v2328, 2147483648
    %v2332 = vmul.f32 %v2331, 1.442695
    %v2333 = vpow.pop %v2332
    %v2334 = vadd.f32 %v2333, 1.0
    %v2335 = vrcp.pop %v2334
    %v2336 = vmul.f32 1.0, %v2335
    %v2337 = vtanh.pop %v2328
    %v2338 = vmul.f32 %v2336, %v2047
    %2340 = vrot.lane.b32.xlu0 %v2337, 64
    %v2341 = vpop.permute.xlu0 %2340
    %v2343 = vmul.f32 %v2336, %v2341
    %2345 = vrot.lane.b32.xlu0 %v2343, 32
    %v2346 = vpop.permute.xlu0 %2345
    %v2348 = vadd.f32 %v2338, %v2346
    %v2349 = vtanh.pop %v2348
    %2351 = vrot.lane.b32.xlu0 %v2349, 64
    %v2352 = vpop.permute.xlu0 %2351
    %v2354 = vmul.f32 %v2336, %v2352
    %v2355 = vmax.f32 %v2354, 0.0
    %2357 = vrot.lane.b32.xlu0 %v2355, 32
    %v2358 = vpop.permute.xlu0 %2357
    %v2359 = vsel %vm134, %v2358, 0
    %2361 = vmatprep.subr.mxu0 0.0
    %2362 = vmatpush1.msra.mxu0 %v410
    %2363 = vmatprep.subr.mxu0 0.0
    %2364 = vmatpush1.msra.mxu0 %v411
    %2365 = vmatprep.subr.mxu0 0.0
    %2366 = vmatpush1.msra.mxu0 %v412
    %2367 = vmatprep.subr.mxu0 0.0
    %2368 = vmatpush1.msra.mxu0 %v413
    %2369 = vmatprep.subr.mxu0 0.0
    %2370 = vmatpush1.msra.mxu0 0.0
    %2371 = vmatprep.subr.mxu0 0.0
    %2372 = vmatpush1.msra.mxu0 0.0
    %2373 = vmatprep.subr.mxu0 0.0
    %2374 = vmatpush1.msra.mxu0 0.0
    %2375 = vmatprep.subr.mxu0 0.0
    %2376 = vmatpush1.msra.mxu0 0.0
    %2377 = vmatprep.subr.mxu0 0.0
    %2378 = vmatpush1.msra.mxu0 0.0
    %2379 = vmatprep.subr.mxu0 0.0
    %2380 = vmatpush1.msra.mxu0 0.0
    %2381 = vmatprep.subr.mxu0 0.0
    %2382 = vmatpush1.msra.mxu0 0.0
    %2383 = vmatprep.subr.mxu0 0.0
    %2384 = vmatpush1.msra.mxu0 0.0
    %2385 = vmatprep.subr.mxu0 0.0
    %2386 = vmatpush1.msra.mxu0 0.0
    %2387 = vmatprep.subr.mxu0 0.0
    %2388 = vmatpush1.msra.mxu0 0.0
    %2389 = vmatprep.subr.mxu0 0.0
    %2390 = vmatpush1.msra.mxu0 0.0
    %2391 = vmatprep.subr.mxu0 0.0
    %2392 = vmatpush1.msra.mxu0 0.0
    %2393 = vmatprep.subr.mxu0 0.0
    %2394 = vmatpush1.msra.mxu0 0.0
    %2395 = vmatprep.subr.mxu0 0.0
    %2396 = vmatpush1.msra.mxu0 0.0
    %2397 = vmatprep.subr.mxu0 0.0
    %2398 = vmatpush1.msra.mxu0 0.0
    %2399 = vmatprep.subr.mxu0 0.0
    %2400 = vmatpush1.msra.mxu0 0.0
    %2401 = vmatprep.subr.mxu0 0.0
    %2402 = vmatpush1.msra.mxu0 0.0
    %2403 = vmatprep.subr.mxu0 0.0
    %2404 = vmatpush1.msra.mxu0 0.0
    %2405 = vmatprep.subr.mxu0 0.0
    %2406 = vmatpush1.msra.mxu0 0.0
    %2407 = vmatprep.subr.mxu0 0.0
    %2408 = vmatpush1.msra.mxu0 0.0
    %2409 = vmatprep.subr.mxu0 0.0
    %2410 = vmatpush1.msra.mxu0 0.0
    %2411 = vmatprep.subr.mxu0 0.0
    %2412 = vmatpush1.msra.mxu0 0.0
    %2413 = vmatprep.subr.mxu0 0.0
    %2414 = vmatpush1.msra.mxu0 0.0
    %2415 = vmatprep.subr.mxu0 0.0
    %2416 = vmatpush1.msra.mxu0 0.0
    %2417 = vmatprep.subr.mxu0 0.0
    %2418 = vmatpush1.msra.mxu0 0.0
    %2419 = vmatprep.subr.mxu0 0.0
    %2420 = vmatpush1.msra.mxu0 0.0
    %2421 = vmatprep.subr.mxu0 0.0
    %2422 = vmatpush1.msra.mxu0 0.0
    %2423 = vmatprep.subr.mxu0 0.0
    %2424 = vmatpush1.msra.mxu0 0.0
    %2425 = vmatprep.mubr.f32.mxu0 0.0
    %2426 = vmatmul.mubr.f32.gmra.mrb[0].mxu0 %v2359
    %v2427 = vpop.f32.mrb[0].mxu0
    %v2428 = vadd.f32 %v419, %v2427
    %v2429 = vpop.f32.mrb[0].mxu0
    %2430 = vdwg.mxu0
    %v2431 = vmax.f32 %v2428, 0.0
    %v2433 = vsel %vm224, %v2431, 0
    %2435 = vmatprep.subr.mxu0 0.0
    %2436 = vmatpush1.msra.mxu0 %v421
    %2437 = vmatprep.subr.mxu0 0.0
    %2438 = vmatpush1.msra.mxu0 %v422
    %2439 = vmatprep.subr.mxu0 0.0
    %2440 = vmatpush1.msra.mxu0 %v423
    %2441 = vmatprep.subr.mxu0 0.0
    %2442 = vmatpush1.msra.mxu0 %v424
    %2443 = vmatprep.subr.mxu0 0.0
    %2444 = vmatpush1.msra.mxu0 %v425
    %2445 = vmatprep.subr.mxu0 0.0
    %2446 = vmatpush1.msra.mxu0 %v426
    %2447 = vmatprep.subr.mxu0 0.0
    %2448 = vmatpush1.msra.mxu0 %v427
    %2449 = vmatprep.subr.mxu0 0.0
    %2450 = vmatpush1.msra.mxu0 %v428
    %2451 = vmatprep.subr.mxu0 0.0
    %2452 = vmatpush1.msra.mxu0 0.0
    %2453 = vmatprep.subr.mxu0 0.0
    %2454 = vmatpush1.msra.mxu0 0.0
    %2455 = vmatprep.subr.mxu0 0.0
    %2456 = vmatpush1.msra.mxu0 0.0
    %2457 = vmatprep.subr.mxu0 0.0
    %2458 = vmatpush1.msra.mxu0 0.0
    %2459 = vmatprep.subr.mxu0 0.0
    %2460 = vmatpush1.msra.mxu0 0.0
    %2461 = vmatprep.subr.mxu0 0.0
    %2462 = vmatpush1.msra.mxu0 0.0
    %2463 = vmatprep.subr.mxu0 0.0
    %2464 = vmatpush1.msra.mxu0 0.0
    %2465 = vmatprep.subr.mxu0 0.0
    %2466 = vmatpush1.msra.mxu0 0.0
    %2467 = vmatprep.subr.mxu0 0.0
    %2468 = vmatpush1.msra.mxu0 0.0
    %2469 = vmatprep.subr.mxu0 0.0
    %2470 = vmatpush1.msra.mxu0 0.0
    %2471 = vmatprep.subr.mxu0 0.0
    %2472 = vmatpush1.msra.mxu0 0.0
    %2473 = vmatprep.subr.mxu0 0.0
    %2474 = vmatpush1.msra.mxu0 0.0
    %2475 = vmatprep.subr.mxu0 0.0
    %2476 = vmatpush1.msra.mxu0 0.0
    %2477 = vmatprep.subr.mxu0 0.0
    %2478 = vmatpush1.msra.mxu0 0.0
    %2479 = vmatprep.subr.mxu0 0.0
    %2480 = vmatpush1.msra.mxu0 0.0
    %2481 = vmatprep.subr.mxu0 0.0
    %2482 = vmatpush1.msra.mxu0 0.0
    %2483 = vmatprep.subr.mxu0 0.0
    %2484 = vmatpush1.msra.mxu0 0.0
    %2485 = vmatprep.subr.mxu0 0.0
    %2486 = vmatpush1.msra.mxu0 0.0
    %2487 = vmatprep.subr.mxu0 0.0
    %2488 = vmatpush1.msra.mxu0 0.0
    %2489 = vmatprep.subr.mxu0 0.0
    %2490 = vmatpush1.msra.mxu0 0.0
    %2491 = vmatprep.subr.mxu0 0.0
    %2492 = vmatpush1.msra.mxu0 0.0
    %2493 = vmatprep.subr.mxu0 0.0
    %2494 = vmatpush1.msra.mxu0 0.0
    %2495 = vmatprep.subr.mxu0 0.0
    %2496 = vmatpush1.msra.mxu0 0.0
    %2497 = vmatprep.subr.mxu0 0.0
    %2498 = vmatpush1.msra.mxu0 0.0
    %2499 = vmatprep.mubr.f32.mxu0 0.0
    %2500 = vmatmul.mubr.f32.gmra.mrb[0].mxu0 %v2433
    %v2501 = vpop.f32.mrb[0].mxu0
    %v2502 = vadd.f32 %v434, %v2501
    %v2503 = vpop.f32.mrb[0].mxu0
    %2504 = vdwg.mxu0
    %s2505 = scalar_lea.vmem %s13, 24
    %v2506 = vld [vmem:[%s2505] sm:$0xf]
    %v2507 = vadd.f32 %v2502, %v2506
    %v2508 = vsel %vm701, %v2507, -inf
    %2509 = vmax.xlane.f32.xlu0 %v2508
    %v2510 = vpop.xlane.xlu0 %2509
    %vm2511 = vcmp.ge.f32.partialorder %v2507, %v2510
    %v2512 = vsel %vm2511, %v437, 128
    %v2513 = vsel %vm701, %v2512, 2147483647
    %v2514 = vand.u32 %v2513, 65535
    %v2515 = vshra.s32 %v2513, 16
    %v2516 = vcvt.s32.f32 %v2514
    %v2517 = vcvt.s32.f32 %v2515
    %2518 = vmin.xlane.f32.xlu0 %v2517
    %v2519 = vpop.xlane.xlu0 %2518
    %vm2520 = vcmp.eq.f32.partialorder %v2517, %v2519
    %v2521 = vsel %vm2520, %v2516, inf
    %2522 = vmin.xlane.f32.xlu0 %v2521
    %v2523 = vpop.xlane.xlu0 %2522
    %v2524 = vcvt.f32.s32 %v2523
    %v2525 = vcvt.f32.s32 %v2519
    %v2526 = vshll.u32 %v2525, 16
    %v2527 = vadd.s32 %v2526, %v2524
    %v2528 = vsel %vm701, %v2502, -inf
    %2529 = vmax.xlane.f32.xlu0 %v2528
    %v2530 = vpop.xlane.xlu0 %2529
    %v2531 = vsub.f32 %v2502, %v2530
    %v2532 = vmul.f32 %v2531, 1.442695
    %v2533 = vpow.pop %v2532
    %v2534 = vsel %vm701, %v2533, 0.0
    %2535 = vadd.xlane.f32.xlu0 %v2534
    %v2536 = vpop.xlane.xlu0 %2535
    %v2537 = vlog2.pop %v2536
    %v2538 = vmul.f32 %v2537, 0.6931472
    %v2539 = vrcp.pop %v2536
    %v2540 = vmul.f32 %v2533, %v2531
    %v2541 = vsel %vm701, %v2540, 0.0
    %2542 = vadd.xlane.f32.xlu0 %v2541
    %v2543 = vpop.xlane.xlu0 %2542
    %v2544 = vmul.f32 %v2539, %v2543
    %v2545 = vsub.f32 %v2538, %v2544
    %vm2546 = vcmp.eq.s32.totalorder %v437, %v2527
    %v2547 = vsel %vm2546, %v2531, 0.0
    %v2548 = vsel %vm701, %v2547, 0.0
    %2549 = vadd.xlane.f32.xlu0 %v2548
    %v2550 = vpop.xlane.xlu0 %2549
    %v2551 = vsub.f32 %v2550, %v2538
    %v2552 = vsel %vm2546, 1, 0
    %v2553 = vcvt.s32.f32 %v2552
    %2555 = vrot.lane.b32.xlu0 %v2354, 48
    %v2556 = vpop.permute.xlu0 %2555
    %v2558 = vsel %vm445, %v2553, %v2556
    %v2560 = vsel %vm447, %v2558, 0
    %2562 = vmatprep.subr.mxu0 0.0
    %2563 = vmatpush1.msra.mxu0 %v397
    %2564 = vmatprep.subr.mxu0 0.0
    %2565 = vmatpush1.msra.mxu0 %v398
    %2566 = vmatprep.subr.mxu0 0.0
    %2567 = vmatpush1.msra.mxu0 %v399
    %2568 = vmatprep.subr.mxu0 0.0
    %2569 = vmatpush1.msra.mxu0 %v400
    %2570 = vmatprep.subr.mxu0 0.0
    %2571 = vmatpush1.msra.mxu0 %v401
    %2572 = vmatprep.subr.mxu0 0.0
    %2573 = vmatpush1.msra.mxu0 %v402
    %2574 = vmatprep.subr.mxu0 0.0
    %2575 = vmatpush1.msra.mxu0 0.0
    %2576 = vmatprep.subr.mxu0 0.0
    %2577 = vmatpush1.msra.mxu0 0.0
    %2578 = vmatprep.subr.mxu0 0.0
    %2579 = vmatpush1.msra.mxu0 0.0
    %2580 = vmatprep.subr.mxu0 0.0
    %2581 = vmatpush1.msra.mxu0 0.0
    %2582 = vmatprep.subr.mxu0 0.0
    %2583 = vmatpush1.msra.mxu0 0.0
    %2584 = vmatprep.subr.mxu0 0.0
    %2585 = vmatpush1.msra.mxu0 0.0
    %2586 = vmatprep.subr.mxu0 0.0
    %2587 = vmatpush1.msra.mxu0 0.0
    %2588 = vmatprep.subr.mxu0 0.0
    %2589 = vmatpush1.msra.mxu0 0.0
    %2590 = vmatprep.subr.mxu0 0.0
    %2591 = vmatpush1.msra.mxu0 0.0
    %2592 = vmatprep.subr.mxu0 0.0
    %2593 = vmatpush1.msra.mxu0 0.0
    %2594 = vmatprep.subr.mxu0 0.0
    %2595 = vmatpush1.msra.mxu0 0.0
    %2596 = vmatprep.subr.mxu0 0.0
    %2597 = vmatpush1.msra.mxu0 0.0
    %2598 = vmatprep.subr.mxu0 0.0
    %2599 = vmatpush1.msra.mxu0 0.0
    %2600 = vmatprep.subr.mxu0 0.0
    %2601 = vmatpush1.msra.mxu0 0.0
    %2602 = vmatprep.subr.mxu0 0.0
    %2603 = vmatpush1.msra.mxu0 0.0
    %2604 = vmatprep.subr.mxu0 0.0
    %2605 = vmatpush1.msra.mxu0 0.0
    %2606 = vmatprep.subr.mxu0 0.0
    %2607 = vmatpush1.msra.mxu0 0.0
    %2608 = vmatprep.subr.mxu0 0.0
    %2609 = vmatpush1.msra.mxu0 0.0
    %2610 = vmatprep.subr.mxu0 0.0
    %2611 = vmatpush1.msra.mxu0 0.0
    %2612 = vmatprep.subr.mxu0 0.0
    %2613 = vmatpush1.msra.mxu0 0.0
    %2614 = vmatprep.subr.mxu0 0.0
    %2615 = vmatpush1.msra.mxu0 0.0
    %2616 = vmatprep.subr.mxu0 0.0
    %2617 = vmatpush1.msra.mxu0 0.0
    %2618 = vmatprep.subr.mxu0 0.0
    %2619 = vmatpush1.msra.mxu0 0.0
    %2620 = vmatprep.subr.mxu0 0.0
    %2621 = vmatpush1.msra.mxu0 0.0
    %2622 = vmatprep.subr.mxu0 0.0
    %2623 = vmatpush1.msra.mxu0 0.0
    %2624 = vmatprep.subr.mxu0 0.0
    %2625 = vmatpush1.msra.mxu0 0.0
    %2626 = vmatprep.mubr.f32.mxu0 0.0
    %2627 = vmatmul.mubr.f32.gmra.mrb[0].mxu0 %v2560
    %v2628 = vpop.f32.mrb[0].mxu0
    %v2629 = vadd.f32 %v408, %v2628
    %v2630 = vpop.f32.mrb[0].mxu0
    %2631 = vdwg.mxu0
    %v2632 = vxor.u32 %v2629, 2147483648
    %v2633 = vmul.f32 %v2632, 1.442695
    %v2634 = vpow.pop %v2633
    %v2635 = vadd.f32 %v2634, 1.0
    %v2636 = vrcp.pop %v2635
    %v2637 = vmul.f32 1.0, %v2636
    %v2638 = vtanh.pop %v2629
    %v2639 = vmul.f32 %v2637, %v2348
    %2641 = vrot.lane.b32.xlu0 %v2638, 64
    %v2642 = vpop.permute.xlu0 %2641
    %v2644 = vmul.f32 %v2637, %v2642
    %2646 = vrot.lane.b32.xlu0 %v2644, 32
    %v2647 = vpop.permute.xlu0 %2646
    %v2649 = vadd.f32 %v2639, %v2647
    %v2650 = vtanh.pop %v2649
    %2652 = vrot.lane.b32.xlu0 %v2650, 64
    %v2653 = vpop.permute.xlu0 %2652
    %v2655 = vmul.f32 %v2637, %v2653
    %v2656 = vmax.f32 %v2655, 0.0
    %2658 = vrot.lane.b32.xlu0 %v2656, 32
    %v2659 = vpop.permute.xlu0 %2658
    %v2660 = vsel %vm134, %v2659, 0
    %2662 = vmatprep.subr.mxu0 0.0
    %2663 = vmatpush1.msra.mxu0 %v410
    %2664 = vmatprep.subr.mxu0 0.0
    %2665 = vmatpush1.msra.mxu0 %v411
    %2666 = vmatprep.subr.mxu0 0.0
    %2667 = vmatpush1.msra.mxu0 %v412
    %2668 = vmatprep.subr.mxu0 0.0
    %2669 = vmatpush1.msra.mxu0 %v413
    %2670 = vmatprep.subr.mxu0 0.0
    %2671 = vmatpush1.msra.mxu0 0.0
    %2672 = vmatprep.subr.mxu0 0.0
    %2673 = vmatpush1.msra.mxu0 0.0
    %2674 = vmatprep.subr.mxu0 0.0
    %2675 = vmatpush1.msra.mxu0 0.0
    %2676 = vmatprep.subr.mxu0 0.0
    %2677 = vmatpush1.msra.mxu0 0.0
    %2678 = vmatprep.subr.mxu0 0.0
    %2679 = vmatpush1.msra.mxu0 0.0
    %2680 = vmatprep.subr.mxu0 0.0
    %2681 = vmatpush1.msra.mxu0 0.0
    %2682 = vmatprep.subr.mxu0 0.0
    %2683 = vmatpush1.msra.mxu0 0.0
    %2684 = vmatprep.subr.mxu0 0.0
    %2685 = vmatpush1.msra.mxu0 0.0
    %2686 = vmatprep.subr.mxu0 0.0
    %2687 = vmatpush1.msra.mxu0 0.0
    %2688 = vmatprep.subr.mxu0 0.0
    %2689 = vmatpush1.msra.mxu0 0.0
    %2690 = vmatprep.subr.mxu0 0.0
    %2691 = vmatpush1.msra.mxu0 0.0
    %2692 = vmatprep.subr.mxu0 0.0
    %2693 = vmatpush1.msra.mxu0 0.0
    %2694 = vmatprep.subr.mxu0 0.0
    %2695 = vmatpush1.msra.mxu0 0.0
    %2696 = vmatprep.subr.mxu0 0.0
    %2697 = vmatpush1.msra.mxu0 0.0
    %2698 = vmatprep.subr.mxu0 0.0
    %2699 = vmatpush1.msra.mxu0 0.0
    %2700 = vmatprep.subr.mxu0 0.0
    %2701 = vmatpush1.msra.mxu0 0.0
    %2702 = vmatprep.subr.mxu0 0.0
    %2703 = vmatpush1.msra.mxu0 0.0
    %2704 = vmatprep.subr.mxu0 0.0
    %2705 = vmatpush1.msra.mxu0 0.0
    %2706 = vmatprep.subr.mxu0 0.0
    %2707 = vmatpush1.msra.mxu0 0.0
    %2708 = vmatprep.subr.mxu0 0.0
    %2709 = vmatpush1.msra.mxu0 0.0
    %2710 = vmatprep.subr.mxu0 0.0
    %2711 = vmatpush1.msra.mxu0 0.0
    %2712 = vmatprep.subr.mxu0 0.0
    %2713 = vmatpush1.msra.mxu0 0.0
    %2714 = vmatprep.subr.mxu0 0.0
    %2715 = vmatpush1.msra.mxu0 0.0
    %2716 = vmatprep.subr.mxu0 0.0
    %2717 = vmatpush1.msra.mxu0 0.0
    %2718 = vmatprep.subr.mxu0 0.0
    %2719 = vmatpush1.msra.mxu0 0.0
    %2720 = vmatprep.subr.mxu0 0.0
    %2721 = vmatpush1.msra.mxu0 0.0
    %2722 = vmatprep.subr.mxu0 0.0
    %2723 = vmatpush1.msra.mxu0 0.0
    %2724 = vmatprep.subr.mxu0 0.0
    %2725 = vmatpush1.msra.mxu0 0.0
    %2726 = vmatprep.mubr.f32.mxu0 0.0
    %2727 = vmatmul.mubr.f32.gmra.mrb[0].mxu0 %v2660
    %v2728 = vpop.f32.mrb[0].mxu0
    %v2729 = vadd.f32 %v419, %v2728
    %v2730 = vpop.f32.mrb[0].mxu0
    %2731 = vdwg.mxu0
    %v2732 = vmax.f32 %v2729, 0.0
    %v2734 = vsel %vm224, %v2732, 0
    %2736 = vmatprep.subr.mxu0 0.0
    %2737 = vmatpush1.msra.mxu0 %v421
    %2738 = vmatprep.subr.mxu0 0.0
    %2739 = vmatpush1.msra.mxu0 %v422
    %2740 = vmatprep.subr.mxu0 0.0
    %2741 = vmatpush1.msra.mxu0 %v423
    %2742 = vmatprep.subr.mxu0 0.0
    %2743 = vmatpush1.msra.mxu0 %v424
    %2744 = vmatprep.subr.mxu0 0.0
    %2745 = vmatpush1.msra.mxu0 %v425
    %2746 = vmatprep.subr.mxu0 0.0
    %2747 = vmatpush1.msra.mxu0 %v426
    %2748 = vmatprep.subr.mxu0 0.0
    %2749 = vmatpush1.msra.mxu0 %v427
    %2750 = vmatprep.subr.mxu0 0.0
    %2751 = vmatpush1.msra.mxu0 %v428
    %2752 = vmatprep.subr.mxu0 0.0
    %2753 = vmatpush1.msra.mxu0 0.0
    %2754 = vmatprep.subr.mxu0 0.0
    %2755 = vmatpush1.msra.mxu0 0.0
    %2756 = vmatprep.subr.mxu0 0.0
    %2757 = vmatpush1.msra.mxu0 0.0
    %2758 = vmatprep.subr.mxu0 0.0
    %2759 = vmatpush1.msra.mxu0 0.0
    %2760 = vmatprep.subr.mxu0 0.0
    %2761 = vmatpush1.msra.mxu0 0.0
    %2762 = vmatprep.subr.mxu0 0.0
    %2763 = vmatpush1.msra.mxu0 0.0
    %2764 = vmatprep.subr.mxu0 0.0
    %2765 = vmatpush1.msra.mxu0 0.0
    %2766 = vmatprep.subr.mxu0 0.0
    %2767 = vmatpush1.msra.mxu0 0.0
    %2768 = vmatprep.subr.mxu0 0.0
    %2769 = vmatpush1.msra.mxu0 0.0
    %2770 = vmatprep.subr.mxu0 0.0
    %2771 = vmatpush1.msra.mxu0 0.0
    %2772 = vmatprep.subr.mxu0 0.0
    %2773 = vmatpush1.msra.mxu0 0.0
    %2774 = vmatprep.subr.mxu0 0.0
    %2775 = vmatpush1.msra.mxu0 0.0
    %2776 = vmatprep.subr.mxu0 0.0
    %2777 = vmatpush1.msra.mxu0 0.0
    %2778 = vmatprep.subr.mxu0 0.0
    %2779 = vmatpush1.msra.mxu0 0.0
    %2780 = vmatprep.subr.mxu0 0.0
    %2781 = vmatpush1.msra.mxu0 0.0
    %2782 = vmatprep.subr.mxu0 0.0
    %2783 = vmatpush1.msra.mxu0 0.0
    %2784 = vmatprep.subr.mxu0 0.0
    %2785 = vmatpush1.msra.mxu0 0.0
    %2786 = vmatprep.subr.mxu0 0.0
    %2787 = vmatpush1.msra.mxu0 0.0
    %2788 = vmatprep.subr.mxu0 0.0
    %2789 = vmatpush1.msra.mxu0 0.0
    %2790 = vmatprep.subr.mxu0 0.0
    %2791 = vmatpush1.msra.mxu0 0.0
    %2792 = vmatprep.subr.mxu0 0.0
    %2793 = vmatpush1.msra.mxu0 0.0
    %2794 = vmatprep.subr.mxu0 0.0
    %2795 = vmatpush1.msra.mxu0 0.0
    %2796 = vmatprep.subr.mxu0 0.0
    %2797 = vmatpush1.msra.mxu0 0.0
    %2798 = vmatprep.subr.mxu0 0.0
    %2799 = vmatpush1.msra.mxu0 0.0
    %2800 = vmatprep.mubr.f32.mxu0 0.0
    %2801 = vmatmul.mubr.f32.gmra.mrb[0].mxu0 %v2734
    %v2802 = vpop.f32.mrb[0].mxu0
    %v2803 = vadd.f32 %v434, %v2802
    %v2804 = vpop.f32.mrb[0].mxu0
    %2805 = vdwg.mxu0
    %s2806 = scalar_lea.vmem %s13, 28
    %v2807 = vld [vmem:[%s2806] sm:$0xf]
    %v2808 = vadd.f32 %v2803, %v2807
    %v2809 = vsel %vm701, %v2808, -inf
    %2810 = vmax.xlane.f32.xlu0 %v2809
    %v2811 = vpop.xlane.xlu0 %2810
    %vm2812 = vcmp.ge.f32.partialorder %v2808, %v2811
    %v2813 = vsel %vm2812, %v437, 128
    %v2814 = vsel %vm701, %v2813, 2147483647
    %v2815 = vand.u32 %v2814, 65535
    %v2816 = vshra.s32 %v2814, 16
    %v2817 = vcvt.s32.f32 %v2815
    %v2818 = vcvt.s32.f32 %v2816
    %2819 = vmin.xlane.f32.xlu0 %v2818
    %v2820 = vpop.xlane.xlu0 %2819
    %vm2821 = vcmp.eq.f32.partialorder %v2818, %v2820
    %v2822 = vsel %vm2821, %v2817, inf
    %2823 = vmin.xlane.f32.xlu0 %v2822
    %v2824 = vpop.xlane.xlu0 %2823
    %v2825 = vcvt.f32.s32 %v2824
    %v2826 = vcvt.f32.s32 %v2820
    %v2827 = vshll.u32 %v2826, 16
    %v2828 = vadd.s32 %v2827, %v2825
    %v2829 = vsel %vm701, %v2803, -inf
    %2830 = vmax.xlane.f32.xlu0 %v2829
    %v2831 = vpop.xlane.xlu0 %2830
    %v2832 = vsub.f32 %v2803, %v2831
    %v2833 = vmul.f32 %v2832, 1.442695
    %v2834 = vpow.pop %v2833
    %v2835 = vsel %vm701, %v2834, 0.0
    %2836 = vadd.xlane.f32.xlu0 %v2835
    %v2837 = vpop.xlane.xlu0 %2836
    %v2838 = vlog2.pop %v2837
    %v2839 = vmul.f32 %v2838, 0.6931472
    %v2840 = vrcp.pop %v2837
    %v2841 = vmul.f32 %v2834, %v2832
    %v2842 = vsel %vm701, %v2841, 0.0
    %2843 = vadd.xlane.f32.xlu0 %v2842
    %v2844 = vpop.xlane.xlu0 %2843
    %v2845 = vmul.f32 %v2840, %v2844
    %v2846 = vsub.f32 %v2839, %v2845
    %vm2847 = vcmp.eq.s32.totalorder %v437, %v2828
    %v2848 = vsel %vm2847, %v2832, 0.0
    %v2849 = vsel %vm701, %v2848, 0.0
    %2850 = vadd.xlane.f32.xlu0 %v2849
    %v2851 = vpop.xlane.xlu0 %2850
    %v2852 = vsub.f32 %v2851, %v2839
    %vm2853 = vcmask 7168
    %v2854 = vsel %vm2853, %v721, %v1022
    %vm2855 = vcmask 15360
    %v2856 = vsel %vm2855, %v2854, %v1323
    %vm2857 = vcmask 23552
    %v2858 = vsel %vm2857, %v2856, %v1624
    %vm2859 = vcmask 31744
    %v2860 = vsel %vm2859, %v2858, %v1925
    %vm2861 = vcmask 39936
    %v2862 = vsel %vm2861, %v2860, %v2226
    %vm2863 = vcmask 48128
    %v2864 = vsel %vm2863, %v2862, %v2527
    %vm2865 = vcmask 56320
    %v2866 = vsel %vm2865, %v2864, %v2828
    %vm2867 = vcmask 60416
    %2868 = vst.msk [vmem:[#allocation13] sm:$0xf] %vm2867, %v2866
    %v2869 = vsel %vm2853, %v745, %v1046
    %v2870 = vsel %vm2855, %v2869, %v1347
    %v2871 = vsel %vm2857, %v2870, %v1648
    %v2872 = vsel %vm2859, %v2871, %v1949
    %v2873 = vsel %vm2861, %v2872, %v2250
    %v2874 = vsel %vm2863, %v2873, %v2551
    %v2875 = vsel %vm2865, %v2874, %v2852
    %2876 = vst.msk [vmem:[#allocation14] sm:$0xf] %vm2867, %v2875
    %v2877 = vsel %vm2853, %v739, %v1040
    %v2878 = vsel %vm2855, %v2877, %v1341
    %v2879 = vsel %vm2857, %v2878, %v1642
    %v2880 = vsel %vm2859, %v2879, %v1943
    %v2881 = vsel %vm2861, %v2880, %v2244
    %v2882 = vsel %vm2863, %v2881, %v2545
    %v2883 = vsel %vm2865, %v2882, %v2846
    %2884 = vst.msk [vmem:[#allocation16] sm:$0xf] %vm2867, %v2883
    // Predicated region
    $region82: #{tpu_custom_call.1} parent=1 // pred_check
      _
    $region83: #{tpu_custom_call.1} parent=1 // pred_check_branch
      %2886 = sbr.rel (0) target = $region85
    $region84: #{tpu_custom_call.1} parent=1 // pred_region
      %s2888 = ssub.s32 64, 64
      %2889 = vsyncadd [#allocation4], %s2888
      %s2891 = sshll.u32 [#allocation13], 4
      %s2892 = int_to_ptr.vmem [resolvable:$true] %s2891
      %2894 = dma.vmem_to_hbm [thread:$0]  %s2892, 64, %s14, [#allocation4]
    $region85: #{tpu_custom_call.1} parent=1 // pred_fallthru
      _
    // Predicated region
    $region86: #{tpu_custom_call.1} parent=1 // pred_check
      _
    $region87: #{tpu_custom_call.1} parent=1 // pred_check_branch
      %2896 = sbr.rel (0) target = $region89
    $region88: #{tpu_custom_call.1} parent=1 // pred_region
      %s2898 = ssub.s32 64, 64
      %2899 = vsyncadd [#allocation15], %s2898
      %s2901 = sshll.u32 [#allocation14], 4
      %s2902 = int_to_ptr.vmem [resolvable:$true] %s2901
      %2904 = dma.vmem_to_hbm [thread:$0]  %s2902, 64, %s15, [#allocation15]
    $region89: #{tpu_custom_call.1} parent=1 // pred_fallthru
      _
    // Predicated region
    $region90: #{tpu_custom_call.1} parent=1 // pred_check
      _
    $region91: #{tpu_custom_call.1} parent=1 // pred_check_branch
      %2906 = sbr.rel (0) target = $region93
    $region92: #{tpu_custom_call.1} parent=1 // pred_region
      %s2908 = ssub.s32 64, 64
      %2909 = vsyncadd [#allocation15], %s2908
      %s2911 = sshll.u32 [#allocation16], 4
      %s2912 = int_to_ptr.vmem [resolvable:$true] %s2911
      %2914 = dma.vmem_to_hbm [thread:$0]  %s2912, 64, %s16, [#allocation15]
    $region93: #{tpu_custom_call.1} parent=1 // pred_fallthru
      _
    // Predicated region
    $region94: #{tpu_custom_call.1} parent=1 // pred_check
      _
    $region95: #{tpu_custom_call.1} parent=1 // pred_check_branch
      %2916 = sbr.rel (0) target = $region97
    $region96: #{tpu_custom_call.1} parent=1 // pred_region
      %2917 = dma.done [#allocation4], 64
    $region97: #{tpu_custom_call.1} parent=1 // pred_fallthru
      _
    // Predicated region
    $region98: #{tpu_custom_call.1} parent=1 // pred_check
      _
    $region99: #{tpu_custom_call.1} parent=1 // pred_check_branch
      %2919 = sbr.rel (0) target = $region101
    $region100: #{tpu_custom_call.1} parent=1 // pred_region
      %2920 = dma.done [#allocation15], 64
    $region101: #{tpu_custom_call.1} parent=1 // pred_fallthru
      _
    // Predicated region
    $region102: #{tpu_custom_call.1} parent=1 // pred_check
      _
    $region103: #{tpu_custom_call.1} parent=1 // pred_check_branch
      %2922 = sbr.rel (0) target = $region105
    $region104: #{tpu_custom_call.1} parent=1 // pred_region
      %2923 = dma.done [#allocation15], 64
    $region105: #{tpu_custom_call.1} parent=1 // pred_fallthru
      _
    %2924 = vsyncpa [#allocation3], 1
    %2925 = vsyncpa [#allocation6], 1
    %2926 = vsyncpa [#allocation9], 1
    %2927 = vsyncpa [#allocation12], 1
    %2928 = vsyncpa [#allocation4], 1
    %2929 = vsyncpa [#allocation15], 1

</llo_original>
